<compile_context>
chip_gen: v7x
topology: tpu7x:2x2x1
jax: 0.10.0
libtpu: 0.0.40
codegen_flags: <defaults>
</compile_context>

<pallas_src>
import functools
import math
import random

import numpy as np
import jax
import jax.numpy as jnp
from jax import lax
from jax.experimental import pallas as pl
from jax.experimental.pallas import tpu as pltpu


# ----------------------------------------------------------------------------
# helpers
# ----------------------------------------------------------------------------
def _full_spec(shape):
    """Whole-array VMEM block (no grid)."""
    nd = len(shape)
    return pl.BlockSpec(shape, lambda: (0,) * nd)


_SMEM_SPEC = pl.BlockSpec(memory_space=pltpu.MemorySpace.SMEM)


# ----------------------------------------------------------------------------
# Kernel A: fused Latents.forward (sigmoid) + synthetic BigGAN generator
# ----------------------------------------------------------------------------
def _generator_kernel(normu_ref, cls_ref, wz_ref, wc_ref, o_ref):
    # TODO(synk): BigGAN-deep replaced by a synthetic dense layer + tanh,
    # averaged over per-layer latent vectors; (out+1)/2 as in Model.forward.
    z_mean = jnp.mean(normu_ref[...], axis=0, keepdims=True)            # [1, Z]
    classes = 1.0 / (1.0 + jnp.exp(-cls_ref[...]))                      # [L, C]
    c_mean = jnp.mean(classes, axis=0, keepdims=True)                   # [1, C]
    y = jnp.dot(z_mean.astype(jnp.bfloat16), wz_ref[...],
                preferred_element_type=jnp.float32)                     # [1, 3*W*W]
    y = y + jnp.dot(c_mean.astype(jnp.bfloat16), wc_ref[...],
                    preferred_element_type=jnp.float32)
    y = jnp.tanh(y)
    o_ref[...] = (y + 1.0) * 0.5


def pallas_generator(normu, cls_logits, wz, wc):
    P = wz.shape[1]
    return pl.pallas_call(
        _generator_kernel,
        out_shape=jax.ShapeDtypeStruct((1, P), jnp.float32),
        in_specs=[_full_spec(normu.shape), _full_spec(cls_logits.shape),
                  _full_spec(wz.shape), _full_spec(wc.shape)],
        out_specs=_full_spec((1, P)),
    )(normu, cls_logits, wz, wc)


# ----------------------------------------------------------------------------
# Kernel B: fused CLIP image encode + lat_loss + cls_loss + sim_loss
# ----------------------------------------------------------------------------
def _losses_kernel(thresh_ref, into_ref, w_ref, b_ref, lat_ref, cls_ref,
                   emb_ref, o_ref, *, n_txt, loss_coef):
    # --- CLIP encode: normalization folded into weights -> x @ W' - b ---
    # TODO(synk): CLIP image encoder replaced by a single linear projection.
    img = jnp.dot(into_ref[...].astype(jnp.bfloat16), w_ref[...],
                  preferred_element_type=jnp.float32) - b_ref[...]      # [N, D]

    # --- lat_loss (matches the PyTorch reference math) ---
    lat = lat_ref[...]                                                  # [L, Z]
    L, Z = lat.shape
    row_mean = jnp.mean(lat, axis=1, keepdims=True)                     # [L, 1]
    diffs = lat - row_mean
    ss = jnp.sum(diffs * diffs, axis=1, keepdims=True)                  # [L, 1]
    std_unb = jnp.sqrt(ss / (Z - 1))                                    # torch.std (ddof=1)
    term1 = jnp.mean(jnp.abs(1.0 - std_unb))
    term2 = jnp.mean(jnp.abs(row_mean))
    term3 = 4.0 * jnp.maximum(jnp.mean(lat * lat), thresh_ref[0, 0])
    var_b = ss / Z                                                      # biased variance
    inv_std_b = lax.rsqrt(jnp.maximum(var_b, 1e-20))                    # rsqrt on EUP
    zsc = diffs * inv_std_b
    z2 = zsc * zsc
    skew = jnp.mean(z2 * zsc, axis=1, keepdims=True)
    kurt = jnp.mean(z2 * z2, axis=1, keepdims=True) - 3.0
    term4 = jnp.sum(jnp.abs(kurt) + jnp.abs(skew)) / L
    lat_loss = term1 + term2 + term3 + term4

    # --- cls_loss: topk(largest=False, k=C-1) of positive values == drop max ---
    c = 1.0 / (1.0 + jnp.exp(-cls_ref[...]))                            # [L, C]
    Lc, C = c.shape
    sq = c * c
    dropped = jnp.sum(jnp.max(sq, axis=1, keepdims=True))
    cls_loss = 2500.0 * (jnp.sum(sq) - dropped) / (Lc * (C - 1))

    # --- sim_loss: signed mean cosine similarity ---
    t = emb_ref[...]                                                    # [T, D]
    T = t.shape[0]
    dots = lax.dot_general(t, img, (((1,), (1,)), ((), ())),
                           preferred_element_type=jnp.float32)          # [T, N]
    inv_t = lax.rsqrt(jnp.maximum(jnp.sum(t * t, axis=1, keepdims=True), 1e-12))
    inv_i = lax.rsqrt(jnp.maximum(jnp.sum(img * img, axis=1, keepdims=True), 1e-12))
    cos = dots * inv_t * inv_i.reshape(1, -1)
    cos_mean = jnp.mean(cos, axis=1, keepdims=True)                     # [T, 1]
    sign = jnp.where(lax.broadcasted_iota(jnp.int32, (T, 1), 0) < n_txt,
                     -1.0, 1.0)
    sim_loss = jnp.sum(sign * loss_coef * cos_mean)

    o_ref[0, 0] = lat_loss
    o_ref[0, 1] = cls_loss
    o_ref[0, 2] = sim_loss
    o_ref[0, 3] = 0.0


def pallas_losses(thresh, into_flat, w_img, b_img, normu, cls_logits,
                  all_embeds, n_txt, loss_coef):
    kern = functools.partial(_losses_kernel, n_txt=n_txt,
                             loss_coef=float(loss_coef))
    out = pl.pallas_call(
        kern,
        out_shape=jax.ShapeDtypeStruct((1, 4), jnp.float32),
        in_specs=[_SMEM_SPEC,
                  _full_spec(into_flat.shape), _full_spec(w_img.shape),
                  _full_spec(b_img.shape), _full_spec(normu.shape),
                  _full_spec(cls_logits.shape), _full_spec(all_embeds.shape)],
        out_specs=_SMEM_SPEC,
    )(thresh, into_flat, w_img, b_img, normu, cls_logits, all_embeds)
    return out[0, 0], out[0, 1], out[0, 2]


# ----------------------------------------------------------------------------
# jitted device path: generator kernel -> batched cutout gather -> losses kernel
# ----------------------------------------------------------------------------
@functools.partial(jax.jit,
                   static_argnames=("n_txt", "loss_coef", "image_width"))
def _device_forward(normu, cls_logits, wz, wc, cut_idx, thresh, w_img, b_img,
                    text_embeds, stick_embeds, *, n_txt, loss_coef, image_width):
    flat_out = pallas_generator(normu, cls_logits, wz, wc)              # [1, 3*W*W]
    out = flat_out.reshape(1, 3, image_width, image_width)
    # cutouts + nearest resize == one static batched gather over flat pixels
    # TODO(synk): gather could move inside the losses kernel via scalar-prefetch
    # index tables; kept as a single XLA gather here for lowering robustness.
    into_flat = jnp.take(flat_out.reshape(-1), cut_idx, axis=0)         # [N, 3*S*S]
    if stick_embeds is not None and stick_embeds.shape[0] > 0:
        all_embeds = jnp.concatenate([text_embeds, stick_embeds], axis=0)
    else:
        all_embeds = text_embeds
    lat_loss, cls_loss, sim_loss = pallas_losses(
        thresh, into_flat, w_img, b_img, normu, cls_logits, all_embeds,
        n_txt, loss_coef)
    return out, lat_loss, cls_loss, sim_loss


# ----------------------------------------------------------------------------
# BigSleep (Pallas version)
# ----------------------------------------------------------------------------
class BigSleepPallas:
    def __init__(self, num_cutouts=4, loss_coef=100.0, image_width=32,
                 clip_resolution=32, clip_embed_dim=32,
                 num_latents=4, num_classes=16, z_dim=32, seed=0):
        self.num_cutouts = num_cutouts
        self.loss_coef = float(loss_coef)
        self.image_width = image_width
        self.clip_resolution = clip_resolution

        key = jax.random.PRNGKey(seed)
        k1, k2, k3, k4 = jax.random.split(key, 4)

        # Latents parameters (as in Latents.__init__)
        self.normu = jax.random.normal(k1, (num_latents, z_dim), jnp.float32)
        self.cls = -3.9 + 0.3 * jax.random.normal(
            k2, (num_latents, num_classes), jnp.float32)
        self.thresh_lat = jnp.ones((1, 1), jnp.float32)  # registered buffer tensor(1)

        # Synthetic generator weights (BigGAN stand-in), split so the kernel can
        # apply latents@Wz + sigmoid(cls)@Wc without a host-side concat. bf16.
        fan_in = z_dim + num_classes
        w_gen = jax.random.normal(
            k3, (fan_in, 3 * image_width * image_width), jnp.float32) / math.sqrt(fan_in)
        self.w_gen_z = w_gen[:z_dim].astype(jnp.bfloat16)
        self.w_gen_c = w_gen[z_dim:].astype(jnp.bfloat16)

        # Synthetic CLIP image-encoder weights with the CLIP pixel normalization
        # folded in host-side:  (x - mean)/std @ W  ==  x @ (W/std) - (mean/std)@W
        pix = 3 * clip_resolution * clip_resolution
        w_img = jax.random.normal(k4, (pix, clip_embed_dim), jnp.float32) / math.sqrt(pix)
        clip_mean = np.array([0.48145466, 0.4578275, 0.40821073], np.float32)
        clip_std = np.array([0.26862954, 0.26130258, 0.27577711], np.float32)
        mean_vec = np.repeat(clip_mean, clip_resolution * clip_resolution)   # [pix]
        std_vec = np.repeat(clip_std, clip_resolution * clip_resolution)     # [pix]
        w_img_np = np.asarray(w_img)
        self.w_img_folded = jnp.asarray(
            (w_img_np / std_vec[:, None]).astype(np.float32)).astype(jnp.bfloat16)
        self.b_img = jnp.asarray(
            ((mean_vec / std_vec)[None, :] @ w_img_np).astype(np.float32))   # [1, D]

        # Cutout + nearest-resize index tables, precomputed once (deterministic).
        # TODO(synk): original draws fresh cutouts per forward(); fixed here to
        # keep shapes static and avoid per-call host RNG / recompilation.
        rng = random.Random(1234)
        W, S = image_width, clip_resolution
        idx_rows = []
        for _ in range(num_cutouts):
            frac = min(max(rng.gauss(0.8, 0.3), 0.5), 0.95)
            size = int(W * frac)
            off_x = rng.randint(0, W - size)   # row offset (H axis)
            off_y = rng.randint(0, W - size)   # col offset (W axis)
            # F.interpolate(mode='nearest'): src = floor(dst * in/out)
            r = np.clip(np.floor(np.arange(S) * (size / S)).astype(np.int64),
                        0, size - 1) + off_x
            c = np.clip(np.floor(np.arange(S) * (size / S)).astype(np.int64),
                        0, size - 1) + off_y
            rc = (r[:, None] * W + c[None, :]).reshape(-1)                    # [S*S]
            full = (np.arange(3)[:, None] * (W * W) + rc[None, :]).reshape(-1)  # [3*S*S]
            idx_rows.append(full)
        self.cut_idx = jnp.asarray(np.stack(idx_rows).astype(np.int32))       # [N, 3*S*S]

        # TODO(synk): EMA wrapper and differentiable_topk (max_classes path) not implemented.

    def forward(self, text_embeds, stick_embeds=None, return_loss=True):
        if not return_loss:
            flat_out = pallas_generator(self.normu, self.cls,
                                        self.w_gen_z, self.w_gen_c)
            return flat_out.reshape(1, 3, self.image_width, self.image_width)

        n_txt = int(text_embeds.shape[0])
        out, lat_loss, cls_loss, sim_loss = _device_forward(
            self.normu, self.cls, self.w_gen_z, self.w_gen_c, self.cut_idx,
            self.thresh_lat, self.w_img_folded, self.b_img,
            text_embeds, stick_embeds,
            n_txt=n_txt, loss_coef=self.loss_coef, image_width=self.image_width)
        return out, (lat_loss, cls_loss, sim_loss)


# ----------------------------------------------------------------------------
# main
# ----------------------------------------------------------------------------
if __name__ == "__main__":
    D = 32
    model = BigSleepPallas(num_cutouts=4, loss_coef=100.0, image_width=32,
                           clip_resolution=32, clip_embed_dim=D,
                           num_latents=4, num_classes=16, z_dim=32, seed=0)

    key = jax.random.PRNGKey(0)
    kt, ks = jax.random.split(key)
    text_embeds = jax.random.normal(kt, (2, D), jnp.float32)
    stick_embeds = jax.random.normal(ks, (1, D), jnp.float32)

    out, (lat_loss, cls_loss, sim_loss) = model.forward(text_embeds, stick_embeds)
    jax.block_until_ready((out, lat_loss, cls_loss, sim_loss))
    print("KERNEL_OK")
</pallas_src>

<mosaic_0001>
module attributes {stable_mosaic.version = 11 : i64} {
  func.func @_generator_kernel(%arg0: memref<4x32xf32, #tpu.memory_space<vmem>>, %arg1: memref<4x16xf32, #tpu.memory_space<vmem>>, %arg2: memref<32x3072xbf16, #tpu.memory_space<vmem>>, %arg3: memref<16x3072xbf16, #tpu.memory_space<vmem>>, %arg4: memref<1x3072xf32, #tpu.memory_space<vmem>>) attributes {dimension_semantics = [], scalar_prefetch = 0 : i64, scratch_operands = 0 : i64, tpu.core_type = #tpu.core_type<tc>} {
    %c0 = arith.constant 0 : index
    %c0_0 = arith.constant 0 : index
    %0 = vector.load %arg0[%c0, %c0_0] : memref<4x32xf32, #tpu.memory_space<vmem>>, vector<4x32xf32>
    %cst = arith.constant dense<0.000000e+00> : vector<32xf32>
    %1 = vector.multi_reduction <add>, %0, %cst [0] : vector<4x32xf32> to vector<32xf32>
    %2 = vector.shape_cast %1 : vector<32xf32> to vector<1x32xf32>
    %cst_1 = arith.constant 4.000000e+00 : f32
    %3 = vector.broadcast %cst_1 : f32 to vector<1x32xf32>
    %4 = arith.divf %2, %3 : vector<1x32xf32>
    %c0_2 = arith.constant 0 : index
    %c0_3 = arith.constant 0 : index
    %5 = vector.load %arg1[%c0_2, %c0_3] : memref<4x16xf32, #tpu.memory_space<vmem>>, vector<4x16xf32>
    %cst_4 = arith.constant 0.000000e+00 : f32
    %6 = vector.broadcast %cst_4 : f32 to vector<4x16xf32>
    %7 = arith.subf %6, %5 : vector<4x16xf32>
    %8 = math.exp %7 : vector<4x16xf32>
    %cst_5 = arith.constant 1.000000e+00 : f32
    %9 = vector.broadcast %cst_5 : f32 to vector<4x16xf32>
    %10 = arith.addf %9, %8 : vector<4x16xf32>
    %cst_6 = arith.constant 1.000000e+00 : f32
    %11 = vector.broadcast %cst_6 : f32 to vector<4x16xf32>
    %12 = arith.divf %11, %10 : vector<4x16xf32>
    %cst_7 = arith.constant dense<0.000000e+00> : vector<16xf32>
    %13 = vector.multi_reduction <add>, %12, %cst_7 [0] : vector<4x16xf32> to vector<16xf32>
    %14 = vector.shape_cast %13 : vector<16xf32> to vector<1x16xf32>
    %cst_8 = arith.constant 4.000000e+00 : f32
    %15 = vector.broadcast %cst_8 : f32 to vector<1x16xf32>
    %16 = arith.divf %14, %15 : vector<1x16xf32>
    %17 = arith.truncf %4 : vector<1x32xf32> to vector<1x32xbf16>
    %c0_9 = arith.constant 0 : index
    %c0_10 = arith.constant 0 : index
    %18 = vector.load %arg2[%c0_9, %c0_10] : memref<32x3072xbf16, #tpu.memory_space<vmem>>, vector<32x3072xbf16>
    %cst_11 = arith.constant dense<0.000000e+00> : vector<1x3072xf32>
    %19 = tpu.matmul %17, %18, %cst_11 {dimension_numbers = #tpu.dot_dimension_numbers<[1], [0], [0], [1], [0, 0, 1, 1], [], []>} : vector<1x32xbf16>, vector<32x3072xbf16>, vector<1x3072xf32> -> vector<1x3072xf32>
    %20 = arith.truncf %16 : vector<1x16xf32> to vector<1x16xbf16>
    %c0_12 = arith.constant 0 : index
    %c0_13 = arith.constant 0 : index
    %21 = vector.load %arg3[%c0_12, %c0_13] : memref<16x3072xbf16, #tpu.memory_space<vmem>>, vector<16x3072xbf16>
    %cst_14 = arith.constant dense<0.000000e+00> : vector<1x3072xf32>
    %22 = tpu.matmul %20, %21, %cst_14 {dimension_numbers = #tpu.dot_dimension_numbers<[1], [0], [0], [1], [0, 0, 1, 1], [], []>} : vector<1x16xbf16>, vector<16x3072xbf16>, vector<1x3072xf32> -> vector<1x3072xf32>
    %23 = arith.addf %19, %22 : vector<1x3072xf32>
    %24 = math.tanh %23 : vector<1x3072xf32>
    %cst_15 = arith.constant 1.000000e+00 : f32
    %25 = vector.broadcast %cst_15 : f32 to vector<1x3072xf32>
    %26 = arith.addf %24, %25 : vector<1x3072xf32>
    %cst_16 = arith.constant 5.000000e-01 : f32
    %27 = vector.broadcast %cst_16 : f32 to vector<1x3072xf32>
    %28 = arith.mulf %26, %27 : vector<1x3072xf32>
    %c0_17 = arith.constant 0 : index
    %c0_18 = arith.constant 0 : index
    %29 = vector.load %arg4[%c0_17, %c0_18] : memref<1x3072xf32, #tpu.memory_space<vmem>>, vector<1x3072xf32>
    tpu.vector_store %arg4[%c0_17, %c0_18], %28 {strides = array<i32>} : memref<1x3072xf32, #tpu.memory_space<vmem>>, vector<1x3072xf32>,
    return
  }
}

module attributes {stable_mosaic.version = 11 : i64} {
  func.func @_losses_kernel(%arg0: memref<1x1xf32, #tpu.memory_space<smem>>, %arg1: memref<4x3072xf32, #tpu.memory_space<vmem>>, %arg2: memref<3072x32xbf16, #tpu.memory_space<vmem>>, %arg3: memref<1x32xf32, #tpu.memory_space<vmem>>, %arg4: memref<4x32xf32, #tpu.memory_space<vmem>>, %arg5: memref<4x16xf32, #tpu.memory_space<vmem>>, %arg6: memref<3x32xf32, #tpu.memory_space<vmem>>, %arg7: memref<1x4xf32, #tpu.memory_space<smem>>) attributes {dimension_semantics = [], scalar_prefetch = 0 : i64, scratch_operands = 0 : i64, tpu.core_type = #tpu.core_type<tc>} {
    %c0 = arith.constant 0 : index
    %c0_0 = arith.constant 0 : index
    %0 = vector.load %arg1[%c0, %c0_0] : memref<4x3072xf32, #tpu.memory_space<vmem>>, vector<4x3072xf32>
    %1 = arith.truncf %0 : vector<4x3072xf32> to vector<4x3072xbf16>
    %c0_1 = arith.constant 0 : index
    %c0_2 = arith.constant 0 : index
    %2 = vector.load %arg2[%c0_1, %c0_2] : memref<3072x32xbf16, #tpu.memory_space<vmem>>, vector<3072x32xbf16>
    %cst = arith.constant dense<0.000000e+00> : vector<4x32xf32>
    %3 = tpu.matmul %1, %2, %cst {dimension_numbers = #tpu.dot_dimension_numbers<[1], [0], [0], [1], [0, 0, 1, 1], [], []>} : vector<4x3072xbf16>, vector<3072x32xbf16>, vector<4x32xf32> -> vector<4x32xf32>
    %c0_3 = arith.constant 0 : index
    %c0_4 = arith.constant 0 : index
    %4 = vector.load %arg3[%c0_3, %c0_4] : memref<1x32xf32, #tpu.memory_space<vmem>>, vector<1x32xf32>
    %5 = vector.broadcast %4 : vector<1x32xf32> to vector<4x32xf32>
    %6 = arith.subf %3, %5 : vector<4x32xf32>
    %c0_5 = arith.constant 0 : index
    %c0_6 = arith.constant 0 : index
    %7 = vector.load %arg4[%c0_5, %c0_6] : memref<4x32xf32, #tpu.memory_space<vmem>>, vector<4x32xf32>
    %cst_7 = arith.constant dense<0.000000e+00> : vector<4xf32>
    %8 = vector.multi_reduction <add>, %7, %cst_7 [1] : vector<4x32xf32> to vector<4xf32>
    %9 = vector.shape_cast %8 : vector<4xf32> to vector<4x1xf32>
    %cst_8 = arith.constant 3.200000e+01 : f32
    %10 = vector.broadcast %cst_8 : f32 to vector<4x1xf32>
    %11 = arith.divf %9, %10 : vector<4x1xf32>
    %12 = vector.broadcast %11 : vector<4x1xf32> to vector<4x32xf32>
    %13 = arith.subf %7, %12 : vector<4x32xf32>
    %14 = arith.mulf %13, %13 : vector<4x32xf32>
    %cst_9 = arith.constant dense<0.000000e+00> : vector<4xf32>
    %15 = vector.multi_reduction <add>, %14, %cst_9 [1] : vector<4x32xf32> to vector<4xf32>
    %16 = vector.shape_cast %15 : vector<4xf32> to vector<4x1xf32>
    %cst_10 = arith.constant 3.100000e+01 : f32
    %17 = vector.broadcast %cst_10 : f32 to vector<4x1xf32>
    %18 = arith.divf %16, %17 : vector<4x1xf32>
    %19 = math.sqrt %18 : vector<4x1xf32>
    %cst_11 = arith.constant 1.000000e+00 : f32
    %20 = vector.broadcast %cst_11 : f32 to vector<4x1xf32>
    %21 = arith.subf %20, %19 : vector<4x1xf32>
    %22 = math.absf %21 : vector<4x1xf32>
    %23 = vector.shape_cast %22 : vector<4x1xf32> to vector<1x4x1xf32>
    %cst_12 = arith.constant dense<0.000000e+00> : vector<1xf32>
    %24 = vector.multi_reduction <add>, %23, %cst_12 [1, 2] : vector<1x4x1xf32> to vector<1xf32>
    %25 = vector.shape_cast %24 : vector<1xf32> to vector<1x1x1xf32>
    %26 = vector.extract %25[0, 0, 0] : f32 from vector<1x1x1xf32>
    %cst_13 = arith.constant 4.000000e+00 : f32
    %27 = arith.divf %26, %cst_13 : f32
    %28 = math.absf %11 : vector<4x1xf32>
    %29 = vector.shape_cast %28 : vector<4x1xf32> to vector<1x4x1xf32>
    %cst_14 = arith.constant dense<0.000000e+00> : vector<1xf32>
    %30 = vector.multi_reduction <add>, %29, %cst_14 [1, 2] : vector<1x4x1xf32> to vector<1xf32>
    %31 = vector.shape_cast %30 : vector<1xf32> to vector<1x1x1xf32>
    %32 = vector.extract %31[0, 0, 0] : f32 from vector<1x1x1xf32>
    %cst_15 = arith.constant 4.000000e+00 : f32
    %33 = arith.divf %32, %cst_15 : f32
    %34 = arith.mulf %7, %7 : vector<4x32xf32>
    %35 = vector.shape_cast %34 : vector<4x32xf32> to vector<1x4x32xf32>
    %cst_16 = arith.constant dense<0.000000e+00> : vector<1xf32>
    %36 = vector.multi_reduction <add>, %35, %cst_16 [1, 2] : vector<1x4x32xf32> to vector<1xf32>
    %37 = vector.shape_cast %36 : vector<1xf32> to vector<1x1x1xf32>
    %38 = vector.extract %37[0, 0, 0] : f32 from vector<1x1x1xf32>
    %cst_17 = arith.constant 1.280000e+02 : f32
    %39 = arith.divf %38, %cst_17 : f32
    %c0_18 = arith.constant 0 : index
    %c0_19 = arith.constant 0 : index
    %40 = memref.load %arg0[%c0_18, %c0_19] : memref<1x1xf32, #tpu.memory_space<smem>>
    %41 = arith.maximumf %39, %40 : f32
    %cst_20 = arith.constant 4.000000e+00 : f32
    %42 = arith.mulf %cst_20, %41 : f32
    %cst_21 = arith.constant 3.200000e+01 : f32
    %43 = vector.broadcast %cst_21 : f32 to vector<4x1xf32>
    %44 = arith.divf %16, %43 : vector<4x1xf32>
    %cst_22 = arith.constant 9.99999968E-21 : f32
    %45 = vector.broadcast %cst_22 : f32 to vector<4x1xf32>
    %46 = arith.maximumf %44, %45 : vector<4x1xf32>
    %47 = math.rsqrt %46 : vector<4x1xf32>
    %48 = vector.broadcast %47 : vector<4x1xf32> to vector<4x32xf32>
    %49 = arith.mulf %13, %48 : vector<4x32xf32>
    %50 = arith.mulf %49, %49 : vector<4x32xf32>
    %51 = arith.mulf %50, %49 : vector<4x32xf32>
    %cst_23 = arith.constant dense<0.000000e+00> : vector<4xf32>
    %52 = vector.multi_reduction <add>, %51, %cst_23 [1] : vector<4x32xf32> to vector<4xf32>
    %53 = vector.shape_cast %52 : vector<4xf32> to vector<4x1xf32>
    %cst_24 = arith.constant 3.200000e+01 : f32
    %54 = vector.broadcast %cst_24 : f32 to vector<4x1xf32>
    %55 = arith.divf %53, %54 : vector<4x1xf32>
    %56 = arith.mulf %50, %50 : vector<4x32xf32>
    %cst_25 = arith.constant dense<0.000000e+00> : vector<4xf32>
    %57 = vector.multi_reduction <add>, %56, %cst_25 [1] : vector<4x32xf32> to vector<4xf32>
    %58 = vector.shape_cast %57 : vector<4xf32> to vector<4x1xf32>
    %cst_26 = arith.constant 3.200000e+01 : f32
    %59 = vector.broadcast %cst_26 : f32 to vector<4x1xf32>
    %60 = arith.divf %58, %59 : vector<4x1xf32>
    %cst_27 = arith.constant 3.000000e+00 : f32
    %61 = vector.broadcast %cst_27 : f32 to vector<4x1xf32>
    %62 = arith.subf %60, %61 : vector<4x1xf32>
    %63 = math.absf %62 : vector<4x1xf32>
    %64 = math.absf %55 : vector<4x1xf32>
    %65 = arith.addf %63, %64 : vector<4x1xf32>
    %66 = vector.shape_cast %65 : vector<4x1xf32> to vector<1x4x1xf32>
    %cst_28 = arith.constant dense<0.000000e+00> : vector<1xf32>
    %67 = vector.multi_reduction <add>, %66, %cst_28 [1, 2] : vector<1x4x1xf32> to vector<1xf32>
    %68 = vector.shape_cast %67 : vector<1xf32> to vector<1x1x1xf32>
    %69 = vector.extract %68[0, 0, 0] : f32 from vector<1x1x1xf32>
    %cst_29 = arith.constant 4.000000e+00 : f32
    %70 = arith.divf %69, %cst_29 : f32
    %71 = arith.addf %27, %33 : f32
    %72 = arith.addf %71, %42 : f32
    %73 = arith.addf %72, %70 : f32
    %c0_30 = arith.constant 0 : index
    %c0_31 = arith.constant 0 : index
    %74 = vector.load %arg5[%c0_30, %c0_31] : memref<4x16xf32, #tpu.memory_space<vmem>>, vector<4x16xf32>
    %cst_32 = arith.constant 0.000000e+00 : f32
    %75 = vector.broadcast %cst_32 : f32 to vector<4x16xf32>
    %76 = arith.subf %75, %74 : vector<4x16xf32>
    %77 = math.exp %76 : vector<4x16xf32>
    %cst_33 = arith.constant 1.000000e+00 : f32
    %78 = vector.broadcast %cst_33 : f32 to vector<4x16xf32>
    %79 = arith.addf %78, %77 : vector<4x16xf32>
    %cst_34 = arith.constant 1.000000e+00 : f32
    %80 = vector.broadcast %cst_34 : f32 to vector<4x16xf32>
    %81 = arith.divf %80, %79 : vector<4x16xf32>
    %82 = arith.mulf %81, %81 : vector<4x16xf32>
    %cst_35 = arith.constant dense<0xFF800000> : vector<4xf32>
    %83 = vector.multi_reduction <maximumf>, %82, %cst_35 [1] : vector<4x16xf32> to vector<4xf32>
    %84 = vector.shape_cast %83 : vector<4xf32> to vector<4x1xf32>
    %85 = vector.shape_cast %84 : vector<4x1xf32> to vector<1x4x1xf32>
    %cst_36 = arith.constant dense<0.000000e+00> : vector<1xf32>
    %86 = vector.multi_reduction <add>, %85, %cst_36 [1, 2] : vector<1x4x1xf32> to vector<1xf32>
    %87 = vector.shape_cast %86 : vector<1xf32> to vector<1x1x1xf32>
    %88 = vector.extract %87[0, 0, 0] : f32 from vector<1x1x1xf32>
    %89 = vector.shape_cast %82 : vector<4x16xf32> to vector<1x4x16xf32>
    %cst_37 = arith.constant dense<0.000000e+00> : vector<1xf32>
    %90 = vector.multi_reduction <add>, %89, %cst_37 [1, 2] : vector<1x4x16xf32> to vector<1xf32>
    %91 = vector.shape_cast %90 : vector<1xf32> to vector<1x1x1xf32>
    %92 = vector.extract %91[0, 0, 0] : f32 from vector<1x1x1xf32>
    %93 = arith.subf %92, %88 : f32
    %cst_38 = arith.constant 2.500000e+03 : f32
    %94 = arith.mulf %cst_38, %93 : f32
    %cst_39 = arith.constant 6.000000e+01 : f32
    %95 = arith.divf %94, %cst_39 : f32
    %c0_40 = arith.constant 0 : index
    %c0_41 = arith.constant 0 : index
    %96 = vector.load %arg6[%c0_40, %c0_41] : memref<3x32xf32, #tpu.memory_space<vmem>>, vector<3x32xf32>
    %cst_42 = arith.constant dense<0.000000e+00> : vector<3x4xf32>
    %97 = tpu.matmul %96, %6, %cst_42 {dimension_numbers = #tpu.dot_dimension_numbers<[1], [1], [0], [0], [0, 0, 1, 0], [], []>} : vector<3x32xf32>, vector<4x32xf32>, vector<3x4xf32> -> vector<3x4xf32>
    %98 = arith.mulf %96, %96 : vector<3x32xf32>
    %cst_43 = arith.constant dense<0.000000e+00> : vector<3xf32>
    %99 = vector.multi_reduction <add>, %98, %cst_43 [1] : vector<3x32xf32> to vector<3xf32>
    %100 = vector.shape_cast %99 : vector<3xf32> to vector<3x1xf32>
    %cst_44 = arith.constant 9.99999996E-13 : f32
    %101 = vector.broadcast %cst_44 : f32 to vector<3x1xf32>
    %102 = arith.maximumf %100, %101 : vector<3x1xf32>
    %103 = math.rsqrt %102 : vector<3x1xf32>
    %104 = arith.mulf %6, %6 : vector<4x32xf32>
    %cst_45 = arith.constant dense<0.000000e+00> : vector<4xf32>
    %105 = vector.multi_reduction <add>, %104, %cst_45 [1] : vector<4x32xf32> to vector<4xf32>
    %106 = vector.shape_cast %105 : vector<4xf32> to vector<4x1xf32>
    %cst_46 = arith.constant 9.99999996E-13 : f32
    %107 = vector.broadcast %cst_46 : f32 to vector<4x1xf32>
    %108 = arith.maximumf %106, %107 : vector<4x1xf32>
    %109 = math.rsqrt %108 : vector<4x1xf32>
    %110 = vector.broadcast %103 : vector<3x1xf32> to vector<3x4xf32>
    %111 = arith.mulf %97, %110 : vector<3x4xf32>
    %112 = vector.shape_cast %109 : vector<4x1xf32> to vector<1x4xf32>
    %113 = vector.broadcast %112 : vector<1x4xf32> to vector<3x4xf32>
    %114 = arith.mulf %111, %113 : vector<3x4xf32>
    %cst_47 = arith.constant dense<0.000000e+00> : vector<3xf32>
    %115 = vector.multi_reduction <add>, %114, %cst_47 [1] : vector<3x4xf32> to vector<3xf32>
    %116 = vector.shape_cast %115 : vector<3xf32> to vector<3x1xf32>
    %cst_48 = arith.constant 4.000000e+00 : f32
    %117 = vector.broadcast %cst_48 : f32 to vector<3x1xf32>
    %118 = arith.divf %116, %117 : vector<3x1xf32>
    %119 = tpu.iota {dimensions = array<i32: 0>} : vector<3x1xi32>
    %c2_i32 = arith.constant 2 : i32
    %120 = vector.broadcast %c2_i32 : i32 to vector<3x1xi32>
    %121 = arith.cmpi slt, %119, %120 : vector<3x1xi32>
    %cst_49 = arith.constant -1.000000e+00 : f32
    %cst_50 = arith.constant 1.000000e+00 : f32
    %122 = vector.broadcast %cst_49 : f32 to vector<3x1xf32>
    %123 = vector.broadcast %cst_50 : f32 to vector<3x1xf32>
    %124 = arith.select %121, %122, %123 : vector<3x1xi1>, vector<3x1xf32>
    %cst_51 = arith.constant 1.000000e+02 : f32
    %125 = vector.broadcast %cst_51 : f32 to vector<3x1xf32>
    %126 = arith.mulf %124, %125 : vector<3x1xf32>
    %127 = arith.mulf %126, %118 : vector<3x1xf32>
    %128 = vector.shape_cast %127 : vector<3x1xf32> to vector<1x3x1xf32>
    %cst_52 = arith.constant dense<0.000000e+00> : vector<1xf32>
    %129 = vector.multi_reduction <add>, %128, %cst_52 [1, 2] : vector<1x3x1xf32> to vector<1xf32>
    %130 = vector.shape_cast %129 : vector<1xf32> to vector<1x1x1xf32>
    %131 = vector.extract %130[0, 0, 0] : f32 from vector<1x1x1xf32>
    %c0_53 = arith.constant 0 : index
    %c0_54 = arith.constant 0 : index
    %132 = memref.load %arg7[%c0_53, %c0_54] : memref<1x4xf32, #tpu.memory_space<smem>>
    memref.store %73, %arg7[%c0_53, %c0_54] : memref<1x4xf32, #tpu.memory_space<smem>>
    %c0_55 = arith.constant 0 : index
    %c1 = arith.constant 1 : index
    %133 = memref.load %arg7[%c0_55, %c1] : memref<1x4xf32, #tpu.memory_space<smem>>
    memref.store %95, %arg7[%c0_55, %c1] : memref<1x4xf32, #tpu.memory_space<smem>>
    %c0_56 = arith.constant 0 : index
    %c2 = arith.constant 2 : index
    %134 = memref.load %arg7[%c0_56, %c2] : memref<1x4xf32, #tpu.memory_space<smem>>
    memref.store %131, %arg7[%c0_56, %c2] : memref<1x4xf32, #tpu.memory_space<smem>>
    %cst_57 = arith.constant 0.000000e+00 : f32
    %c0_58 = arith.constant 0 : index
    %c3 = arith.constant 3 : index
    %135 = memref.load %arg7[%c0_58, %c3] : memref<1x4xf32, #tpu.memory_space<smem>>
    memref.store %cst_57, %arg7[%c0_58, %c3] : memref<1x4xf32, #tpu.memory_space<smem>>
    return
  }
}

</mosaic_0001>

<llo_original>
// kernel: _device_forward.2
$region0: #{_device_forward.2}
  #allocation0 [shape = 'u32[]', space=smem, size = 0x4, offset = 0x4, fixed_abs, tag = 'smem constant byte address 0x4 - core index']
  #allocation1 [shape = 'u32[144,128]{1,0:T(1,128)}', space=vmem, size = 0x12000, scoped, tag = 'internal scratch']
  %s0 = inlined_call_operand.vmem [shape: f32[4,32], index: 0, kind: input, shape index: {}]
  %s1 = inlined_call_operand.vmem [shape: f32[4,16], index: 1, kind: input, shape index: {}]
  %s2 = inlined_call_operand.hbm [shape: bf16[32,3072], index: 2, kind: input, shape index: {}]
  %s3 = inlined_call_operand.hbm [shape: bf16[16,3072], index: 3, kind: input, shape index: {}]
  %s4 = inlined_call_operand.vmem [shape: f32[1,3072], index: 4, kind: output, shape index: {}]
  %s5 = sld [smem:[#allocation0]]
  $region34: #{_device_forward.2} parent=0
    _
  %s7 = ssub.s32 1, %s5
  %s8 = scalar_select 0, %s7, %s5
  $region1: #{_device_forward.2} parent=0
    #allocation2 [shape = 'u8[196608]{0}', space=vmem, size = 0x30000, scoped, tag = 'input window, operand 2, single buffered']
    #allocation3 [shape = 's32[1]{0}', space=sflag, size = 0x4, scoped, tag = 'scoped memory for _device_forward.2']
    #allocation4 [shape = 'u8[98304]{0}', space=vmem, size = 0x18000, scoped, tag = 'input window, operand 3, single buffered']
    #allocation5 [shape = 's32[1]{0}', space=sflag, size = 0x4, scoped, tag = 'scoped memory for _device_forward.2']
    %9 = vsyncpa [#allocation3], 0
    %10 = vsyncpa [#allocation5], 0
    // Predicated region
    $region2: #{_device_forward.2} parent=1 // pred_check
      _
    $region3: #{_device_forward.2} parent=1 // pred_check_branch
      %12 = sbr.rel (0) target = $region5
    $region4: #{_device_forward.2} parent=1 // pred_region
      _
    $region5: #{_device_forward.2} parent=1 // pred_fallthru
      _
    // Predicated region
    $region6: #{_device_forward.2} parent=1 // pred_check
      _
    $region7: #{_device_forward.2} parent=1 // pred_check_branch
      %14 = sbr.rel (0) target = $region9
    $region8: #{_device_forward.2} parent=1 // pred_region
      _
    $region9: #{_device_forward.2} parent=1 // pred_fallthru
      _
    // Predicated region
    $region10: #{_device_forward.2} parent=1 // pred_check
      _
    $region11: #{_device_forward.2} parent=1 // pred_check_branch
      %16 = sbr.rel (0) target = $region13
    $region12: #{_device_forward.2} parent=1 // pred_region
      %s18 = ssub.s32 6144, 6144
      %19 = vsyncadd [#allocation3], %s18
      %s20 = sshll.u32 [#allocation2], 4
      %s21 = int_to_ptr.vmem [resolvable:$true] %s20
      %26 = dma.hbm_to_vmem [thread:$0]  %s2, 6144, %s21, [#allocation3], 1536, 1536, 96
    $region13: #{_device_forward.2} parent=1 // pred_fallthru
      _
    // Predicated region
    $region14: #{_device_forward.2} parent=1 // pred_check
      _
    $region15: #{_device_forward.2} parent=1 // pred_check_branch
      %28 = sbr.rel (0) target = $region17
    $region16: #{_device_forward.2} parent=1 // pred_region
      %s30 = ssub.s32 3072, 3072
      %31 = vsyncadd [#allocation5], %s30
      %s32 = sshll.u32 [#allocation4], 4
      %s33 = int_to_ptr.vmem [resolvable:$true] %s32
      %38 = dma.hbm_to_vmem [thread:$0]  %s3, 3072, %s33, [#allocation5], 1536, 1536, 96
    $region17: #{_device_forward.2} parent=1 // pred_fallthru
      _
    // Predicated region
    $region18: #{_device_forward.2} parent=1 // pred_check
      _
    $region19: #{_device_forward.2} parent=1 // pred_check_branch
      %40 = sbr.rel (0) target = $region21
    $region20: #{_device_forward.2} parent=1 // pred_region
      %41 = dma.done [#allocation3], 6144
    $region21: #{_device_forward.2} parent=1 // pred_fallthru
      _
    // Predicated region
    $region22: #{_device_forward.2} parent=1 // pred_check
      _
    $region23: #{_device_forward.2} parent=1 // pred_check_branch
      %43 = sbr.rel (0) target = $region25
    $region24: #{_device_forward.2} parent=1 // pred_region
      %44 = dma.done [#allocation5], 3072
    $region25: #{_device_forward.2} parent=1 // pred_fallthru
      _
    %v46 = vld [vmem:[%s0] sm:$0xf]
    %vm47 = vcmask 257024
    %v48 = vsel %vm47, %v46, 0.0
    %v49 = vrot.slane %v48, 4
    %v50 = vadd.f32 %v48, %v49
    %v51 = vrot.slane %v50, 2
    %v52 = vadd.f32 %v50, %v51
    %v53 = vrot.slane %v52, 1
    %v54 = vadd.f32 %v52, %v53
    %v55 = vrcp.pop 4.0
    %v56 = vmul.f32 %v54, %v55
    %v57 = vld [vmem:[%s1] sm:$0xf]
    %v58 = vsub.f32 0.0, %v57
    %v59 = vmul.f32 %v58, 1.442695
    %v60 = vpow.pop %v59
    %v61 = vadd.f32 %v60, 1.0
    %v62 = vrcp.pop %v61
    %v63 = vmul.f32 1.0, %v62
    %vm64 = vcmask 125952
    %v65 = vsel %vm64, %v63, 0.0
    %v66 = vrot.slane %v65, 4
    %v67 = vadd.f32 %v65, %v66
    %v68 = vrot.slane %v67, 2
    %v69 = vadd.f32 %v67, %v68
    %v70 = vrot.slane %v69, 1
    %v71 = vadd.f32 %v69, %v70
    %v72 = vmul.f32 %v71, %v55
    %v73 = vpack.c.bf16 %v56, %v56
    %v74 = vld [vmem:[#allocation2] sm:$0xff]
    %v75 = vld [vmem:[#allocation2 + $0x8] sm:$0xff]
    %v76 = vld [vmem:[#allocation2 + $0x10] sm:$0xff]
    %v77 = vld [vmem:[#allocation2 + $0x18] sm:$0xff]
    %v78 = vld [vmem:[#allocation2 + $0x20] sm:$0xff]
    %v79 = vld [vmem:[#allocation2 + $0x28] sm:$0xff]
    %v80 = vld [vmem:[#allocation2 + $0x30] sm:$0xff]
    %v81 = vld [vmem:[#allocation2 + $0x38] sm:$0xff]
    %v82 = vld [vmem:[#allocation2 + $0x40] sm:$0xff]
    %v83 = vld [vmem:[#allocation2 + $0x48] sm:$0xff]
    %v84 = vld [vmem:[#allocation2 + $0x50] sm:$0xff]
    %v85 = vld [vmem:[#allocation2 + $0x58] sm:$0xff]
    %v86 = vld [vmem:[#allocation2 + $0x60] sm:$0xff]
    %v87 = vld [vmem:[#allocation2 + $0x68] sm:$0xff]
    %v88 = vld [vmem:[#allocation2 + $0x70] sm:$0xff]
    %v89 = vld [vmem:[#allocation2 + $0x78] sm:$0xff]
    %v90 = vld [vmem:[#allocation2 + $0x80] sm:$0xff]
    %v91 = vld [vmem:[#allocation2 + $0x88] sm:$0xff]
    %v92 = vld [vmem:[#allocation2 + $0x90] sm:$0xff]
    %v93 = vld [vmem:[#allocation2 + $0x98] sm:$0xff]
    %v94 = vld [vmem:[#allocation2 + $0xa0] sm:$0xff]
    %v95 = vld [vmem:[#allocation2 + $0xa8] sm:$0xff]
    %v96 = vld [vmem:[#allocation2 + $0xb0] sm:$0xff]
    %v97 = vld [vmem:[#allocation2 + $0xb8] sm:$0xff]
    %v98 = vld [vmem:[#allocation2 + $0xc0] sm:$0xff]
    %v99 = vld [vmem:[#allocation2 + $0xc8] sm:$0xff]
    %v100 = vld [vmem:[#allocation2 + $0xd0] sm:$0xff]
    %v101 = vld [vmem:[#allocation2 + $0xd8] sm:$0xff]
    %v102 = vld [vmem:[#allocation2 + $0xe0] sm:$0xff]
    %v103 = vld [vmem:[#allocation2 + $0xe8] sm:$0xff]
    %v104 = vld [vmem:[#allocation2 + $0xf0] sm:$0xff]
    %v105 = vld [vmem:[#allocation2 + $0xf8] sm:$0xff]
    %v106 = vld [vmem:[#allocation2 + $0x100] sm:$0xff]
    %v107 = vld [vmem:[#allocation2 + $0x108] sm:$0xff]
    %v108 = vld [vmem:[#allocation2 + $0x110] sm:$0xff]
    %v109 = vld [vmem:[#allocation2 + $0x118] sm:$0xff]
    %v110 = vld [vmem:[#allocation2 + $0x120] sm:$0xff]
    %v111 = vld [vmem:[#allocation2 + $0x128] sm:$0xff]
    %v112 = vld [vmem:[#allocation2 + $0x130] sm:$0xff]
    %v113 = vld [vmem:[#allocation2 + $0x138] sm:$0xff]
    %v114 = vld [vmem:[#allocation2 + $0x140] sm:$0xff]
    %v115 = vld [vmem:[#allocation2 + $0x148] sm:$0xff]
    %v116 = vld [vmem:[#allocation2 + $0x150] sm:$0xff]
    %v117 = vld [vmem:[#allocation2 + $0x158] sm:$0xff]
    %v118 = vld [vmem:[#allocation2 + $0x160] sm:$0xff]
    %v119 = vld [vmem:[#allocation2 + $0x168] sm:$0xff]
    %v120 = vld [vmem:[#allocation2 + $0x170] sm:$0xff]
    %v121 = vld [vmem:[#allocation2 + $0x178] sm:$0xff]
    %v122 = vpack.c.bf16 %v72, %v72
    %v123 = vld [vmem:[#allocation4] sm:$0xff]
    %v124 = vld [vmem:[#allocation4 + $0x8] sm:$0xff]
    %v125 = vld [vmem:[#allocation4 + $0x10] sm:$0xff]
    %v126 = vld [vmem:[#allocation4 + $0x18] sm:$0xff]
    %v127 = vld [vmem:[#allocation4 + $0x20] sm:$0xff]
    %v128 = vld [vmem:[#allocation4 + $0x28] sm:$0xff]
    %v129 = vld [vmem:[#allocation4 + $0x30] sm:$0xff]
    %v130 = vld [vmem:[#allocation4 + $0x38] sm:$0xff]
    %v131 = vld [vmem:[#allocation4 + $0x40] sm:$0xff]
    %v132 = vld [vmem:[#allocation4 + $0x48] sm:$0xff]
    %v133 = vld [vmem:[#allocation4 + $0x50] sm:$0xff]
    %v134 = vld [vmem:[#allocation4 + $0x58] sm:$0xff]
    %v135 = vld [vmem:[#allocation4 + $0x60] sm:$0xff]
    %v136 = vld [vmem:[#allocation4 + $0x68] sm:$0xff]
    %v137 = vld [vmem:[#allocation4 + $0x70] sm:$0xff]
    %v138 = vld [vmem:[#allocation4 + $0x78] sm:$0xff]
    %v139 = vld [vmem:[#allocation4 + $0x80] sm:$0xff]
    %v140 = vld [vmem:[#allocation4 + $0x88] sm:$0xff]
    %v141 = vld [vmem:[#allocation4 + $0x90] sm:$0xff]
    %v142 = vld [vmem:[#allocation4 + $0x98] sm:$0xff]
    %v143 = vld [vmem:[#allocation4 + $0xa0] sm:$0xff]
    %v144 = vld [vmem:[#allocation4 + $0xa8] sm:$0xff]
    %v145 = vld [vmem:[#allocation4 + $0xb0] sm:$0xff]
    %v146 = vld [vmem:[#allocation4 + $0xb8] sm:$0xff]
    %v171 = vunpack.c.l.b16 %v123
    %v172 = vunpack.c.h.b16 %v123
    %v173 = vunpack.c.l.b16 %v124
    %v174 = vunpack.c.h.b16 %v124
    %v175 = vunpack.c.l.b16 %v125
    %v176 = vunpack.c.h.b16 %v125
    %v177 = vunpack.c.l.b16 %v126
    %v178 = vunpack.c.h.b16 %v126
    %v179 = vunpack.c.l.b16 %v127
    %v180 = vunpack.c.h.b16 %v127
    %v181 = vunpack.c.l.b16 %v128
    %v182 = vunpack.c.h.b16 %v128
    %v183 = vunpack.c.l.b16 %v129
    %v184 = vunpack.c.h.b16 %v129
    %v185 = vunpack.c.l.b16 %v130
    %v186 = vunpack.c.h.b16 %v130
    %v187 = vunpack.c.l.b16 %v131
    %v188 = vunpack.c.h.b16 %v131
    %v189 = vunpack.c.l.b16 %v132
    %v190 = vunpack.c.h.b16 %v132
    %v191 = vunpack.c.l.b16 %v133
    %v192 = vunpack.c.h.b16 %v133
    %v193 = vunpack.c.l.b16 %v134
    %v194 = vunpack.c.h.b16 %v134
    %v195 = vunpack.c.l.b16 %v135
    %v196 = vunpack.c.h.b16 %v135
    %v197 = vunpack.c.l.b16 %v136
    %v198 = vunpack.c.h.b16 %v136
    %v199 = vunpack.c.l.b16 %v137
    %v200 = vunpack.c.h.b16 %v137
    %v201 = vunpack.c.l.b16 %v138
    %v202 = vunpack.c.h.b16 %v138
    %v203 = vunpack.c.l.b16 %v139
    %v204 = vunpack.c.h.b16 %v139
    %v205 = vunpack.c.l.b16 %v140
    %v206 = vunpack.c.h.b16 %v140
    %v207 = vunpack.c.l.b16 %v141
    %v208 = vunpack.c.h.b16 %v141
    %v209 = vunpack.c.l.b16 %v142
    %v210 = vunpack.c.h.b16 %v142
    %v211 = vunpack.c.l.b16 %v143
    %v212 = vunpack.c.h.b16 %v143
    %v213 = vunpack.c.l.b16 %v144
    %v214 = vunpack.c.h.b16 %v144
    %v215 = vunpack.c.l.b16 %v145
    %v216 = vunpack.c.h.b16 %v145
    %v217 = vunpack.c.l.b16 %v146
    %v218 = vunpack.c.h.b16 %v146
    %v219 = vpack.c.b16 %v195, %v171
    %v220 = vpack.c.b16 %v196, %v172
    %v221 = vpack.c.b16 %v197, %v173
    %v222 = vpack.c.b16 %v198, %v174
    %v223 = vpack.c.b16 %v199, %v175
    %v224 = vpack.c.b16 %v200, %v176
    %v225 = vpack.c.b16 %v201, %v177
    %v226 = vpack.c.b16 %v202, %v178
    %v227 = vpack.c.b16 %v203, %v179
    %v228 = vpack.c.b16 %v204, %v180
    %v229 = vpack.c.b16 %v205, %v181
    %v230 = vpack.c.b16 %v206, %v182
    %v231 = vpack.c.b16 %v207, %v183
    %v232 = vpack.c.b16 %v208, %v184
    %v233 = vpack.c.b16 %v209, %v185
    %v234 = vpack.c.b16 %v210, %v186
    %v235 = vpack.c.b16 %v211, %v187
    %v236 = vpack.c.b16 %v212, %v188
    %v237 = vpack.c.b16 %v213, %v189
    %v238 = vpack.c.b16 %v214, %v190
    %v239 = vpack.c.b16 %v215, %v191
    %v240 = vpack.c.b16 %v216, %v192
    %v241 = vpack.c.b16 %v217, %v193
    %v242 = vpack.c.b16 %v218, %v194
    %vm267 = vcmask 130048
    %v269 = vsel %vm267, %v122, 0
    %271 = vmatprep.subr.bf16.mxu0 %v220
    %272 = vmatpush1.bf16.msra.mxu0 %v219
    %273 = vmatprep.subr.bf16.mxu0 0
    %274 = vmatpush1.bf16.msra.mxu0 0
    %275 = vmatprep.subr.bf16.mxu0 0
    %276 = vmatpush1.bf16.msra.mxu0 0
    %277 = vmatprep.subr.bf16.mxu0 0
    %278 = vmatpush1.bf16.msra.mxu0 0
    %279 = vmatprep.subr.bf16.mxu0 0
    %280 = vmatpush1.bf16.msra.mxu0 0
    %281 = vmatprep.subr.bf16.mxu0 0
    %282 = vmatpush1.bf16.msra.mxu0 0
    %283 = vmatprep.subr.bf16.mxu0 0
    %284 = vmatpush1.bf16.msra.mxu0 0
    %285 = vmatprep.subr.bf16.mxu0 0
    %286 = vmatpush1.bf16.msra.mxu0 0
    %287 = vmatprep.subr.bf16.mxu0 0
    %288 = vmatpush1.bf16.msra.mxu0 0
    %289 = vmatprep.subr.bf16.mxu0 0
    %290 = vmatpush1.bf16.msra.mxu0 0
    %291 = vmatprep.subr.bf16.mxu0 0
    %292 = vmatpush1.bf16.msra.mxu0 0
    %293 = vmatprep.subr.bf16.mxu0 0
    %294 = vmatpush1.bf16.msra.mxu0 0
    %295 = vmatprep.subr.bf16.mxu0 0
    %296 = vmatpush1.bf16.msra.mxu0 0
    %297 = vmatprep.subr.bf16.mxu0 0
    %298 = vmatpush1.bf16.msra.mxu0 0
    %299 = vmatprep.subr.bf16.mxu0 0
    %300 = vmatpush1.bf16.msra.mxu0 0
    %301 = vmatprep.subr.bf16.mxu0 0
    %302 = vmatpush1.bf16.msra.mxu0 0
    %303 = vmatprep.mubr.bf16.mxu0 0
    %304 = vmatmul.mubr.bf16.gmra.mrb[0].mxu0 %v269
    %v305 = vpop.f32.mrb[0].mxu0
    %v306 = vadd.f32 0.0, %v305
    %v307 = vpop.f32.mrb[0].mxu0
    %v308 = vadd.f32 0.0, %v307
    %v309 = vpop.f32.mrb[0].mxu0
    %v310 = vpop.f32.mrb[0].mxu0
    %311 = vdwg.mxu0
    %312 = vmatprep.subr.bf16.mxu0 %v222
    %313 = vmatpush1.bf16.msra.mxu0 %v221
    %314 = vmatprep.subr.bf16.mxu0 0
    %315 = vmatpush1.bf16.msra.mxu0 0
    %316 = vmatprep.subr.bf16.mxu0 0
    %317 = vmatpush1.bf16.msra.mxu0 0
    %318 = vmatprep.subr.bf16.mxu0 0
    %319 = vmatpush1.bf16.msra.mxu0 0
    %320 = vmatprep.subr.bf16.mxu0 0
    %321 = vmatpush1.bf16.msra.mxu0 0
    %322 = vmatprep.subr.bf16.mxu0 0
    %323 = vmatpush1.bf16.msra.mxu0 0
    %324 = vmatprep.subr.bf16.mxu0 0
    %325 = vmatpush1.bf16.msra.mxu0 0
    %326 = vmatprep.subr.bf16.mxu0 0
    %327 = vmatpush1.bf16.msra.mxu0 0
    %328 = vmatprep.subr.bf16.mxu0 0
    %329 = vmatpush1.bf16.msra.mxu0 0
    %330 = vmatprep.subr.bf16.mxu0 0
    %331 = vmatpush1.bf16.msra.mxu0 0
    %332 = vmatprep.subr.bf16.mxu0 0
    %333 = vmatpush1.bf16.msra.mxu0 0
    %334 = vmatprep.subr.bf16.mxu0 0
    %335 = vmatpush1.bf16.msra.mxu0 0
    %336 = vmatprep.subr.bf16.mxu0 0
    %337 = vmatpush1.bf16.msra.mxu0 0
    %338 = vmatprep.subr.bf16.mxu0 0
    %339 = vmatpush1.bf16.msra.mxu0 0
    %340 = vmatprep.subr.bf16.mxu0 0
    %341 = vmatpush1.bf16.msra.mxu0 0
    %342 = vmatprep.subr.bf16.mxu0 0
    %343 = vmatpush1.bf16.msra.mxu0 0
    %344 = vmatprep.mubr.bf16.mxu0 0
    %345 = vmatmul.mubr.bf16.gmra.mrb[0].mxu0 %v269
    %v346 = vpop.f32.mrb[0].mxu0
    %v347 = vadd.f32 0.0, %v346
    %v348 = vpop.f32.mrb[0].mxu0
    %v349 = vadd.f32 0.0, %v348
    %v350 = vpop.f32.mrb[0].mxu0
    %v351 = vpop.f32.mrb[0].mxu0
    %352 = vdwg.mxu0
    %353 = vmatprep.subr.bf16.mxu0 %v224
    %354 = vmatpush1.bf16.msra.mxu0 %v223
    %355 = vmatprep.subr.bf16.mxu0 0
    %356 = vmatpush1.bf16.msra.mxu0 0
    %357 = vmatprep.subr.bf16.mxu0 0
    %358 = vmatpush1.bf16.msra.mxu0 0
    %359 = vmatprep.subr.bf16.mxu0 0
    %360 = vmatpush1.bf16.msra.mxu0 0
    %361 = vmatprep.subr.bf16.mxu0 0
    %362 = vmatpush1.bf16.msra.mxu0 0
    %363 = vmatprep.subr.bf16.mxu0 0
    %364 = vmatpush1.bf16.msra.mxu0 0
    %365 = vmatprep.subr.bf16.mxu0 0
    %366 = vmatpush1.bf16.msra.mxu0 0
    %367 = vmatprep.subr.bf16.mxu0 0
    %368 = vmatpush1.bf16.msra.mxu0 0
    %369 = vmatprep.subr.bf16.mxu0 0
    %370 = vmatpush1.bf16.msra.mxu0 0
    %371 = vmatprep.subr.bf16.mxu0 0
    %372 = vmatpush1.bf16.msra.mxu0 0
    %373 = vmatprep.subr.bf16.mxu0 0
    %374 = vmatpush1.bf16.msra.mxu0 0
    %375 = vmatprep.subr.bf16.mxu0 0
    %376 = vmatpush1.bf16.msra.mxu0 0
    %377 = vmatprep.subr.bf16.mxu0 0
    %378 = vmatpush1.bf16.msra.mxu0 0
    %379 = vmatprep.subr.bf16.mxu0 0
    %380 = vmatpush1.bf16.msra.mxu0 0
    %381 = vmatprep.subr.bf16.mxu0 0
    %382 = vmatpush1.bf16.msra.mxu0 0
    %383 = vmatprep.subr.bf16.mxu0 0
    %384 = vmatpush1.bf16.msra.mxu0 0
    %385 = vmatprep.mubr.bf16.mxu0 0
    %386 = vmatmul.mubr.bf16.gmra.mrb[0].mxu0 %v269
    %v387 = vpop.f32.mrb[0].mxu0
    %v388 = vadd.f32 0.0, %v387
    %v389 = vpop.f32.mrb[0].mxu0
    %v390 = vadd.f32 0.0, %v389
    %v391 = vpop.f32.mrb[0].mxu0
    %v392 = vpop.f32.mrb[0].mxu0
    %393 = vdwg.mxu0
    %394 = vmatprep.subr.bf16.mxu0 %v226
    %395 = vmatpush1.bf16.msra.mxu0 %v225
    %396 = vmatprep.subr.bf16.mxu0 0
    %397 = vmatpush1.bf16.msra.mxu0 0
    %398 = vmatprep.subr.bf16.mxu0 0
    %399 = vmatpush1.bf16.msra.mxu0 0
    %400 = vmatprep.subr.bf16.mxu0 0
    %401 = vmatpush1.bf16.msra.mxu0 0
    %402 = vmatprep.subr.bf16.mxu0 0
    %403 = vmatpush1.bf16.msra.mxu0 0
    %404 = vmatprep.subr.bf16.mxu0 0
    %405 = vmatpush1.bf16.msra.mxu0 0
    %406 = vmatprep.subr.bf16.mxu0 0
    %407 = vmatpush1.bf16.msra.mxu0 0
    %408 = vmatprep.subr.bf16.mxu0 0
    %409 = vmatpush1.bf16.msra.mxu0 0
    %410 = vmatprep.subr.bf16.mxu0 0
    %411 = vmatpush1.bf16.msra.mxu0 0
    %412 = vmatprep.subr.bf16.mxu0 0
    %413 = vmatpush1.bf16.msra.mxu0 0
    %414 = vmatprep.subr.bf16.mxu0 0
    %415 = vmatpush1.bf16.msra.mxu0 0
    %416 = vmatprep.subr.bf16.mxu0 0
    %417 = vmatpush1.bf16.msra.mxu0 0
    %418 = vmatprep.subr.bf16.mxu0 0
    %419 = vmatpush1.bf16.msra.mxu0 0
    %420 = vmatprep.subr.bf16.mxu0 0
    %421 = vmatpush1.bf16.msra.mxu0 0
    %422 = vmatprep.subr.bf16.mxu0 0
    %423 = vmatpush1.bf16.msra.mxu0 0
    %424 = vmatprep.subr.bf16.mxu0 0
    %425 = vmatpush1.bf16.msra.mxu0 0
    %426 = vmatprep.mubr.bf16.mxu0 0
    %427 = vmatmul.mubr.bf16.gmra.mrb[0].mxu0 %v269
    %v428 = vpop.f32.mrb[0].mxu0
    %v429 = vadd.f32 0.0, %v428
    %v430 = vpop.f32.mrb[0].mxu0
    %v431 = vadd.f32 0.0, %v430
    %v432 = vpop.f32.mrb[0].mxu0
    %v433 = vpop.f32.mrb[0].mxu0
    %434 = vdwg.mxu0
    %435 = vmatprep.subr.bf16.mxu0 %v228
    %436 = vmatpush1.bf16.msra.mxu0 %v227
    %437 = vmatprep.subr.bf16.mxu0 0
    %438 = vmatpush1.bf16.msra.mxu0 0
    %439 = vmatprep.subr.bf16.mxu0 0
    %440 = vmatpush1.bf16.msra.mxu0 0
    %441 = vmatprep.subr.bf16.mxu0 0
    %442 = vmatpush1.bf16.msra.mxu0 0
    %443 = vmatprep.subr.bf16.mxu0 0
    %444 = vmatpush1.bf16.msra.mxu0 0
    %445 = vmatprep.subr.bf16.mxu0 0
    %446 = vmatpush1.bf16.msra.mxu0 0
    %447 = vmatprep.subr.bf16.mxu0 0
    %448 = vmatpush1.bf16.msra.mxu0 0
    %449 = vmatprep.subr.bf16.mxu0 0
    %450 = vmatpush1.bf16.msra.mxu0 0
    %451 = vmatprep.subr.bf16.mxu0 0
    %452 = vmatpush1.bf16.msra.mxu0 0
    %453 = vmatprep.subr.bf16.mxu0 0
    %454 = vmatpush1.bf16.msra.mxu0 0
    %455 = vmatprep.subr.bf16.mxu0 0
    %456 = vmatpush1.bf16.msra.mxu0 0
    %457 = vmatprep.subr.bf16.mxu0 0
    %458 = vmatpush1.bf16.msra.mxu0 0
    %459 = vmatprep.subr.bf16.mxu0 0
    %460 = vmatpush1.bf16.msra.mxu0 0
    %461 = vmatprep.subr.bf16.mxu0 0
    %462 = vmatpush1.bf16.msra.mxu0 0
    %463 = vmatprep.subr.bf16.mxu0 0
    %464 = vmatpush1.bf16.msra.mxu0 0
    %465 = vmatprep.subr.bf16.mxu0 0
    %466 = vmatpush1.bf16.msra.mxu0 0
    %467 = vmatprep.mubr.bf16.mxu0 0
    %468 = vmatmul.mubr.bf16.gmra.mrb[0].mxu0 %v269
    %v469 = vpop.f32.mrb[0].mxu0
    %v470 = vadd.f32 0.0, %v469
    %v471 = vpop.f32.mrb[0].mxu0
    %v472 = vadd.f32 0.0, %v471
    %v473 = vpop.f32.mrb[0].mxu0
    %v474 = vpop.f32.mrb[0].mxu0
    %475 = vdwg.mxu0
    %476 = vmatprep.subr.bf16.mxu0 %v230
    %477 = vmatpush1.bf16.msra.mxu0 %v229
    %478 = vmatprep.subr.bf16.mxu0 0
    %479 = vmatpush1.bf16.msra.mxu0 0
    %480 = vmatprep.subr.bf16.mxu0 0
    %481 = vmatpush1.bf16.msra.mxu0 0
    %482 = vmatprep.subr.bf16.mxu0 0
    %483 = vmatpush1.bf16.msra.mxu0 0
    %484 = vmatprep.subr.bf16.mxu0 0
    %485 = vmatpush1.bf16.msra.mxu0 0
    %486 = vmatprep.subr.bf16.mxu0 0
    %487 = vmatpush1.bf16.msra.mxu0 0
    %488 = vmatprep.subr.bf16.mxu0 0
    %489 = vmatpush1.bf16.msra.mxu0 0
    %490 = vmatprep.subr.bf16.mxu0 0
    %491 = vmatpush1.bf16.msra.mxu0 0
    %492 = vmatprep.subr.bf16.mxu0 0
    %493 = vmatpush1.bf16.msra.mxu0 0
    %494 = vmatprep.subr.bf16.mxu0 0
    %495 = vmatpush1.bf16.msra.mxu0 0
    %496 = vmatprep.subr.bf16.mxu0 0
    %497 = vmatpush1.bf16.msra.mxu0 0
    %498 = vmatprep.subr.bf16.mxu0 0
    %499 = vmatpush1.bf16.msra.mxu0 0
    %500 = vmatprep.subr.bf16.mxu0 0
    %501 = vmatpush1.bf16.msra.mxu0 0
    %502 = vmatprep.subr.bf16.mxu0 0
    %503 = vmatpush1.bf16.msra.mxu0 0
    %504 = vmatprep.subr.bf16.mxu0 0
    %505 = vmatpush1.bf16.msra.mxu0 0
    %506 = vmatprep.subr.bf16.mxu0 0
    %507 = vmatpush1.bf16.msra.mxu0 0
    %508 = vmatprep.mubr.bf16.mxu0 0
    %509 = vmatmul.mubr.bf16.gmra.mrb[0].mxu0 %v269
    %v510 = vpop.f32.mrb[0].mxu0
    %v511 = vadd.f32 0.0, %v510
    %v512 = vpop.f32.mrb[0].mxu0
    %v513 = vadd.f32 0.0, %v512
    %v514 = vpop.f32.mrb[0].mxu0
    %v515 = vpop.f32.mrb[0].mxu0
    %516 = vdwg.mxu0
    %517 = vmatprep.subr.bf16.mxu0 %v232
    %518 = vmatpush1.bf16.msra.mxu0 %v231
    %519 = vmatprep.subr.bf16.mxu0 0
    %520 = vmatpush1.bf16.msra.mxu0 0
    %521 = vmatprep.subr.bf16.mxu0 0
    %522 = vmatpush1.bf16.msra.mxu0 0
    %523 = vmatprep.subr.bf16.mxu0 0
    %524 = vmatpush1.bf16.msra.mxu0 0
    %525 = vmatprep.subr.bf16.mxu0 0
    %526 = vmatpush1.bf16.msra.mxu0 0
    %527 = vmatprep.subr.bf16.mxu0 0
    %528 = vmatpush1.bf16.msra.mxu0 0
    %529 = vmatprep.subr.bf16.mxu0 0
    %530 = vmatpush1.bf16.msra.mxu0 0
    %531 = vmatprep.subr.bf16.mxu0 0
    %532 = vmatpush1.bf16.msra.mxu0 0
    %533 = vmatprep.subr.bf16.mxu0 0
    %534 = vmatpush1.bf16.msra.mxu0 0
    %535 = vmatprep.subr.bf16.mxu0 0
    %536 = vmatpush1.bf16.msra.mxu0 0
    %537 = vmatprep.subr.bf16.mxu0 0
    %538 = vmatpush1.bf16.msra.mxu0 0
    %539 = vmatprep.subr.bf16.mxu0 0
    %540 = vmatpush1.bf16.msra.mxu0 0
    %541 = vmatprep.subr.bf16.mxu0 0
    %542 = vmatpush1.bf16.msra.mxu0 0
    %543 = vmatprep.subr.bf16.mxu0 0
    %544 = vmatpush1.bf16.msra.mxu0 0
    %545 = vmatprep.subr.bf16.mxu0 0
    %546 = vmatpush1.bf16.msra.mxu0 0
    %547 = vmatprep.subr.bf16.mxu0 0
    %548 = vmatpush1.bf16.msra.mxu0 0
    %549 = vmatprep.mubr.bf16.mxu0 0
    %550 = vmatmul.mubr.bf16.gmra.mrb[0].mxu0 %v269
    %v551 = vpop.f32.mrb[0].mxu0
    %v552 = vadd.f32 0.0, %v551
    %v553 = vpop.f32.mrb[0].mxu0
    %v554 = vadd.f32 0.0, %v553
    %v555 = vpop.f32.mrb[0].mxu0
    %v556 = vpop.f32.mrb[0].mxu0
    %557 = vdwg.mxu0
    %558 = vmatprep.subr.bf16.mxu0 %v234
    %559 = vmatpush1.bf16.msra.mxu0 %v233
    %560 = vmatprep.subr.bf16.mxu0 0
    %561 = vmatpush1.bf16.msra.mxu0 0
    %562 = vmatprep.subr.bf16.mxu0 0
    %563 = vmatpush1.bf16.msra.mxu0 0
    %564 = vmatprep.subr.bf16.mxu0 0
    %565 = vmatpush1.bf16.msra.mxu0 0
    %566 = vmatprep.subr.bf16.mxu0 0
    %567 = vmatpush1.bf16.msra.mxu0 0
    %568 = vmatprep.subr.bf16.mxu0 0
    %569 = vmatpush1.bf16.msra.mxu0 0
    %570 = vmatprep.subr.bf16.mxu0 0
    %571 = vmatpush1.bf16.msra.mxu0 0
    %572 = vmatprep.subr.bf16.mxu0 0
    %573 = vmatpush1.bf16.msra.mxu0 0
    %574 = vmatprep.subr.bf16.mxu0 0
    %575 = vmatpush1.bf16.msra.mxu0 0
    %576 = vmatprep.subr.bf16.mxu0 0
    %577 = vmatpush1.bf16.msra.mxu0 0
    %578 = vmatprep.subr.bf16.mxu0 0
    %579 = vmatpush1.bf16.msra.mxu0 0
    %580 = vmatprep.subr.bf16.mxu0 0
    %581 = vmatpush1.bf16.msra.mxu0 0
    %582 = vmatprep.subr.bf16.mxu0 0
    %583 = vmatpush1.bf16.msra.mxu0 0
    %584 = vmatprep.subr.bf16.mxu0 0
    %585 = vmatpush1.bf16.msra.mxu0 0
    %586 = vmatprep.subr.bf16.mxu0 0
    %587 = vmatpush1.bf16.msra.mxu0 0
    %588 = vmatprep.subr.bf16.mxu0 0
    %589 = vmatpush1.bf16.msra.mxu0 0
    %590 = vmatprep.mubr.bf16.mxu0 0
    %591 = vmatmul.mubr.bf16.gmra.mrb[0].mxu0 %v269
    %v592 = vpop.f32.mrb[0].mxu0
    %v593 = vadd.f32 0.0, %v592
    %v594 = vpop.f32.mrb[0].mxu0
    %v595 = vadd.f32 0.0, %v594
    %v596 = vpop.f32.mrb[0].mxu0
    %v597 = vpop.f32.mrb[0].mxu0
    %598 = vdwg.mxu0
    %599 = vmatprep.subr.bf16.mxu0 %v236
    %600 = vmatpush1.bf16.msra.mxu0 %v235
    %601 = vmatprep.subr.bf16.mxu0 0
    %602 = vmatpush1.bf16.msra.mxu0 0
    %603 = vmatprep.subr.bf16.mxu0 0
    %604 = vmatpush1.bf16.msra.mxu0 0
    %605 = vmatprep.subr.bf16.mxu0 0
    %606 = vmatpush1.bf16.msra.mxu0 0
    %607 = vmatprep.subr.bf16.mxu0 0
    %608 = vmatpush1.bf16.msra.mxu0 0
    %609 = vmatprep.subr.bf16.mxu0 0
    %610 = vmatpush1.bf16.msra.mxu0 0
    %611 = vmatprep.subr.bf16.mxu0 0
    %612 = vmatpush1.bf16.msra.mxu0 0
    %613 = vmatprep.subr.bf16.mxu0 0
    %614 = vmatpush1.bf16.msra.mxu0 0
    %615 = vmatprep.subr.bf16.mxu0 0
    %616 = vmatpush1.bf16.msra.mxu0 0
    %617 = vmatprep.subr.bf16.mxu0 0
    %618 = vmatpush1.bf16.msra.mxu0 0
    %619 = vmatprep.subr.bf16.mxu0 0
    %620 = vmatpush1.bf16.msra.mxu0 0
    %621 = vmatprep.subr.bf16.mxu0 0
    %622 = vmatpush1.bf16.msra.mxu0 0
    %623 = vmatprep.subr.bf16.mxu0 0
    %624 = vmatpush1.bf16.msra.mxu0 0
    %625 = vmatprep.subr.bf16.mxu0 0
    %626 = vmatpush1.bf16.msra.mxu0 0
    %627 = vmatprep.subr.bf16.mxu0 0
    %628 = vmatpush1.bf16.msra.mxu0 0
    %629 = vmatprep.subr.bf16.mxu0 0
    %630 = vmatpush1.bf16.msra.mxu0 0
    %631 = vmatprep.mubr.bf16.mxu0 0
    %632 = vmatmul.mubr.bf16.gmra.mrb[0].mxu0 %v269
    %v633 = vpop.f32.mrb[0].mxu0
    %v634 = vadd.f32 0.0, %v633
    %v635 = vpop.f32.mrb[0].mxu0
    %v636 = vadd.f32 0.0, %v635
    %v637 = vpop.f32.mrb[0].mxu0
    %v638 = vpop.f32.mrb[0].mxu0
    %639 = vdwg.mxu0
    %640 = vmatprep.subr.bf16.mxu0 %v238
    %641 = vmatpush1.bf16.msra.mxu0 %v237
    %642 = vmatprep.subr.bf16.mxu0 0
    %643 = vmatpush1.bf16.msra.mxu0 0
    %644 = vmatprep.subr.bf16.mxu0 0
    %645 = vmatpush1.bf16.msra.mxu0 0
    %646 = vmatprep.subr.bf16.mxu0 0
    %647 = vmatpush1.bf16.msra.mxu0 0
    %648 = vmatprep.subr.bf16.mxu0 0
    %649 = vmatpush1.bf16.msra.mxu0 0
    %650 = vmatprep.subr.bf16.mxu0 0
    %651 = vmatpush1.bf16.msra.mxu0 0
    %652 = vmatprep.subr.bf16.mxu0 0
    %653 = vmatpush1.bf16.msra.mxu0 0
    %654 = vmatprep.subr.bf16.mxu0 0
    %655 = vmatpush1.bf16.msra.mxu0 0
    %656 = vmatprep.subr.bf16.mxu0 0
    %657 = vmatpush1.bf16.msra.mxu0 0
    %658 = vmatprep.subr.bf16.mxu0 0
    %659 = vmatpush1.bf16.msra.mxu0 0
    %660 = vmatprep.subr.bf16.mxu0 0
    %661 = vmatpush1.bf16.msra.mxu0 0
    %662 = vmatprep.subr.bf16.mxu0 0
    %663 = vmatpush1.bf16.msra.mxu0 0
    %664 = vmatprep.subr.bf16.mxu0 0
    %665 = vmatpush1.bf16.msra.mxu0 0
    %666 = vmatprep.subr.bf16.mxu0 0
    %667 = vmatpush1.bf16.msra.mxu0 0
    %668 = vmatprep.subr.bf16.mxu0 0
    %669 = vmatpush1.bf16.msra.mxu0 0
    %670 = vmatprep.subr.bf16.mxu0 0
    %671 = vmatpush1.bf16.msra.mxu0 0
    %672 = vmatprep.mubr.bf16.mxu0 0
    %673 = vmatmul.mubr.bf16.gmra.mrb[0].mxu0 %v269
    %v674 = vpop.f32.mrb[0].mxu0
    %v675 = vadd.f32 0.0, %v674
    %v676 = vpop.f32.mrb[0].mxu0
    %v677 = vadd.f32 0.0, %v676
    %v678 = vpop.f32.mrb[0].mxu0
    %v679 = vpop.f32.mrb[0].mxu0
    %680 = vdwg.mxu0
    %681 = vmatprep.subr.bf16.mxu0 %v240
    %682 = vmatpush1.bf16.msra.mxu0 %v239
    %683 = vmatprep.subr.bf16.mxu0 0
    %684 = vmatpush1.bf16.msra.mxu0 0
    %685 = vmatprep.subr.bf16.mxu0 0
    %686 = vmatpush1.bf16.msra.mxu0 0
    %687 = vmatprep.subr.bf16.mxu0 0
    %688 = vmatpush1.bf16.msra.mxu0 0
    %689 = vmatprep.subr.bf16.mxu0 0
    %690 = vmatpush1.bf16.msra.mxu0 0
    %691 = vmatprep.subr.bf16.mxu0 0
    %692 = vmatpush1.bf16.msra.mxu0 0
    %693 = vmatprep.subr.bf16.mxu0 0
    %694 = vmatpush1.bf16.msra.mxu0 0
    %695 = vmatprep.subr.bf16.mxu0 0
    %696 = vmatpush1.bf16.msra.mxu0 0
    %697 = vmatprep.subr.bf16.mxu0 0
    %698 = vmatpush1.bf16.msra.mxu0 0
    %699 = vmatprep.subr.bf16.mxu0 0
    %700 = vmatpush1.bf16.msra.mxu0 0
    %701 = vmatprep.subr.bf16.mxu0 0
    %702 = vmatpush1.bf16.msra.mxu0 0
    %703 = vmatprep.subr.bf16.mxu0 0
    %704 = vmatpush1.bf16.msra.mxu0 0
    %705 = vmatprep.subr.bf16.mxu0 0
    %706 = vmatpush1.bf16.msra.mxu0 0
    %707 = vmatprep.subr.bf16.mxu0 0
    %708 = vmatpush1.bf16.msra.mxu0 0
    %709 = vmatprep.subr.bf16.mxu0 0
    %710 = vmatpush1.bf16.msra.mxu0 0
    %711 = vmatprep.subr.bf16.mxu0 0
    %712 = vmatpush1.bf16.msra.mxu0 0
    %713 = vmatprep.mubr.bf16.mxu0 0
    %714 = vmatmul.mubr.bf16.gmra.mrb[0].mxu0 %v269
    %v715 = vpop.f32.mrb[0].mxu0
    %v716 = vadd.f32 0.0, %v715
    %v717 = vpop.f32.mrb[0].mxu0
    %v718 = vadd.f32 0.0, %v717
    %v719 = vpop.f32.mrb[0].mxu0
    %v720 = vpop.f32.mrb[0].mxu0
    %721 = vdwg.mxu0
    %722 = vmatprep.subr.bf16.mxu0 %v242
    %723 = vmatpush1.bf16.msra.mxu0 %v241
    %724 = vmatprep.subr.bf16.mxu0 0
    %725 = vmatpush1.bf16.msra.mxu0 0
    %726 = vmatprep.subr.bf16.mxu0 0
    %727 = vmatpush1.bf16.msra.mxu0 0
    %728 = vmatprep.subr.bf16.mxu0 0
    %729 = vmatpush1.bf16.msra.mxu0 0
    %730 = vmatprep.subr.bf16.mxu0 0
    %731 = vmatpush1.bf16.msra.mxu0 0
    %732 = vmatprep.subr.bf16.mxu0 0
    %733 = vmatpush1.bf16.msra.mxu0 0
    %734 = vmatprep.subr.bf16.mxu0 0
    %735 = vmatpush1.bf16.msra.mxu0 0
    %736 = vmatprep.subr.bf16.mxu0 0
    %737 = vmatpush1.bf16.msra.mxu0 0
    %738 = vmatprep.subr.bf16.mxu0 0
    %739 = vmatpush1.bf16.msra.mxu0 0
    %740 = vmatprep.subr.bf16.mxu0 0
    %741 = vmatpush1.bf16.msra.mxu0 0
    %742 = vmatprep.subr.bf16.mxu0 0
    %743 = vmatpush1.bf16.msra.mxu0 0
    %744 = vmatprep.subr.bf16.mxu0 0
    %745 = vmatpush1.bf16.msra.mxu0 0
    %746 = vmatprep.subr.bf16.mxu0 0
    %747 = vmatpush1.bf16.msra.mxu0 0
    %748 = vmatprep.subr.bf16.mxu0 0
    %749 = vmatpush1.bf16.msra.mxu0 0
    %750 = vmatprep.subr.bf16.mxu0 0
    %751 = vmatpush1.bf16.msra.mxu0 0
    %752 = vmatprep.subr.bf16.mxu0 0
    %753 = vmatpush1.bf16.msra.mxu0 0
    %754 = vmatprep.mubr.bf16.mxu0 0
    %755 = vmatmul.mubr.bf16.gmra.mrb[0].mxu0 %v269
    %v756 = vpop.f32.mrb[0].mxu0
    %v757 = vadd.f32 0.0, %v756
    %v758 = vpop.f32.mrb[0].mxu0
    %v759 = vadd.f32 0.0, %v758
    %v760 = vpop.f32.mrb[0].mxu0
    %v761 = vpop.f32.mrb[0].mxu0
    %762 = vdwg.mxu0
    %v811 = vunpack.c.l.b16 %v74
    %v812 = vunpack.c.h.b16 %v74
    %v813 = vunpack.c.l.b16 %v75
    %v814 = vunpack.c.h.b16 %v75
    %v815 = vunpack.c.l.b16 %v76
    %v816 = vunpack.c.h.b16 %v76
    %v817 = vunpack.c.l.b16 %v77
    %v818 = vunpack.c.h.b16 %v77
    %v819 = vunpack.c.l.b16 %v78
    %v820 = vunpack.c.h.b16 %v78
    %v821 = vunpack.c.l.b16 %v79
    %v822 = vunpack.c.h.b16 %v79
    %v823 = vunpack.c.l.b16 %v80
    %v824 = vunpack.c.h.b16 %v80
    %v825 = vunpack.c.l.b16 %v81
    %v826 = vunpack.c.h.b16 %v81
    %v827 = vunpack.c.l.b16 %v82
    %v828 = vunpack.c.h.b16 %v82
    %v829 = vunpack.c.l.b16 %v83
    %v830 = vunpack.c.h.b16 %v83
    %v831 = vunpack.c.l.b16 %v84
    %v832 = vunpack.c.h.b16 %v84
    %v833 = vunpack.c.l.b16 %v85
    %v834 = vunpack.c.h.b16 %v85
    %v835 = vunpack.c.l.b16 %v86
    %v836 = vunpack.c.h.b16 %v86
    %v837 = vunpack.c.l.b16 %v87
    %v838 = vunpack.c.h.b16 %v87
    %v839 = vunpack.c.l.b16 %v88
    %v840 = vunpack.c.h.b16 %v88
    %v841 = vunpack.c.l.b16 %v89
    %v842 = vunpack.c.h.b16 %v89
    %v843 = vunpack.c.l.b16 %v90
    %v844 = vunpack.c.h.b16 %v90
    %v845 = vunpack.c.l.b16 %v91
    %v846 = vunpack.c.h.b16 %v91
    %v847 = vunpack.c.l.b16 %v92
    %v848 = vunpack.c.h.b16 %v92
    %v849 = vunpack.c.l.b16 %v93
    %v850 = vunpack.c.h.b16 %v93
    %v851 = vunpack.c.l.b16 %v94
    %v852 = vunpack.c.h.b16 %v94
    %v853 = vunpack.c.l.b16 %v95
    %v854 = vunpack.c.h.b16 %v95
    %v855 = vunpack.c.l.b16 %v96
    %v856 = vunpack.c.h.b16 %v96
    %v857 = vunpack.c.l.b16 %v97
    %v858 = vunpack.c.h.b16 %v97
    %v859 = vunpack.c.l.b16 %v98
    %v860 = vunpack.c.h.b16 %v98
    %v861 = vunpack.c.l.b16 %v99
    %v862 = vunpack.c.h.b16 %v99
    %v863 = vunpack.c.l.b16 %v100
    %v864 = vunpack.c.h.b16 %v100
    %v865 = vunpack.c.l.b16 %v101
    %v866 = vunpack.c.h.b16 %v101
    %v867 = vunpack.c.l.b16 %v102
    %v868 = vunpack.c.h.b16 %v102
    %v869 = vunpack.c.l.b16 %v103
    %v870 = vunpack.c.h.b16 %v103
    %v871 = vunpack.c.l.b16 %v104
    %v872 = vunpack.c.h.b16 %v104
    %v873 = vunpack.c.l.b16 %v105
    %v874 = vunpack.c.h.b16 %v105
    %v875 = vunpack.c.l.b16 %v106
    %v876 = vunpack.c.h.b16 %v106
    %v877 = vunpack.c.l.b16 %v107
    %v878 = vunpack.c.h.b16 %v107
    %v879 = vunpack.c.l.b16 %v108
    %v880 = vunpack.c.h.b16 %v108
    %v881 = vunpack.c.l.b16 %v109
    %v882 = vunpack.c.h.b16 %v109
    %v883 = vunpack.c.l.b16 %v110
    %v884 = vunpack.c.h.b16 %v110
    %v885 = vunpack.c.l.b16 %v111
    %v886 = vunpack.c.h.b16 %v111
    %v887 = vunpack.c.l.b16 %v112
    %v888 = vunpack.c.h.b16 %v112
    %v889 = vunpack.c.l.b16 %v113
    %v890 = vunpack.c.h.b16 %v113
    %v891 = vunpack.c.l.b16 %v114
    %v892 = vunpack.c.h.b16 %v114
    %v893 = vunpack.c.l.b16 %v115
    %v894 = vunpack.c.h.b16 %v115
    %v895 = vunpack.c.l.b16 %v116
    %v896 = vunpack.c.h.b16 %v116
    %v897 = vunpack.c.l.b16 %v117
    %v898 = vunpack.c.h.b16 %v117
    %v899 = vunpack.c.l.b16 %v118
    %v900 = vunpack.c.h.b16 %v118
    %v901 = vunpack.c.l.b16 %v119
    %v902 = vunpack.c.h.b16 %v119
    %v903 = vunpack.c.l.b16 %v120
    %v904 = vunpack.c.h.b16 %v120
    %v905 = vunpack.c.l.b16 %v121
    %v906 = vunpack.c.h.b16 %v121
    %v907 = vpack.c.b16 %v835, %v811
    %v908 = vpack.c.b16 %v836, %v812
    %v909 = vpack.c.b16 %v837, %v813
    %v910 = vpack.c.b16 %v838, %v814
    %v911 = vpack.c.b16 %v839, %v815
    %v912 = vpack.c.b16 %v840, %v816
    %v913 = vpack.c.b16 %v841, %v817
    %v914 = vpack.c.b16 %v842, %v818
    %v915 = vpack.c.b16 %v843, %v819
    %v916 = vpack.c.b16 %v844, %v820
    %v917 = vpack.c.b16 %v845, %v821
    %v918 = vpack.c.b16 %v846, %v822
    %v919 = vpack.c.b16 %v847, %v823
    %v920 = vpack.c.b16 %v848, %v824
    %v921 = vpack.c.b16 %v849, %v825
    %v922 = vpack.c.b16 %v850, %v826
    %v923 = vpack.c.b16 %v851, %v827
    %v924 = vpack.c.b16 %v852, %v828
    %v925 = vpack.c.b16 %v853, %v829
    %v926 = vpack.c.b16 %v854, %v830
    %v927 = vpack.c.b16 %v855, %v831
    %v928 = vpack.c.b16 %v856, %v832
    %v929 = vpack.c.b16 %v857, %v833
    %v930 = vpack.c.b16 %v858, %v834
    %v931 = vpack.c.b16 %v883, %v859
    %v932 = vpack.c.b16 %v884, %v860
    %v933 = vpack.c.b16 %v885, %v861
    %v934 = vpack.c.b16 %v886, %v862
    %v935 = vpack.c.b16 %v887, %v863
    %v936 = vpack.c.b16 %v888, %v864
    %v937 = vpack.c.b16 %v889, %v865
    %v938 = vpack.c.b16 %v890, %v866
    %v939 = vpack.c.b16 %v891, %v867
    %v940 = vpack.c.b16 %v892, %v868
    %v941 = vpack.c.b16 %v893, %v869
    %v942 = vpack.c.b16 %v894, %v870
    %v943 = vpack.c.b16 %v895, %v871
    %v944 = vpack.c.b16 %v896, %v872
    %v945 = vpack.c.b16 %v897, %v873
    %v946 = vpack.c.b16 %v898, %v874
    %v947 = vpack.c.b16 %v899, %v875
    %v948 = vpack.c.b16 %v900, %v876
    %v949 = vpack.c.b16 %v901, %v877
    %v950 = vpack.c.b16 %v902, %v878
    %v951 = vpack.c.b16 %v903, %v879
    %v952 = vpack.c.b16 %v904, %v880
    %v953 = vpack.c.b16 %v905, %v881
    %v954 = vpack.c.b16 %v906, %v882
    %vm1003 = vcmask 261120
    %v1005 = vsel %vm1003, %v73, 0
    %1007 = vmatprep.subr.bf16.mxu0 %v908
    %1008 = vmatpush1.bf16.msra.mxu0 %v907
    %1009 = vmatprep.subr.bf16.mxu0 %v932
    %1010 = vmatpush1.bf16.msra.mxu0 %v931
    %1011 = vmatprep.subr.bf16.mxu0 0
    %1012 = vmatpush1.bf16.msra.mxu0 0
    %1013 = vmatprep.subr.bf16.mxu0 0
    %1014 = vmatpush1.bf16.msra.mxu0 0
    %1015 = vmatprep.subr.bf16.mxu0 0
    %1016 = vmatpush1.bf16.msra.mxu0 0
    %1017 = vmatprep.subr.bf16.mxu0 0
    %1018 = vmatpush1.bf16.msra.mxu0 0
    %1019 = vmatprep.subr.bf16.mxu0 0
    %1020 = vmatpush1.bf16.msra.mxu0 0
    %1021 = vmatprep.subr.bf16.mxu0 0
    %1022 = vmatpush1.bf16.msra.mxu0 0
    %1023 = vmatprep.subr.bf16.mxu0 0
    %1024 = vmatpush1.bf16.msra.mxu0 0
    %1025 = vmatprep.subr.bf16.mxu0 0
    %1026 = vmatpush1.bf16.msra.mxu0 0
    %1027 = vmatprep.subr.bf16.mxu0 0
    %1028 = vmatpush1.bf16.msra.mxu0 0
    %1029 = vmatprep.subr.bf16.mxu0 0
    %1030 = vmatpush1.bf16.msra.mxu0 0
    %1031 = vmatprep.subr.bf16.mxu0 0
    %1032 = vmatpush1.bf16.msra.mxu0 0
    %1033 = vmatprep.subr.bf16.mxu0 0
    %1034 = vmatpush1.bf16.msra.mxu0 0
    %1035 = vmatprep.subr.bf16.mxu0 0
    %1036 = vmatpush1.bf16.msra.mxu0 0
    %1037 = vmatprep.subr.bf16.mxu0 0
    %1038 = vmatpush1.bf16.msra.mxu0 0
    %1039 = vmatprep.mubr.bf16.mxu0 0
    %1040 = vmatmul.mubr.bf16.gmra.mrb[0].mxu0 %v1005
    %v1041 = vpop.f32.mrb[0].mxu0
    %v1042 = vadd.f32 %v306, %v1041
    %v1043 = vpop.f32.mrb[0].mxu0
    %v1044 = vadd.f32 %v308, %v1043
    %v1045 = vpop.f32.mrb[0].mxu0
    %v1046 = vpop.f32.mrb[0].mxu0
    %1047 = vdwg.mxu0
    %1048 = vmatprep.subr.bf16.mxu0 %v910
    %1049 = vmatpush1.bf16.msra.mxu0 %v909
    %1050 = vmatprep.subr.bf16.mxu0 %v934
    %1051 = vmatpush1.bf16.msra.mxu0 %v933
    %1052 = vmatprep.subr.bf16.mxu0 0
    %1053 = vmatpush1.bf16.msra.mxu0 0
    %1054 = vmatprep.subr.bf16.mxu0 0
    %1055 = vmatpush1.bf16.msra.mxu0 0
    %1056 = vmatprep.subr.bf16.mxu0 0
    %1057 = vmatpush1.bf16.msra.mxu0 0
    %1058 = vmatprep.subr.bf16.mxu0 0
    %1059 = vmatpush1.bf16.msra.mxu0 0
    %1060 = vmatprep.subr.bf16.mxu0 0
    %1061 = vmatpush1.bf16.msra.mxu0 0
    %1062 = vmatprep.subr.bf16.mxu0 0
    %1063 = vmatpush1.bf16.msra.mxu0 0
    %1064 = vmatprep.subr.bf16.mxu0 0
    %1065 = vmatpush1.bf16.msra.mxu0 0
    %1066 = vmatprep.subr.bf16.mxu0 0
    %1067 = vmatpush1.bf16.msra.mxu0 0
    %1068 = vmatprep.subr.bf16.mxu0 0
    %1069 = vmatpush1.bf16.msra.mxu0 0
    %1070 = vmatprep.subr.bf16.mxu0 0
    %1071 = vmatpush1.bf16.msra.mxu0 0
    %1072 = vmatprep.subr.bf16.mxu0 0
    %1073 = vmatpush1.bf16.msra.mxu0 0
    %1074 = vmatprep.subr.bf16.mxu0 0
    %1075 = vmatpush1.bf16.msra.mxu0 0
    %1076 = vmatprep.subr.bf16.mxu0 0
    %1077 = vmatpush1.bf16.msra.mxu0 0
    %1078 = vmatprep.subr.bf16.mxu0 0
    %1079 = vmatpush1.bf16.msra.mxu0 0
    %1080 = vmatprep.mubr.bf16.mxu0 0
    %1081 = vmatmul.mubr.bf16.gmra.mrb[0].mxu0 %v1005
    %v1082 = vpop.f32.mrb[0].mxu0
    %v1083 = vadd.f32 %v347, %v1082
    %v1084 = vpop.f32.mrb[0].mxu0
    %v1085 = vadd.f32 %v349, %v1084
    %v1086 = vpop.f32.mrb[0].mxu0
    %v1087 = vpop.f32.mrb[0].mxu0
    %1088 = vdwg.mxu0
    %1089 = vmatprep.subr.bf16.mxu0 %v912
    %1090 = vmatpush1.bf16.msra.mxu0 %v911
    %1091 = vmatprep.subr.bf16.mxu0 %v936
    %1092 = vmatpush1.bf16.msra.mxu0 %v935
    %1093 = vmatprep.subr.bf16.mxu0 0
    %1094 = vmatpush1.bf16.msra.mxu0 0
    %1095 = vmatprep.subr.bf16.mxu0 0
    %1096 = vmatpush1.bf16.msra.mxu0 0
    %1097 = vmatprep.subr.bf16.mxu0 0
    %1098 = vmatpush1.bf16.msra.mxu0 0
    %1099 = vmatprep.subr.bf16.mxu0 0
    %1100 = vmatpush1.bf16.msra.mxu0 0
    %1101 = vmatprep.subr.bf16.mxu0 0
    %1102 = vmatpush1.bf16.msra.mxu0 0
    %1103 = vmatprep.subr.bf16.mxu0 0
    %1104 = vmatpush1.bf16.msra.mxu0 0
    %1105 = vmatprep.subr.bf16.mxu0 0
    %1106 = vmatpush1.bf16.msra.mxu0 0
    %1107 = vmatprep.subr.bf16.mxu0 0
    %1108 = vmatpush1.bf16.msra.mxu0 0
    %1109 = vmatprep.subr.bf16.mxu0 0
    %1110 = vmatpush1.bf16.msra.mxu0 0
    %1111 = vmatprep.subr.bf16.mxu0 0
    %1112 = vmatpush1.bf16.msra.mxu0 0
    %1113 = vmatprep.subr.bf16.mxu0 0
    %1114 = vmatpush1.bf16.msra.mxu0 0
    %1115 = vmatprep.subr.bf16.mxu0 0
    %1116 = vmatpush1.bf16.msra.mxu0 0
    %1117 = vmatprep.subr.bf16.mxu0 0
    %1118 = vmatpush1.bf16.msra.mxu0 0
    %1119 = vmatprep.subr.bf16.mxu0 0
    %1120 = vmatpush1.bf16.msra.mxu0 0
    %1121 = vmatprep.mubr.bf16.mxu0 0
    %1122 = vmatmul.mubr.bf16.gmra.mrb[0].mxu0 %v1005
    %v1123 = vpop.f32.mrb[0].mxu0
    %v1124 = vadd.f32 %v388, %v1123
    %v1125 = vpop.f32.mrb[0].mxu0
    %v1126 = vadd.f32 %v390, %v1125
    %v1127 = vpop.f32.mrb[0].mxu0
    %v1128 = vpop.f32.mrb[0].mxu0
    %1129 = vdwg.mxu0
    %1130 = vmatprep.subr.bf16.mxu0 %v914
    %1131 = vmatpush1.bf16.msra.mxu0 %v913
    %1132 = vmatprep.subr.bf16.mxu0 %v938
    %1133 = vmatpush1.bf16.msra.mxu0 %v937
    %1134 = vmatprep.subr.bf16.mxu0 0
    %1135 = vmatpush1.bf16.msra.mxu0 0
    %1136 = vmatprep.subr.bf16.mxu0 0
    %1137 = vmatpush1.bf16.msra.mxu0 0
    %1138 = vmatprep.subr.bf16.mxu0 0
    %1139 = vmatpush1.bf16.msra.mxu0 0
    %1140 = vmatprep.subr.bf16.mxu0 0
    %1141 = vmatpush1.bf16.msra.mxu0 0
    %1142 = vmatprep.subr.bf16.mxu0 0
    %1143 = vmatpush1.bf16.msra.mxu0 0
    %1144 = vmatprep.subr.bf16.mxu0 0
    %1145 = vmatpush1.bf16.msra.mxu0 0
    %1146 = vmatprep.subr.bf16.mxu0 0
    %1147 = vmatpush1.bf16.msra.mxu0 0
    %1148 = vmatprep.subr.bf16.mxu0 0
    %1149 = vmatpush1.bf16.msra.mxu0 0
    %1150 = vmatprep.subr.bf16.mxu0 0
    %1151 = vmatpush1.bf16.msra.mxu0 0
    %1152 = vmatprep.subr.bf16.mxu0 0
    %1153 = vmatpush1.bf16.msra.mxu0 0
    %1154 = vmatprep.subr.bf16.mxu0 0
    %1155 = vmatpush1.bf16.msra.mxu0 0
    %1156 = vmatprep.subr.bf16.mxu0 0
    %1157 = vmatpush1.bf16.msra.mxu0 0
    %1158 = vmatprep.subr.bf16.mxu0 0
    %1159 = vmatpush1.bf16.msra.mxu0 0
    %1160 = vmatprep.subr.bf16.mxu0 0
    %1161 = vmatpush1.bf16.msra.mxu0 0
    %1162 = vmatprep.mubr.bf16.mxu0 0
    %1163 = vmatmul.mubr.bf16.gmra.mrb[0].mxu0 %v1005
    %v1164 = vpop.f32.mrb[0].mxu0
    %v1165 = vadd.f32 %v429, %v1164
    %v1166 = vpop.f32.mrb[0].mxu0
    %v1167 = vadd.f32 %v431, %v1166
    %v1168 = vpop.f32.mrb[0].mxu0
    %v1169 = vpop.f32.mrb[0].mxu0
    %1170 = vdwg.mxu0
    %1171 = vmatprep.subr.bf16.mxu0 %v916
    %1172 = vmatpush1.bf16.msra.mxu0 %v915
    %1173 = vmatprep.subr.bf16.mxu0 %v940
    %1174 = vmatpush1.bf16.msra.mxu0 %v939
    %1175 = vmatprep.subr.bf16.mxu0 0
    %1176 = vmatpush1.bf16.msra.mxu0 0
    %1177 = vmatprep.subr.bf16.mxu0 0
    %1178 = vmatpush1.bf16.msra.mxu0 0
    %1179 = vmatprep.subr.bf16.mxu0 0
    %1180 = vmatpush1.bf16.msra.mxu0 0
    %1181 = vmatprep.subr.bf16.mxu0 0
    %1182 = vmatpush1.bf16.msra.mxu0 0
    %1183 = vmatprep.subr.bf16.mxu0 0
    %1184 = vmatpush1.bf16.msra.mxu0 0
    %1185 = vmatprep.subr.bf16.mxu0 0
    %1186 = vmatpush1.bf16.msra.mxu0 0
    %1187 = vmatprep.subr.bf16.mxu0 0
    %1188 = vmatpush1.bf16.msra.mxu0 0
    %1189 = vmatprep.subr.bf16.mxu0 0
    %1190 = vmatpush1.bf16.msra.mxu0 0
    %1191 = vmatprep.subr.bf16.mxu0 0
    %1192 = vmatpush1.bf16.msra.mxu0 0
    %1193 = vmatprep.subr.bf16.mxu0 0
    %1194 = vmatpush1.bf16.msra.mxu0 0
    %1195 = vmatprep.subr.bf16.mxu0 0
    %1196 = vmatpush1.bf16.msra.mxu0 0
    %1197 = vmatprep.subr.bf16.mxu0 0
    %1198 = vmatpush1.bf16.msra.mxu0 0
    %1199 = vmatprep.subr.bf16.mxu0 0
    %1200 = vmatpush1.bf16.msra.mxu0 0
    %1201 = vmatprep.subr.bf16.mxu0 0
    %1202 = vmatpush1.bf16.msra.mxu0 0
    %1203 = vmatprep.mubr.bf16.mxu0 0
    %1204 = vmatmul.mubr.bf16.gmra.mrb[0].mxu0 %v1005
    %v1205 = vpop.f32.mrb[0].mxu0
    %v1206 = vadd.f32 %v470, %v1205
    %v1207 = vpop.f32.mrb[0].mxu0
    %v1208 = vadd.f32 %v472, %v1207
    %v1209 = vpop.f32.mrb[0].mxu0
    %v1210 = vpop.f32.mrb[0].mxu0
    %1211 = vdwg.mxu0
    %1212 = vmatprep.subr.bf16.mxu0 %v918
    %1213 = vmatpush1.bf16.msra.mxu0 %v917
    %1214 = vmatprep.subr.bf16.mxu0 %v942
    %1215 = vmatpush1.bf16.msra.mxu0 %v941
    %1216 = vmatprep.subr.bf16.mxu0 0
    %1217 = vmatpush1.bf16.msra.mxu0 0
    %1218 = vmatprep.subr.bf16.mxu0 0
    %1219 = vmatpush1.bf16.msra.mxu0 0
    %1220 = vmatprep.subr.bf16.mxu0 0
    %1221 = vmatpush1.bf16.msra.mxu0 0
    %1222 = vmatprep.subr.bf16.mxu0 0
    %1223 = vmatpush1.bf16.msra.mxu0 0
    %1224 = vmatprep.subr.bf16.mxu0 0
    %1225 = vmatpush1.bf16.msra.mxu0 0
    %1226 = vmatprep.subr.bf16.mxu0 0
    %1227 = vmatpush1.bf16.msra.mxu0 0
    %1228 = vmatprep.subr.bf16.mxu0 0
    %1229 = vmatpush1.bf16.msra.mxu0 0
    %1230 = vmatprep.subr.bf16.mxu0 0
    %1231 = vmatpush1.bf16.msra.mxu0 0
    %1232 = vmatprep.subr.bf16.mxu0 0
    %1233 = vmatpush1.bf16.msra.mxu0 0
    %1234 = vmatprep.subr.bf16.mxu0 0
    %1235 = vmatpush1.bf16.msra.mxu0 0
    %1236 = vmatprep.subr.bf16.mxu0 0
    %1237 = vmatpush1.bf16.msra.mxu0 0
    %1238 = vmatprep.subr.bf16.mxu0 0
    %1239 = vmatpush1.bf16.msra.mxu0 0
    %1240 = vmatprep.subr.bf16.mxu0 0
    %1241 = vmatpush1.bf16.msra.mxu0 0
    %1242 = vmatprep.subr.bf16.mxu0 0
    %1243 = vmatpush1.bf16.msra.mxu0 0
    %1244 = vmatprep.mubr.bf16.mxu0 0
    %1245 = vmatmul.mubr.bf16.gmra.mrb[0].mxu0 %v1005
    %v1246 = vpop.f32.mrb[0].mxu0
    %v1247 = vadd.f32 %v511, %v1246
    %v1248 = vpop.f32.mrb[0].mxu0
    %v1249 = vadd.f32 %v513, %v1248
    %v1250 = vpop.f32.mrb[0].mxu0
    %v1251 = vpop.f32.mrb[0].mxu0
    %1252 = vdwg.mxu0
    %1253 = vmatprep.subr.bf16.mxu0 %v920
    %1254 = vmatpush1.bf16.msra.mxu0 %v919
    %1255 = vmatprep.subr.bf16.mxu0 %v944
    %1256 = vmatpush1.bf16.msra.mxu0 %v943
    %1257 = vmatprep.subr.bf16.mxu0 0
    %1258 = vmatpush1.bf16.msra.mxu0 0
    %1259 = vmatprep.subr.bf16.mxu0 0
    %1260 = vmatpush1.bf16.msra.mxu0 0
    %1261 = vmatprep.subr.bf16.mxu0 0
    %1262 = vmatpush1.bf16.msra.mxu0 0
    %1263 = vmatprep.subr.bf16.mxu0 0
    %1264 = vmatpush1.bf16.msra.mxu0 0
    %1265 = vmatprep.subr.bf16.mxu0 0
    %1266 = vmatpush1.bf16.msra.mxu0 0
    %1267 = vmatprep.subr.bf16.mxu0 0
    %1268 = vmatpush1.bf16.msra.mxu0 0
    %1269 = vmatprep.subr.bf16.mxu0 0
    %1270 = vmatpush1.bf16.msra.mxu0 0
    %1271 = vmatprep.subr.bf16.mxu0 0
    %1272 = vmatpush1.bf16.msra.mxu0 0
    %1273 = vmatprep.subr.bf16.mxu0 0
    %1274 = vmatpush1.bf16.msra.mxu0 0
    %1275 = vmatprep.subr.bf16.mxu0 0
    %1276 = vmatpush1.bf16.msra.mxu0 0
    %1277 = vmatprep.subr.bf16.mxu0 0
    %1278 = vmatpush1.bf16.msra.mxu0 0
    %1279 = vmatprep.subr.bf16.mxu0 0
    %1280 = vmatpush1.bf16.msra.mxu0 0
    %1281 = vmatprep.subr.bf16.mxu0 0
    %1282 = vmatpush1.bf16.msra.mxu0 0
    %1283 = vmatprep.subr.bf16.mxu0 0
    %1284 = vmatpush1.bf16.msra.mxu0 0
    %1285 = vmatprep.mubr.bf16.mxu0 0
    %1286 = vmatmul.mubr.bf16.gmra.mrb[0].mxu0 %v1005
    %v1287 = vpop.f32.mrb[0].mxu0
    %v1288 = vadd.f32 %v552, %v1287
    %v1289 = vpop.f32.mrb[0].mxu0
    %v1290 = vadd.f32 %v554, %v1289
    %v1291 = vpop.f32.mrb[0].mxu0
    %v1292 = vpop.f32.mrb[0].mxu0
    %1293 = vdwg.mxu0
    %1294 = vmatprep.subr.bf16.mxu0 %v922
    %1295 = vmatpush1.bf16.msra.mxu0 %v921
    %1296 = vmatprep.subr.bf16.mxu0 %v946
    %1297 = vmatpush1.bf16.msra.mxu0 %v945
    %1298 = vmatprep.subr.bf16.mxu0 0
    %1299 = vmatpush1.bf16.msra.mxu0 0
    %1300 = vmatprep.subr.bf16.mxu0 0
    %1301 = vmatpush1.bf16.msra.mxu0 0
    %1302 = vmatprep.subr.bf16.mxu0 0
    %1303 = vmatpush1.bf16.msra.mxu0 0
    %1304 = vmatprep.subr.bf16.mxu0 0
    %1305 = vmatpush1.bf16.msra.mxu0 0
    %1306 = vmatprep.subr.bf16.mxu0 0
    %1307 = vmatpush1.bf16.msra.mxu0 0
    %1308 = vmatprep.subr.bf16.mxu0 0
    %1309 = vmatpush1.bf16.msra.mxu0 0
    %1310 = vmatprep.subr.bf16.mxu0 0
    %1311 = vmatpush1.bf16.msra.mxu0 0
    %1312 = vmatprep.subr.bf16.mxu0 0
    %1313 = vmatpush1.bf16.msra.mxu0 0
    %1314 = vmatprep.subr.bf16.mxu0 0
    %1315 = vmatpush1.bf16.msra.mxu0 0
    %1316 = vmatprep.subr.bf16.mxu0 0
    %1317 = vmatpush1.bf16.msra.mxu0 0
    %1318 = vmatprep.subr.bf16.mxu0 0
    %1319 = vmatpush1.bf16.msra.mxu0 0
    %1320 = vmatprep.subr.bf16.mxu0 0
    %1321 = vmatpush1.bf16.msra.mxu0 0
    %1322 = vmatprep.subr.bf16.mxu0 0
    %1323 = vmatpush1.bf16.msra.mxu0 0
    %1324 = vmatprep.subr.bf16.mxu0 0
    %1325 = vmatpush1.bf16.msra.mxu0 0
    %1326 = vmatprep.mubr.bf16.mxu0 0
    %1327 = vmatmul.mubr.bf16.gmra.mrb[0].mxu0 %v1005
    %v1328 = vpop.f32.mrb[0].mxu0
    %v1329 = vadd.f32 %v593, %v1328
    %v1330 = vpop.f32.mrb[0].mxu0
    %v1331 = vadd.f32 %v595, %v1330
    %v1332 = vpop.f32.mrb[0].mxu0
    %v1333 = vpop.f32.mrb[0].mxu0
    %1334 = vdwg.mxu0
    %1335 = vmatprep.subr.bf16.mxu0 %v924
    %1336 = vmatpush1.bf16.msra.mxu0 %v923
    %1337 = vmatprep.subr.bf16.mxu0 %v948
    %1338 = vmatpush1.bf16.msra.mxu0 %v947
    %1339 = vmatprep.subr.bf16.mxu0 0
    %1340 = vmatpush1.bf16.msra.mxu0 0
    %1341 = vmatprep.subr.bf16.mxu0 0
    %1342 = vmatpush1.bf16.msra.mxu0 0
    %1343 = vmatprep.subr.bf16.mxu0 0
    %1344 = vmatpush1.bf16.msra.mxu0 0
    %1345 = vmatprep.subr.bf16.mxu0 0
    %1346 = vmatpush1.bf16.msra.mxu0 0
    %1347 = vmatprep.subr.bf16.mxu0 0
    %1348 = vmatpush1.bf16.msra.mxu0 0
    %1349 = vmatprep.subr.bf16.mxu0 0
    %1350 = vmatpush1.bf16.msra.mxu0 0
    %1351 = vmatprep.subr.bf16.mxu0 0
    %1352 = vmatpush1.bf16.msra.mxu0 0
    %1353 = vmatprep.subr.bf16.mxu0 0
    %1354 = vmatpush1.bf16.msra.mxu0 0
    %1355 = vmatprep.subr.bf16.mxu0 0
    %1356 = vmatpush1.bf16.msra.mxu0 0
    %1357 = vmatprep.subr.bf16.mxu0 0
    %1358 = vmatpush1.bf16.msra.mxu0 0
    %1359 = vmatprep.subr.bf16.mxu0 0
    %1360 = vmatpush1.bf16.msra.mxu0 0
    %1361 = vmatprep.subr.bf16.mxu0 0
    %1362 = vmatpush1.bf16.msra.mxu0 0
    %1363 = vmatprep.subr.bf16.mxu0 0
    %1364 = vmatpush1.bf16.msra.mxu0 0
    %1365 = vmatprep.subr.bf16.mxu0 0
    %1366 = vmatpush1.bf16.msra.mxu0 0
    %1367 = vmatprep.mubr.bf16.mxu0 0
    %1368 = vmatmul.mubr.bf16.gmra.mrb[0].mxu0 %v1005
    %v1369 = vpop.f32.mrb[0].mxu0
    %v1370 = vadd.f32 %v634, %v1369
    %v1371 = vpop.f32.mrb[0].mxu0
    %v1372 = vadd.f32 %v636, %v1371
    %v1373 = vpop.f32.mrb[0].mxu0
    %v1374 = vpop.f32.mrb[0].mxu0
    %1375 = vdwg.mxu0
    %1376 = vmatprep.subr.bf16.mxu0 %v926
    %1377 = vmatpush1.bf16.msra.mxu0 %v925
    %1378 = vmatprep.subr.bf16.mxu0 %v950
    %1379 = vmatpush1.bf16.msra.mxu0 %v949
    %1380 = vmatprep.subr.bf16.mxu0 0
    %1381 = vmatpush1.bf16.msra.mxu0 0
    %1382 = vmatprep.subr.bf16.mxu0 0
    %1383 = vmatpush1.bf16.msra.mxu0 0
    %1384 = vmatprep.subr.bf16.mxu0 0
    %1385 = vmatpush1.bf16.msra.mxu0 0
    %1386 = vmatprep.subr.bf16.mxu0 0
    %1387 = vmatpush1.bf16.msra.mxu0 0
    %1388 = vmatprep.subr.bf16.mxu0 0
    %1389 = vmatpush1.bf16.msra.mxu0 0
    %1390 = vmatprep.subr.bf16.mxu0 0
    %1391 = vmatpush1.bf16.msra.mxu0 0
    %1392 = vmatprep.subr.bf16.mxu0 0
    %1393 = vmatpush1.bf16.msra.mxu0 0
    %1394 = vmatprep.subr.bf16.mxu0 0
    %1395 = vmatpush1.bf16.msra.mxu0 0
    %1396 = vmatprep.subr.bf16.mxu0 0
    %1397 = vmatpush1.bf16.msra.mxu0 0
    %1398 = vmatprep.subr.bf16.mxu0 0
    %1399 = vmatpush1.bf16.msra.mxu0 0
    %1400 = vmatprep.subr.bf16.mxu0 0
    %1401 = vmatpush1.bf16.msra.mxu0 0
    %1402 = vmatprep.subr.bf16.mxu0 0
    %1403 = vmatpush1.bf16.msra.mxu0 0
    %1404 = vmatprep.subr.bf16.mxu0 0
    %1405 = vmatpush1.bf16.msra.mxu0 0
    %1406 = vmatprep.subr.bf16.mxu0 0
    %1407 = vmatpush1.bf16.msra.mxu0 0
    %1408 = vmatprep.mubr.bf16.mxu0 0
    %1409 = vmatmul.mubr.bf16.gmra.mrb[0].mxu0 %v1005
    %v1410 = vpop.f32.mrb[0].mxu0
    %v1411 = vadd.f32 %v675, %v1410
    %v1412 = vpop.f32.mrb[0].mxu0
    %v1413 = vadd.f32 %v677, %v1412
    %v1414 = vpop.f32.mrb[0].mxu0
    %v1415 = vpop.f32.mrb[0].mxu0
    %1416 = vdwg.mxu0
    %1417 = vmatprep.subr.bf16.mxu0 %v928
    %1418 = vmatpush1.bf16.msra.mxu0 %v927
    %1419 = vmatprep.subr.bf16.mxu0 %v952
    %1420 = vmatpush1.bf16.msra.mxu0 %v951
    %1421 = vmatprep.subr.bf16.mxu0 0
    %1422 = vmatpush1.bf16.msra.mxu0 0
    %1423 = vmatprep.subr.bf16.mxu0 0
    %1424 = vmatpush1.bf16.msra.mxu0 0
    %1425 = vmatprep.subr.bf16.mxu0 0
    %1426 = vmatpush1.bf16.msra.mxu0 0
    %1427 = vmatprep.subr.bf16.mxu0 0
    %1428 = vmatpush1.bf16.msra.mxu0 0
    %1429 = vmatprep.subr.bf16.mxu0 0
    %1430 = vmatpush1.bf16.msra.mxu0 0
    %1431 = vmatprep.subr.bf16.mxu0 0
    %1432 = vmatpush1.bf16.msra.mxu0 0
    %1433 = vmatprep.subr.bf16.mxu0 0
    %1434 = vmatpush1.bf16.msra.mxu0 0
    %1435 = vmatprep.subr.bf16.mxu0 0
    %1436 = vmatpush1.bf16.msra.mxu0 0
    %1437 = vmatprep.subr.bf16.mxu0 0
    %1438 = vmatpush1.bf16.msra.mxu0 0
    %1439 = vmatprep.subr.bf16.mxu0 0
    %1440 = vmatpush1.bf16.msra.mxu0 0
    %1441 = vmatprep.subr.bf16.mxu0 0
    %1442 = vmatpush1.bf16.msra.mxu0 0
    %1443 = vmatprep.subr.bf16.mxu0 0
    %1444 = vmatpush1.bf16.msra.mxu0 0
    %1445 = vmatprep.subr.bf16.mxu0 0
    %1446 = vmatpush1.bf16.msra.mxu0 0
    %1447 = vmatprep.subr.bf16.mxu0 0
    %1448 = vmatpush1.bf16.msra.mxu0 0
    %1449 = vmatprep.mubr.bf16.mxu0 0
    %1450 = vmatmul.mubr.bf16.gmra.mrb[0].mxu0 %v1005
    %v1451 = vpop.f32.mrb[0].mxu0
    %v1452 = vadd.f32 %v716, %v1451
    %v1453 = vpop.f32.mrb[0].mxu0
    %v1454 = vadd.f32 %v718, %v1453
    %v1455 = vpop.f32.mrb[0].mxu0
    %v1456 = vpop.f32.mrb[0].mxu0
    %1457 = vdwg.mxu0
    %1458 = vmatprep.subr.bf16.mxu0 %v930
    %1459 = vmatpush1.bf16.msra.mxu0 %v929
    %1460 = vmatprep.subr.bf16.mxu0 %v954
    %1461 = vmatpush1.bf16.msra.mxu0 %v953
    %1462 = vmatprep.subr.bf16.mxu0 0
    %1463 = vmatpush1.bf16.msra.mxu0 0
    %1464 = vmatprep.subr.bf16.mxu0 0
    %1465 = vmatpush1.bf16.msra.mxu0 0
    %1466 = vmatprep.subr.bf16.mxu0 0
    %1467 = vmatpush1.bf16.msra.mxu0 0
    %1468 = vmatprep.subr.bf16.mxu0 0
    %1469 = vmatpush1.bf16.msra.mxu0 0
    %1470 = vmatprep.subr.bf16.mxu0 0
    %1471 = vmatpush1.bf16.msra.mxu0 0
    %1472 = vmatprep.subr.bf16.mxu0 0
    %1473 = vmatpush1.bf16.msra.mxu0 0
    %1474 = vmatprep.subr.bf16.mxu0 0
    %1475 = vmatpush1.bf16.msra.mxu0 0
    %1476 = vmatprep.subr.bf16.mxu0 0
    %1477 = vmatpush1.bf16.msra.mxu0 0
    %1478 = vmatprep.subr.bf16.mxu0 0
    %1479 = vmatpush1.bf16.msra.mxu0 0
    %1480 = vmatprep.subr.bf16.mxu0 0
    %1481 = vmatpush1.bf16.msra.mxu0 0
    %1482 = vmatprep.subr.bf16.mxu0 0
    %1483 = vmatpush1.bf16.msra.mxu0 0
    %1484 = vmatprep.subr.bf16.mxu0 0
    %1485 = vmatpush1.bf16.msra.mxu0 0
    %1486 = vmatprep.subr.bf16.mxu0 0
    %1487 = vmatpush1.bf16.msra.mxu0 0
    %1488 = vmatprep.subr.bf16.mxu0 0
    %1489 = vmatpush1.bf16.msra.mxu0 0
    %1490 = vmatprep.mubr.bf16.mxu0 0
    %1491 = vmatmul.mubr.bf16.gmra.mrb[0].mxu0 %v1005
    %v1492 = vpop.f32.mrb[0].mxu0
    %v1493 = vadd.f32 %v757, %v1492
    %v1494 = vpop.f32.mrb[0].mxu0
    %v1495 = vadd.f32 %v759, %v1494
    %v1496 = vpop.f32.mrb[0].mxu0
    %v1497 = vpop.f32.mrb[0].mxu0
    %1498 = vdwg.mxu0
    %v1499 = vtanh.pop %v1042
    %v1500 = vtanh.pop %v1044
    %v1501 = vtanh.pop %v1083
    %v1502 = vtanh.pop %v1085
    %v1503 = vtanh.pop %v1124
    %v1504 = vtanh.pop %v1126
    %v1505 = vtanh.pop %v1165
    %v1506 = vtanh.pop %v1167
    %v1507 = vtanh.pop %v1206
    %v1508 = vtanh.pop %v1208
    %v1509 = vtanh.pop %v1247
    %v1510 = vtanh.pop %v1249
    %v1511 = vtanh.pop %v1288
    %v1512 = vtanh.pop %v1290
    %v1513 = vtanh.pop %v1329
    %v1514 = vtanh.pop %v1331
    %v1515 = vtanh.pop %v1370
    %v1516 = vtanh.pop %v1372
    %v1517 = vtanh.pop %v1411
    %v1518 = vtanh.pop %v1413
    %v1519 = vtanh.pop %v1452
    %v1520 = vtanh.pop %v1454
    %v1521 = vtanh.pop %v1493
    %v1522 = vtanh.pop %v1495
    %v1523 = vadd.f32 %v1499, 1.0
    %v1524 = vadd.f32 %v1500, 1.0
    %v1525 = vadd.f32 %v1501, 1.0
    %v1526 = vadd.f32 %v1502, 1.0
    %v1527 = vadd.f32 %v1503, 1.0
    %v1528 = vadd.f32 %v1504, 1.0
    %v1529 = vadd.f32 %v1505, 1.0
    %v1530 = vadd.f32 %v1506, 1.0
    %v1531 = vadd.f32 %v1507, 1.0
    %v1532 = vadd.f32 %v1508, 1.0
    %v1533 = vadd.f32 %v1509, 1.0
    %v1534 = vadd.f32 %v1510, 1.0
    %v1535 = vadd.f32 %v1511, 1.0
    %v1536 = vadd.f32 %v1512, 1.0
    %v1537 = vadd.f32 %v1513, 1.0
    %v1538 = vadd.f32 %v1514, 1.0
    %v1539 = vadd.f32 %v1515, 1.0
    %v1540 = vadd.f32 %v1516, 1.0
    %v1541 = vadd.f32 %v1517, 1.0
    %v1542 = vadd.f32 %v1518, 1.0
    %v1543 = vadd.f32 %v1519, 1.0
    %v1544 = vadd.f32 %v1520, 1.0
    %v1545 = vadd.f32 %v1521, 1.0
    %v1546 = vadd.f32 %v1522, 1.0
    %v1547 = vmul.f32 %v1523, 0.5
    %v1548 = vmul.f32 %v1524, 0.5
    %v1549 = vmul.f32 %v1525, 0.5
    %v1550 = vmul.f32 %v1526, 0.5
    %v1551 = vmul.f32 %v1527, 0.5
    %v1552 = vmul.f32 %v1528, 0.5
    %v1553 = vmul.f32 %v1529, 0.5
    %v1554 = vmul.f32 %v1530, 0.5
    %v1555 = vmul.f32 %v1531, 0.5
    %v1556 = vmul.f32 %v1532, 0.5
    %v1557 = vmul.f32 %v1533, 0.5
    %v1558 = vmul.f32 %v1534, 0.5
    %v1559 = vmul.f32 %v1535, 0.5
    %v1560 = vmul.f32 %v1536, 0.5
    %v1561 = vmul.f32 %v1537, 0.5
    %v1562 = vmul.f32 %v1538, 0.5
    %v1563 = vmul.f32 %v1539, 0.5
    %v1564 = vmul.f32 %v1540, 0.5
    %v1565 = vmul.f32 %v1541, 0.5
    %v1566 = vmul.f32 %v1542, 0.5
    %v1567 = vmul.f32 %v1543, 0.5
    %v1568 = vmul.f32 %v1544, 0.5
    %v1569 = vmul.f32 %v1545, 0.5
    %v1570 = vmul.f32 %v1546, 0.5
    %v1595 = vcombine.low %v1547, %v1548
    %v1596 = vcombine.low %v1549, %v1550
    %v1597 = vcombine.low %v1551, %v1552
    %v1598 = vcombine.low %v1553, %v1554
    %v1600 = vunpack.c.l.s4 1966171168
    %v1601 = vunpack.c.0.s8 %v1600
    %v1602 = vlaneseq
    %v1603 = vshrl.u32 %v1602, 7
    %v1604 = vsub.s32 %v1601, %v1603
    %v1605 = vrot.slane %v1595, %v1604
    %v1607 = vunpack.c.l.s4 1966171168
    %v1608 = vunpack.c.0.s8 %v1607
    %v1609 = vlaneseq
    %v1610 = vshrl.u32 %v1609, 7
    %v1611 = vsub.s32 %v1608, %v1610
    %v1612 = vrot.slane %v1596, %v1611
    %v1614 = vunpack.c.l.s4 1966171168
    %v1615 = vunpack.c.0.s8 %v1614
    %v1616 = vlaneseq
    %v1617 = vshrl.u32 %v1616, 7
    %v1618 = vsub.s32 %v1615, %v1617
    %v1619 = vrot.slane %v1597, %v1618
    %v1621 = vunpack.c.l.s4 1966171168
    %v1622 = vunpack.c.0.s8 %v1621
    %v1623 = vlaneseq
    %v1624 = vshrl.u32 %v1623, 7
    %v1625 = vsub.s32 %v1622, %v1624
    %v1626 = vrot.slane %v1598, %v1625
    %v1627 = vcombine.low %v1605, %v1612
    %v1628 = vcombine.low %v1619, %v1626
    %v1630 = vunpack.c.l.s4 1966171168
    %v1631 = vunpack.c.0.s8 %v1630
    %v1632 = vlaneseq
    %v1633 = vshrl.u32 %v1632, 7
    %v1634 = vsub.s32 %v1631, %v1633
    %v1635 = vrot.slane %v1627, %v1634
    %v1637 = vunpack.c.l.s4 1966171168
    %v1638 = vunpack.c.0.s8 %v1637
    %v1639 = vlaneseq
    %v1640 = vshrl.u32 %v1639, 7
    %v1641 = vsub.s32 %v1638, %v1640
    %v1642 = vrot.slane %v1628, %v1641
    %v1643 = vcombine.low %v1635, %v1642
    %v1644 = vcombine.low %v1555, %v1556
    %v1645 = vcombine.low %v1557, %v1558
    %v1646 = vcombine.low %v1559, %v1560
    %v1647 = vcombine.low %v1561, %v1562
    %v1649 = vunpack.c.l.s4 1966171168
    %v1650 = vunpack.c.0.s8 %v1649
    %v1651 = vlaneseq
    %v1652 = vshrl.u32 %v1651, 7
    %v1653 = vsub.s32 %v1650, %v1652
    %v1654 = vrot.slane %v1644, %v1653
    %v1656 = vunpack.c.l.s4 1966171168
    %v1657 = vunpack.c.0.s8 %v1656
    %v1658 = vlaneseq
    %v1659 = vshrl.u32 %v1658, 7
    %v1660 = vsub.s32 %v1657, %v1659
    %v1661 = vrot.slane %v1645, %v1660
    %v1663 = vunpack.c.l.s4 1966171168
    %v1664 = vunpack.c.0.s8 %v1663
    %v1665 = vlaneseq
    %v1666 = vshrl.u32 %v1665, 7
    %v1667 = vsub.s32 %v1664, %v1666
    %v1668 = vrot.slane %v1646, %v1667
    %v1670 = vunpack.c.l.s4 1966171168
    %v1671 = vunpack.c.0.s8 %v1670
    %v1672 = vlaneseq
    %v1673 = vshrl.u32 %v1672, 7
    %v1674 = vsub.s32 %v1671, %v1673
    %v1675 = vrot.slane %v1647, %v1674
    %v1676 = vcombine.low %v1654, %v1661
    %v1677 = vcombine.low %v1668, %v1675
    %v1679 = vunpack.c.l.s4 1966171168
    %v1680 = vunpack.c.0.s8 %v1679
    %v1681 = vlaneseq
    %v1682 = vshrl.u32 %v1681, 7
    %v1683 = vsub.s32 %v1680, %v1682
    %v1684 = vrot.slane %v1676, %v1683
    %v1686 = vunpack.c.l.s4 1966171168
    %v1687 = vunpack.c.0.s8 %v1686
    %v1688 = vlaneseq
    %v1689 = vshrl.u32 %v1688, 7
    %v1690 = vsub.s32 %v1687, %v1689
    %v1691 = vrot.slane %v1677, %v1690
    %v1692 = vcombine.low %v1684, %v1691
    %v1693 = vcombine.low %v1563, %v1564
    %v1694 = vcombine.low %v1565, %v1566
    %v1695 = vcombine.low %v1567, %v1568
    %v1696 = vcombine.low %v1569, %v1570
    %v1698 = vunpack.c.l.s4 1966171168
    %v1699 = vunpack.c.0.s8 %v1698
    %v1700 = vlaneseq
    %v1701 = vshrl.u32 %v1700, 7
    %v1702 = vsub.s32 %v1699, %v1701
    %v1703 = vrot.slane %v1693, %v1702
    %v1705 = vunpack.c.l.s4 1966171168
    %v1706 = vunpack.c.0.s8 %v1705
    %v1707 = vlaneseq
    %v1708 = vshrl.u32 %v1707, 7
    %v1709 = vsub.s32 %v1706, %v1708
    %v1710 = vrot.slane %v1694, %v1709
    %v1712 = vunpack.c.l.s4 1966171168
    %v1713 = vunpack.c.0.s8 %v1712
    %v1714 = vlaneseq
    %v1715 = vshrl.u32 %v1714, 7
    %v1716 = vsub.s32 %v1713, %v1715
    %v1717 = vrot.slane %v1695, %v1716
    %v1719 = vunpack.c.l.s4 1966171168
    %v1720 = vunpack.c.0.s8 %v1719
    %v1721 = vlaneseq
    %v1722 = vshrl.u32 %v1721, 7
    %v1723 = vsub.s32 %v1720, %v1722
    %v1724 = vrot.slane %v1696, %v1723
    %v1725 = vcombine.low %v1703, %v1710
    %v1726 = vcombine.low %v1717, %v1724
    %v1728 = vunpack.c.l.s4 1966171168
    %v1729 = vunpack.c.0.s8 %v1728
    %v1730 = vlaneseq
    %v1731 = vshrl.u32 %v1730, 7
    %v1732 = vsub.s32 %v1729, %v1731
    %v1733 = vrot.slane %v1725, %v1732
    %v1735 = vunpack.c.l.s4 1966171168
    %v1736 = vunpack.c.0.s8 %v1735
    %v1737 = vlaneseq
    %v1738 = vshrl.u32 %v1737, 7
    %v1739 = vsub.s32 %v1736, %v1738
    %v1740 = vrot.slane %v1726, %v1739
    %v1741 = vcombine.low %v1733, %v1740
    %1745 = vst [vmem:[%s4] sm:$0xff] %v1643
    %1746 = vst [vmem:[%s4 + $0x8] sm:$0xff] %v1692
    %1747 = vst [vmem:[%s4 + $0x10] sm:$0xff] %v1741
    // Predicated region
    $region26: #{_device_forward.2} parent=1 // pred_check
      _
    $region27: #{_device_forward.2} parent=1 // pred_check_branch
      %1749 = sbr.rel (0) target = $region29
    $region28: #{_device_forward.2} parent=1 // pred_region
      _
    $region29: #{_device_forward.2} parent=1 // pred_fallthru
      _
    // Predicated region
    $region30: #{_device_forward.2} parent=1 // pred_check
      _
    $region31: #{_device_forward.2} parent=1 // pred_check_branch
      %1751 = sbr.rel (0) target = $region33
    $region32: #{_device_forward.2} parent=1 // pred_region
      _
    $region33: #{_device_forward.2} parent=1 // pred_fallthru
      _
    %1752 = vsyncpa [#allocation3], 1
    %1753 = vsyncpa [#allocation5], 1

// kernel: _device_forward.3
$region0: #{_device_forward.3}
  #allocation0 [shape = 'u32[]', space=smem, size = 0x4, offset = 0x4, fixed_abs, tag = 'smem constant byte address 0x4 - core index']
  #allocation1 [shape = 'u32[144,128]{1,0:T(1,128)}', space=vmem, size = 0x12000, scoped, tag = 'internal scratch']
  #allocation2 [shape = 'f32[1,1]{1,0:T(1,128)S(6)}', space=smem, size = 0x200, scoped, tag = 'scoped memory for _device_forward.3']
  %s0 = inlined_call_operand.<no memory space> [shape: f32[1,1], index: 0, kind: input, shape index: {}]
  %s1 = inlined_call_operand.vmem [shape: f32[4,3072], index: 1, kind: input, shape index: {}]
  %s2 = inlined_call_operand.vmem [shape: bf16[3072,32], index: 2, kind: input, shape index: {}]
  %s3 = inlined_call_operand.vmem [shape: f32[1,32], index: 3, kind: input, shape index: {}]
  %s4 = inlined_call_operand.vmem [shape: f32[4,32], index: 4, kind: input, shape index: {}]
  %s5 = inlined_call_operand.vmem [shape: f32[4,16], index: 5, kind: input, shape index: {}]
  %s6 = inlined_call_operand.vmem [shape: f32[3,32], index: 6, kind: input, shape index: {}]
  %s7 = inlined_call_operand.vmem [shape: f32[1,4], index: 7, kind: output, shape index: {}]
  %s8 = sld [smem:[#allocation0]]
  $region38: #{_device_forward.3} parent=0
    _
  %s10 = ssub.s32 1, %s8
  %s11 = scalar_select 0, %s10, %s8
  %12 = sst [smem:[#allocation2]] %s0
  $region1: #{_device_forward.3} parent=0
    #allocation3 [shape = 'u8[512]{0}', space=smem, size = 0x200, scoped, tag = 'output window, operand 0, single buffered']
    #allocation4 [shape = 's32[1]{0}', space=sflag, size = 0x4, scoped, tag = 'scoped memory for _device_forward.3']
    %13 = vsyncpa [#allocation4], 0
    // Predicated region
    $region2: #{_device_forward.3} parent=1 // pred_check
      _
    $region3: #{_device_forward.3} parent=1 // pred_check_branch
      %15 = sbr.rel (0) target = $region5
    $region4: #{_device_forward.3} parent=1 // pred_region
      _
    $region5: #{_device_forward.3} parent=1 // pred_fallthru
      _
    // Predicated region
    $region6: #{_device_forward.3} parent=1 // pred_check
      _
    $region7: #{_device_forward.3} parent=1 // pred_check_branch
      %17 = sbr.rel (0) target = $region9
    $region8: #{_device_forward.3} parent=1 // pred_region
      _
    $region9: #{_device_forward.3} parent=1 // pred_fallthru
      _
    // Predicated region
    $region10: #{_device_forward.3} parent=1 // pred_check
      _
    $region11: #{_device_forward.3} parent=1 // pred_check_branch
      %19 = sbr.rel (0) target = $region13
    $region12: #{_device_forward.3} parent=1 // pred_region
      _
    $region13: #{_device_forward.3} parent=1 // pred_fallthru
      _
    // Predicated region
    $region14: #{_device_forward.3} parent=1 // pred_check
      _
    $region15: #{_device_forward.3} parent=1 // pred_check_branch
      %21 = sbr.rel (0) target = $region17
    $region16: #{_device_forward.3} parent=1 // pred_region
      _
    $region17: #{_device_forward.3} parent=1 // pred_fallthru
      _
    // Predicated region
    $region18: #{_device_forward.3} parent=1 // pred_check
      _
    $region19: #{_device_forward.3} parent=1 // pred_check_branch
      %23 = sbr.rel (0) target = $region21
    $region20: #{_device_forward.3} parent=1 // pred_region
      _
    $region21: #{_device_forward.3} parent=1 // pred_fallthru
      _
    // Predicated region
    $region22: #{_device_forward.3} parent=1 // pred_check
      _
    $region23: #{_device_forward.3} parent=1 // pred_check_branch
      %25 = sbr.rel (0) target = $region25
    $region24: #{_device_forward.3} parent=1 // pred_region
      _
    $region25: #{_device_forward.3} parent=1 // pred_fallthru
      _
    // Predicated region
    $region26: #{_device_forward.3} parent=1 // pred_check
      _
    $region27: #{_device_forward.3} parent=1 // pred_check_branch
      %27 = sbr.rel (0) target = $region29
    $region28: #{_device_forward.3} parent=1 // pred_region
      _
    $region29: #{_device_forward.3} parent=1 // pred_fallthru
      _
    %v29 = vld [vmem:[%s1] sm:$0xff]
    %v30 = vld [vmem:[%s1 + $0x8] sm:$0xff]
    %v31 = vld [vmem:[%s1 + $0x10] sm:$0xff]
    %v32 = vld [vmem:[%s1 + $0x18] sm:$0xff]
    %v33 = vld [vmem:[%s1 + $0x20] sm:$0xff]
    %v34 = vld [vmem:[%s1 + $0x28] sm:$0xff]
    %v35 = vld [vmem:[%s1 + $0x30] sm:$0xff]
    %v36 = vld [vmem:[%s1 + $0x38] sm:$0xff]
    %v37 = vld [vmem:[%s1 + $0x40] sm:$0xff]
    %v38 = vld [vmem:[%s1 + $0x48] sm:$0xff]
    %v39 = vld [vmem:[%s1 + $0x50] sm:$0xff]
    %v40 = vld [vmem:[%s1 + $0x58] sm:$0xff]
    %v53 = vcombine.high %v29, %v29
    %v54 = vcombine.high %v30, %v30
    %v55 = vcombine.high %v31, %v31
    %v56 = vcombine.high %v32, %v32
    %v57 = vcombine.high %v33, %v33
    %v58 = vcombine.high %v34, %v34
    %v59 = vcombine.high %v35, %v35
    %v60 = vcombine.high %v36, %v36
    %v61 = vcombine.high %v37, %v37
    %v62 = vcombine.high %v38, %v38
    %v63 = vcombine.high %v39, %v39
    %v64 = vcombine.high %v40, %v40
    %v77 = vpack.c.bf16 %v29, %v29
    %v78 = vpack.c.bf16 %v53, %v53
    %v79 = vpack.c.bf16 %v30, %v30
    %v80 = vpack.c.bf16 %v54, %v54
    %v81 = vpack.c.bf16 %v31, %v31
    %v82 = vpack.c.bf16 %v55, %v55
    %v83 = vpack.c.bf16 %v32, %v32
    %v84 = vpack.c.bf16 %v56, %v56
    %v85 = vpack.c.bf16 %v33, %v33
    %v86 = vpack.c.bf16 %v57, %v57
    %v87 = vpack.c.bf16 %v34, %v34
    %v88 = vpack.c.bf16 %v58, %v58
    %v89 = vpack.c.bf16 %v35, %v35
    %v90 = vpack.c.bf16 %v59, %v59
    %v91 = vpack.c.bf16 %v36, %v36
    %v92 = vpack.c.bf16 %v60, %v60
    %v93 = vpack.c.bf16 %v37, %v37
    %v94 = vpack.c.bf16 %v61, %v61
    %v95 = vpack.c.bf16 %v38, %v38
    %v96 = vpack.c.bf16 %v62, %v62
    %v97 = vpack.c.bf16 %v39, %v39
    %v98 = vpack.c.bf16 %v63, %v63
    %v99 = vpack.c.bf16 %v40, %v40
    %v100 = vpack.c.bf16 %v64, %v64
    %v101 = vld [vmem:[%s2] sm:$0xf]
    %v102 = vld [vmem:[%s2 + $0x4] sm:$0xf]
    %v103 = vld [vmem:[%s2 + $0x8] sm:$0xf]
    %v104 = vld [vmem:[%s2 + $0xc] sm:$0xf]
    %v105 = vld [vmem:[%s2 + $0x10] sm:$0xf]
    %v106 = vld [vmem:[%s2 + $0x14] sm:$0xf]
    %v107 = vld [vmem:[%s2 + $0x18] sm:$0xf]
    %v108 = vld [vmem:[%s2 + $0x1c] sm:$0xf]
    %v109 = vld [vmem:[%s2 + $0x20] sm:$0xf]
    %v110 = vld [vmem:[%s2 + $0x24] sm:$0xf]
    %v111 = vld [vmem:[%s2 + $0x28] sm:$0xf]
    %v112 = vld [vmem:[%s2 + $0x2c] sm:$0xf]
    %v113 = vld [vmem:[%s2 + $0x30] sm:$0xf]
    %v114 = vld [vmem:[%s2 + $0x34] sm:$0xf]
    %v115 = vld [vmem:[%s2 + $0x38] sm:$0xf]
    %v116 = vld [vmem:[%s2 + $0x3c] sm:$0xf]
    %v117 = vld [vmem:[%s2 + $0x40] sm:$0xf]
    %v118 = vld [vmem:[%s2 + $0x44] sm:$0xf]
    %v119 = vld [vmem:[%s2 + $0x48] sm:$0xf]
    %v120 = vld [vmem:[%s2 + $0x4c] sm:$0xf]
    %v121 = vld [vmem:[%s2 + $0x50] sm:$0xf]
    %v122 = vld [vmem:[%s2 + $0x54] sm:$0xf]
    %v123 = vld [vmem:[%s2 + $0x58] sm:$0xf]
    %v124 = vld [vmem:[%s2 + $0x5c] sm:$0xf]
    %v125 = vld [vmem:[%s2 + $0x60] sm:$0xf]
    %v126 = vld [vmem:[%s2 + $0x64] sm:$0xf]
    %v127 = vld [vmem:[%s2 + $0x68] sm:$0xf]
    %v128 = vld [vmem:[%s2 + $0x6c] sm:$0xf]
    %v129 = vld [vmem:[%s2 + $0x70] sm:$0xf]
    %v130 = vld [vmem:[%s2 + $0x74] sm:$0xf]
    %v131 = vld [vmem:[%s2 + $0x78] sm:$0xf]
    %v132 = vld [vmem:[%s2 + $0x7c] sm:$0xf]
    %v133 = vld [vmem:[%s2 + $0x80] sm:$0xf]
    %v134 = vld [vmem:[%s2 + $0x84] sm:$0xf]
    %v135 = vld [vmem:[%s2 + $0x88] sm:$0xf]
    %v136 = vld [vmem:[%s2 + $0x8c] sm:$0xf]
    %v137 = vld [vmem:[%s2 + $0x90] sm:$0xf]
    %v138 = vld [vmem:[%s2 + $0x94] sm:$0xf]
    %v139 = vld [vmem:[%s2 + $0x98] sm:$0xf]
    %v140 = vld [vmem:[%s2 + $0x9c] sm:$0xf]
    %v141 = vld [vmem:[%s2 + $0xa0] sm:$0xf]
    %v142 = vld [vmem:[%s2 + $0xa4] sm:$0xf]
    %v143 = vld [vmem:[%s2 + $0xa8] sm:$0xf]
    %v144 = vld [vmem:[%s2 + $0xac] sm:$0xf]
    %v145 = vld [vmem:[%s2 + $0xb0] sm:$0xf]
    %v146 = vld [vmem:[%s2 + $0xb4] sm:$0xf]
    %v147 = vld [vmem:[%s2 + $0xb8] sm:$0xf]
    %v148 = vld [vmem:[%s2 + $0xbc] sm:$0xf]
    %v149 = vld [vmem:[%s2 + $0xc0] sm:$0xf]
    %v150 = vld [vmem:[%s2 + $0xc4] sm:$0xf]
    %v151 = vld [vmem:[%s2 + $0xc8] sm:$0xf]
    %v152 = vld [vmem:[%s2 + $0xcc] sm:$0xf]
    %v153 = vld [vmem:[%s2 + $0xd0] sm:$0xf]
    %v154 = vld [vmem:[%s2 + $0xd4] sm:$0xf]
    %v155 = vld [vmem:[%s2 + $0xd8] sm:$0xf]
    %v156 = vld [vmem:[%s2 + $0xdc] sm:$0xf]
    %v157 = vld [vmem:[%s2 + $0xe0] sm:$0xf]
    %v158 = vld [vmem:[%s2 + $0xe4] sm:$0xf]
    %v159 = vld [vmem:[%s2 + $0xe8] sm:$0xf]
    %v160 = vld [vmem:[%s2 + $0xec] sm:$0xf]
    %v161 = vld [vmem:[%s2 + $0xf0] sm:$0xf]
    %v162 = vld [vmem:[%s2 + $0xf4] sm:$0xf]
    %v163 = vld [vmem:[%s2 + $0xf8] sm:$0xf]
    %v164 = vld [vmem:[%s2 + $0xfc] sm:$0xf]
    %v165 = vld [vmem:[%s2 + $0x100] sm:$0xf]
    %v166 = vld [vmem:[%s2 + $0x104] sm:$0xf]
    %v167 = vld [vmem:[%s2 + $0x108] sm:$0xf]
    %v168 = vld [vmem:[%s2 + $0x10c] sm:$0xf]
    %v169 = vld [vmem:[%s2 + $0x110] sm:$0xf]
    %v170 = vld [vmem:[%s2 + $0x114] sm:$0xf]
    %v171 = vld [vmem:[%s2 + $0x118] sm:$0xf]
    %v172 = vld [vmem:[%s2 + $0x11c] sm:$0xf]
    %v173 = vld [vmem:[%s2 + $0x120] sm:$0xf]
    %v174 = vld [vmem:[%s2 + $0x124] sm:$0xf]
    %v175 = vld [vmem:[%s2 + $0x128] sm:$0xf]
    %v176 = vld [vmem:[%s2 + $0x12c] sm:$0xf]
    %v177 = vld [vmem:[%s2 + $0x130] sm:$0xf]
    %v178 = vld [vmem:[%s2 + $0x134] sm:$0xf]
    %v179 = vld [vmem:[%s2 + $0x138] sm:$0xf]
    %v180 = vld [vmem:[%s2 + $0x13c] sm:$0xf]
    %v181 = vld [vmem:[%s2 + $0x140] sm:$0xf]
    %v182 = vld [vmem:[%s2 + $0x144] sm:$0xf]
    %v183 = vld [vmem:[%s2 + $0x148] sm:$0xf]
    %v184 = vld [vmem:[%s2 + $0x14c] sm:$0xf]
    %v185 = vld [vmem:[%s2 + $0x150] sm:$0xf]
    %v186 = vld [vmem:[%s2 + $0x154] sm:$0xf]
    %v187 = vld [vmem:[%s2 + $0x158] sm:$0xf]
    %v188 = vld [vmem:[%s2 + $0x15c] sm:$0xf]
    %v189 = vld [vmem:[%s2 + $0x160] sm:$0xf]
    %v190 = vld [vmem:[%s2 + $0x164] sm:$0xf]
    %v191 = vld [vmem:[%s2 + $0x168] sm:$0xf]
    %v192 = vld [vmem:[%s2 + $0x16c] sm:$0xf]
    %v193 = vld [vmem:[%s2 + $0x170] sm:$0xf]
    %v194 = vld [vmem:[%s2 + $0x174] sm:$0xf]
    %v195 = vld [vmem:[%s2 + $0x178] sm:$0xf]
    %v196 = vld [vmem:[%s2 + $0x17c] sm:$0xf]
    %v197 = vld [vmem:[%s2 + $0x180] sm:$0xf]
    %v198 = vld [vmem:[%s2 + $0x184] sm:$0xf]
    %v199 = vld [vmem:[%s2 + $0x188] sm:$0xf]
    %v200 = vld [vmem:[%s2 + $0x18c] sm:$0xf]
    %v201 = vld [vmem:[%s2 + $0x190] sm:$0xf]
    %v202 = vld [vmem:[%s2 + $0x194] sm:$0xf]
    %v203 = vld [vmem:[%s2 + $0x198] sm:$0xf]
    %v204 = vld [vmem:[%s2 + $0x19c] sm:$0xf]
    %v205 = vld [vmem:[%s2 + $0x1a0] sm:$0xf]
    %v206 = vld [vmem:[%s2 + $0x1a4] sm:$0xf]
    %v207 = vld [vmem:[%s2 + $0x1a8] sm:$0xf]
    %v208 = vld [vmem:[%s2 + $0x1ac] sm:$0xf]
    %v209 = vld [vmem:[%s2 + $0x1b0] sm:$0xf]
    %v210 = vld [vmem:[%s2 + $0x1b4] sm:$0xf]
    %v211 = vld [vmem:[%s2 + $0x1b8] sm:$0xf]
    %v212 = vld [vmem:[%s2 + $0x1bc] sm:$0xf]
    %v213 = vld [vmem:[%s2 + $0x1c0] sm:$0xf]
    %v214 = vld [vmem:[%s2 + $0x1c4] sm:$0xf]
    %v215 = vld [vmem:[%s2 + $0x1c8] sm:$0xf]
    %v216 = vld [vmem:[%s2 + $0x1cc] sm:$0xf]
    %v217 = vld [vmem:[%s2 + $0x1d0] sm:$0xf]
    %v218 = vld [vmem:[%s2 + $0x1d4] sm:$0xf]
    %v219 = vld [vmem:[%s2 + $0x1d8] sm:$0xf]
    %v220 = vld [vmem:[%s2 + $0x1dc] sm:$0xf]
    %v221 = vld [vmem:[%s2 + $0x1e0] sm:$0xf]
    %v222 = vld [vmem:[%s2 + $0x1e4] sm:$0xf]
    %v223 = vld [vmem:[%s2 + $0x1e8] sm:$0xf]
    %v224 = vld [vmem:[%s2 + $0x1ec] sm:$0xf]
    %v225 = vld [vmem:[%s2 + $0x1f0] sm:$0xf]
    %v226 = vld [vmem:[%s2 + $0x1f4] sm:$0xf]
    %v227 = vld [vmem:[%s2 + $0x1f8] sm:$0xf]
    %v228 = vld [vmem:[%s2 + $0x1fc] sm:$0xf]
    %v229 = vld [vmem:[%s2 + $0x200] sm:$0xf]
    %v230 = vld [vmem:[%s2 + $0x204] sm:$0xf]
    %v231 = vld [vmem:[%s2 + $0x208] sm:$0xf]
    %v232 = vld [vmem:[%s2 + $0x20c] sm:$0xf]
    %v233 = vld [vmem:[%s2 + $0x210] sm:$0xf]
    %v234 = vld [vmem:[%s2 + $0x214] sm:$0xf]
    %v235 = vld [vmem:[%s2 + $0x218] sm:$0xf]
    %v236 = vld [vmem:[%s2 + $0x21c] sm:$0xf]
    %v237 = vld [vmem:[%s2 + $0x220] sm:$0xf]
    %v238 = vld [vmem:[%s2 + $0x224] sm:$0xf]
    %v239 = vld [vmem:[%s2 + $0x228] sm:$0xf]
    %v240 = vld [vmem:[%s2 + $0x22c] sm:$0xf]
    %v241 = vld [vmem:[%s2 + $0x230] sm:$0xf]
    %v242 = vld [vmem:[%s2 + $0x234] sm:$0xf]
    %v243 = vld [vmem:[%s2 + $0x238] sm:$0xf]
    %v244 = vld [vmem:[%s2 + $0x23c] sm:$0xf]
    %v245 = vld [vmem:[%s2 + $0x240] sm:$0xf]
    %v246 = vld [vmem:[%s2 + $0x244] sm:$0xf]
    %v247 = vld [vmem:[%s2 + $0x248] sm:$0xf]
    %v248 = vld [vmem:[%s2 + $0x24c] sm:$0xf]
    %v249 = vld [vmem:[%s2 + $0x250] sm:$0xf]
    %v250 = vld [vmem:[%s2 + $0x254] sm:$0xf]
    %v251 = vld [vmem:[%s2 + $0x258] sm:$0xf]
    %v252 = vld [vmem:[%s2 + $0x25c] sm:$0xf]
    %v253 = vld [vmem:[%s2 + $0x260] sm:$0xf]
    %v254 = vld [vmem:[%s2 + $0x264] sm:$0xf]
    %v255 = vld [vmem:[%s2 + $0x268] sm:$0xf]
    %v256 = vld [vmem:[%s2 + $0x26c] sm:$0xf]
    %v257 = vld [vmem:[%s2 + $0x270] sm:$0xf]
    %v258 = vld [vmem:[%s2 + $0x274] sm:$0xf]
    %v259 = vld [vmem:[%s2 + $0x278] sm:$0xf]
    %v260 = vld [vmem:[%s2 + $0x27c] sm:$0xf]
    %v261 = vld [vmem:[%s2 + $0x280] sm:$0xf]
    %v262 = vld [vmem:[%s2 + $0x284] sm:$0xf]
    %v263 = vld [vmem:[%s2 + $0x288] sm:$0xf]
    %v264 = vld [vmem:[%s2 + $0x28c] sm:$0xf]
    %v265 = vld [vmem:[%s2 + $0x290] sm:$0xf]
    %v266 = vld [vmem:[%s2 + $0x294] sm:$0xf]
    %v267 = vld [vmem:[%s2 + $0x298] sm:$0xf]
    %v268 = vld [vmem:[%s2 + $0x29c] sm:$0xf]
    %v269 = vld [vmem:[%s2 + $0x2a0] sm:$0xf]
    %v270 = vld [vmem:[%s2 + $0x2a4] sm:$0xf]
    %v271 = vld [vmem:[%s2 + $0x2a8] sm:$0xf]
    %v272 = vld [vmem:[%s2 + $0x2ac] sm:$0xf]
    %v273 = vld [vmem:[%s2 + $0x2b0] sm:$0xf]
    %v274 = vld [vmem:[%s2 + $0x2b4] sm:$0xf]
    %v275 = vld [vmem:[%s2 + $0x2b8] sm:$0xf]
    %v276 = vld [vmem:[%s2 + $0x2bc] sm:$0xf]
    %v277 = vld [vmem:[%s2 + $0x2c0] sm:$0xf]
    %v278 = vld [vmem:[%s2 + $0x2c4] sm:$0xf]
    %v279 = vld [vmem:[%s2 + $0x2c8] sm:$0xf]
    %v280 = vld [vmem:[%s2 + $0x2cc] sm:$0xf]
    %v281 = vld [vmem:[%s2 + $0x2d0] sm:$0xf]
    %v282 = vld [vmem:[%s2 + $0x2d4] sm:$0xf]
    %v283 = vld [vmem:[%s2 + $0x2d8] sm:$0xf]
    %v284 = vld [vmem:[%s2 + $0x2dc] sm:$0xf]
    %v285 = vld [vmem:[%s2 + $0x2e0] sm:$0xf]
    %v286 = vld [vmem:[%s2 + $0x2e4] sm:$0xf]
    %v287 = vld [vmem:[%s2 + $0x2e8] sm:$0xf]
    %v288 = vld [vmem:[%s2 + $0x2ec] sm:$0xf]
    %v289 = vld [vmem:[%s2 + $0x2f0] sm:$0xf]
    %v290 = vld [vmem:[%s2 + $0x2f4] sm:$0xf]
    %v291 = vld [vmem:[%s2 + $0x2f8] sm:$0xf]
    %v292 = vld [vmem:[%s2 + $0x2fc] sm:$0xf]
    %v293 = vld [vmem:[%s2 + $0x300] sm:$0xf]
    %v294 = vld [vmem:[%s2 + $0x304] sm:$0xf]
    %v295 = vld [vmem:[%s2 + $0x308] sm:$0xf]
    %v296 = vld [vmem:[%s2 + $0x30c] sm:$0xf]
    %v297 = vld [vmem:[%s2 + $0x310] sm:$0xf]
    %v298 = vld [vmem:[%s2 + $0x314] sm:$0xf]
    %v299 = vld [vmem:[%s2 + $0x318] sm:$0xf]
    %v300 = vld [vmem:[%s2 + $0x31c] sm:$0xf]
    %v301 = vld [vmem:[%s2 + $0x320] sm:$0xf]
    %v302 = vld [vmem:[%s2 + $0x324] sm:$0xf]
    %v303 = vld [vmem:[%s2 + $0x328] sm:$0xf]
    %v304 = vld [vmem:[%s2 + $0x32c] sm:$0xf]
    %v305 = vld [vmem:[%s2 + $0x330] sm:$0xf]
    %v306 = vld [vmem:[%s2 + $0x334] sm:$0xf]
    %v307 = vld [vmem:[%s2 + $0x338] sm:$0xf]
    %v308 = vld [vmem:[%s2 + $0x33c] sm:$0xf]
    %v309 = vld [vmem:[%s2 + $0x340] sm:$0xf]
    %v310 = vld [vmem:[%s2 + $0x344] sm:$0xf]
    %v311 = vld [vmem:[%s2 + $0x348] sm:$0xf]
    %v312 = vld [vmem:[%s2 + $0x34c] sm:$0xf]
    %v313 = vld [vmem:[%s2 + $0x350] sm:$0xf]
    %v314 = vld [vmem:[%s2 + $0x354] sm:$0xf]
    %v315 = vld [vmem:[%s2 + $0x358] sm:$0xf]
    %v316 = vld [vmem:[%s2 + $0x35c] sm:$0xf]
    %v317 = vld [vmem:[%s2 + $0x360] sm:$0xf]
    %v318 = vld [vmem:[%s2 + $0x364] sm:$0xf]
    %v319 = vld [vmem:[%s2 + $0x368] sm:$0xf]
    %v320 = vld [vmem:[%s2 + $0x36c] sm:$0xf]
    %v321 = vld [vmem:[%s2 + $0x370] sm:$0xf]
    %v322 = vld [vmem:[%s2 + $0x374] sm:$0xf]
    %v323 = vld [vmem:[%s2 + $0x378] sm:$0xf]
    %v324 = vld [vmem:[%s2 + $0x37c] sm:$0xf]
    %v325 = vld [vmem:[%s2 + $0x380] sm:$0xf]
    %v326 = vld [vmem:[%s2 + $0x384] sm:$0xf]
    %v327 = vld [vmem:[%s2 + $0x388] sm:$0xf]
    %v328 = vld [vmem:[%s2 + $0x38c] sm:$0xf]
    %v329 = vld [vmem:[%s2 + $0x390] sm:$0xf]
    %v330 = vld [vmem:[%s2 + $0x394] sm:$0xf]
    %v331 = vld [vmem:[%s2 + $0x398] sm:$0xf]
    %v332 = vld [vmem:[%s2 + $0x39c] sm:$0xf]
    %v333 = vld [vmem:[%s2 + $0x3a0] sm:$0xf]
    %v334 = vld [vmem:[%s2 + $0x3a4] sm:$0xf]
    %v335 = vld [vmem:[%s2 + $0x3a8] sm:$0xf]
    %v336 = vld [vmem:[%s2 + $0x3ac] sm:$0xf]
    %v337 = vld [vmem:[%s2 + $0x3b0] sm:$0xf]
    %v338 = vld [vmem:[%s2 + $0x3b4] sm:$0xf]
    %v339 = vld [vmem:[%s2 + $0x3b8] sm:$0xf]
    %v340 = vld [vmem:[%s2 + $0x3bc] sm:$0xf]
    %v341 = vld [vmem:[%s2 + $0x3c0] sm:$0xf]
    %v342 = vld [vmem:[%s2 + $0x3c4] sm:$0xf]
    %v343 = vld [vmem:[%s2 + $0x3c8] sm:$0xf]
    %v344 = vld [vmem:[%s2 + $0x3cc] sm:$0xf]
    %v345 = vld [vmem:[%s2 + $0x3d0] sm:$0xf]
    %v346 = vld [vmem:[%s2 + $0x3d4] sm:$0xf]
    %v347 = vld [vmem:[%s2 + $0x3d8] sm:$0xf]
    %v348 = vld [vmem:[%s2 + $0x3dc] sm:$0xf]
    %v349 = vld [vmem:[%s2 + $0x3e0] sm:$0xf]
    %v350 = vld [vmem:[%s2 + $0x3e4] sm:$0xf]
    %v351 = vld [vmem:[%s2 + $0x3e8] sm:$0xf]
    %v352 = vld [vmem:[%s2 + $0x3ec] sm:$0xf]
    %v353 = vld [vmem:[%s2 + $0x3f0] sm:$0xf]
    %v354 = vld [vmem:[%s2 + $0x3f4] sm:$0xf]
    %v355 = vld [vmem:[%s2 + $0x3f8] sm:$0xf]
    %v356 = vld [vmem:[%s2 + $0x3fc] sm:$0xf]
    %v357 = vld [vmem:[%s2 + $0x400] sm:$0xf]
    %v358 = vld [vmem:[%s2 + $0x404] sm:$0xf]
    %v359 = vld [vmem:[%s2 + $0x408] sm:$0xf]
    %v360 = vld [vmem:[%s2 + $0x40c] sm:$0xf]
    %v361 = vld [vmem:[%s2 + $0x410] sm:$0xf]
    %v362 = vld [vmem:[%s2 + $0x414] sm:$0xf]
    %v363 = vld [vmem:[%s2 + $0x418] sm:$0xf]
    %v364 = vld [vmem:[%s2 + $0x41c] sm:$0xf]
    %v365 = vld [vmem:[%s2 + $0x420] sm:$0xf]
    %v366 = vld [vmem:[%s2 + $0x424] sm:$0xf]
    %v367 = vld [vmem:[%s2 + $0x428] sm:$0xf]
    %v368 = vld [vmem:[%s2 + $0x42c] sm:$0xf]
    %v369 = vld [vmem:[%s2 + $0x430] sm:$0xf]
    %v370 = vld [vmem:[%s2 + $0x434] sm:$0xf]
    %v371 = vld [vmem:[%s2 + $0x438] sm:$0xf]
    %v372 = vld [vmem:[%s2 + $0x43c] sm:$0xf]
    %v373 = vld [vmem:[%s2 + $0x440] sm:$0xf]
    %v374 = vld [vmem:[%s2 + $0x444] sm:$0xf]
    %v375 = vld [vmem:[%s2 + $0x448] sm:$0xf]
    %v376 = vld [vmem:[%s2 + $0x44c] sm:$0xf]
    %v377 = vld [vmem:[%s2 + $0x450] sm:$0xf]
    %v378 = vld [vmem:[%s2 + $0x454] sm:$0xf]
    %v379 = vld [vmem:[%s2 + $0x458] sm:$0xf]
    %v380 = vld [vmem:[%s2 + $0x45c] sm:$0xf]
    %v381 = vld [vmem:[%s2 + $0x460] sm:$0xf]
    %v382 = vld [vmem:[%s2 + $0x464] sm:$0xf]
    %v383 = vld [vmem:[%s2 + $0x468] sm:$0xf]
    %v384 = vld [vmem:[%s2 + $0x46c] sm:$0xf]
    %v385 = vld [vmem:[%s2 + $0x470] sm:$0xf]
    %v386 = vld [vmem:[%s2 + $0x474] sm:$0xf]
    %v387 = vld [vmem:[%s2 + $0x478] sm:$0xf]
    %v388 = vld [vmem:[%s2 + $0x47c] sm:$0xf]
    %v389 = vld [vmem:[%s2 + $0x480] sm:$0xf]
    %v390 = vld [vmem:[%s2 + $0x484] sm:$0xf]
    %v391 = vld [vmem:[%s2 + $0x488] sm:$0xf]
    %v392 = vld [vmem:[%s2 + $0x48c] sm:$0xf]
    %v393 = vld [vmem:[%s2 + $0x490] sm:$0xf]
    %v394 = vld [vmem:[%s2 + $0x494] sm:$0xf]
    %v395 = vld [vmem:[%s2 + $0x498] sm:$0xf]
    %v396 = vld [vmem:[%s2 + $0x49c] sm:$0xf]
    %v397 = vld [vmem:[%s2 + $0x4a0] sm:$0xf]
    %v398 = vld [vmem:[%s2 + $0x4a4] sm:$0xf]
    %v399 = vld [vmem:[%s2 + $0x4a8] sm:$0xf]
    %v400 = vld [vmem:[%s2 + $0x4ac] sm:$0xf]
    %v401 = vld [vmem:[%s2 + $0x4b0] sm:$0xf]
    %v402 = vld [vmem:[%s2 + $0x4b4] sm:$0xf]
    %v403 = vld [vmem:[%s2 + $0x4b8] sm:$0xf]
    %v404 = vld [vmem:[%s2 + $0x4bc] sm:$0xf]
    %v405 = vld [vmem:[%s2 + $0x4c0] sm:$0xf]
    %v406 = vld [vmem:[%s2 + $0x4c4] sm:$0xf]
    %v407 = vld [vmem:[%s2 + $0x4c8] sm:$0xf]
    %v408 = vld [vmem:[%s2 + $0x4cc] sm:$0xf]
    %v409 = vld [vmem:[%s2 + $0x4d0] sm:$0xf]
    %v410 = vld [vmem:[%s2 + $0x4d4] sm:$0xf]
    %v411 = vld [vmem:[%s2 + $0x4d8] sm:$0xf]
    %v412 = vld [vmem:[%s2 + $0x4dc] sm:$0xf]
    %v413 = vld [vmem:[%s2 + $0x4e0] sm:$0xf]
    %v414 = vld [vmem:[%s2 + $0x4e4] sm:$0xf]
    %v415 = vld [vmem:[%s2 + $0x4e8] sm:$0xf]
    %v416 = vld [vmem:[%s2 + $0x4ec] sm:$0xf]
    %v417 = vld [vmem:[%s2 + $0x4f0] sm:$0xf]
    %v418 = vld [vmem:[%s2 + $0x4f4] sm:$0xf]
    %v419 = vld [vmem:[%s2 + $0x4f8] sm:$0xf]
    %v420 = vld [vmem:[%s2 + $0x4fc] sm:$0xf]
    %v421 = vld [vmem:[%s2 + $0x500] sm:$0xf]
    %v422 = vld [vmem:[%s2 + $0x504] sm:$0xf]
    %v423 = vld [vmem:[%s2 + $0x508] sm:$0xf]
    %v424 = vld [vmem:[%s2 + $0x50c] sm:$0xf]
    %v425 = vld [vmem:[%s2 + $0x510] sm:$0xf]
    %v426 = vld [vmem:[%s2 + $0x514] sm:$0xf]
    %v427 = vld [vmem:[%s2 + $0x518] sm:$0xf]
    %v428 = vld [vmem:[%s2 + $0x51c] sm:$0xf]
    %v429 = vld [vmem:[%s2 + $0x520] sm:$0xf]
    %v430 = vld [vmem:[%s2 + $0x524] sm:$0xf]
    %v431 = vld [vmem:[%s2 + $0x528] sm:$0xf]
    %v432 = vld [vmem:[%s2 + $0x52c] sm:$0xf]
    %v433 = vld [vmem:[%s2 + $0x530] sm:$0xf]
    %v434 = vld [vmem:[%s2 + $0x534] sm:$0xf]
    %v435 = vld [vmem:[%s2 + $0x538] sm:$0xf]
    %v436 = vld [vmem:[%s2 + $0x53c] sm:$0xf]
    %v437 = vld [vmem:[%s2 + $0x540] sm:$0xf]
    %v438 = vld [vmem:[%s2 + $0x544] sm:$0xf]
    %v439 = vld [vmem:[%s2 + $0x548] sm:$0xf]
    %v440 = vld [vmem:[%s2 + $0x54c] sm:$0xf]
    %v441 = vld [vmem:[%s2 + $0x550] sm:$0xf]
    %v442 = vld [vmem:[%s2 + $0x554] sm:$0xf]
    %v443 = vld [vmem:[%s2 + $0x558] sm:$0xf]
    %v444 = vld [vmem:[%s2 + $0x55c] sm:$0xf]
    %v445 = vld [vmem:[%s2 + $0x560] sm:$0xf]
    %v446 = vld [vmem:[%s2 + $0x564] sm:$0xf]
    %v447 = vld [vmem:[%s2 + $0x568] sm:$0xf]
    %v448 = vld [vmem:[%s2 + $0x56c] sm:$0xf]
    %v449 = vld [vmem:[%s2 + $0x570] sm:$0xf]
    %v450 = vld [vmem:[%s2 + $0x574] sm:$0xf]
    %v451 = vld [vmem:[%s2 + $0x578] sm:$0xf]
    %v452 = vld [vmem:[%s2 + $0x57c] sm:$0xf]
    %v453 = vld [vmem:[%s2 + $0x580] sm:$0xf]
    %v454 = vld [vmem:[%s2 + $0x584] sm:$0xf]
    %v455 = vld [vmem:[%s2 + $0x588] sm:$0xf]
    %v456 = vld [vmem:[%s2 + $0x58c] sm:$0xf]
    %v457 = vld [vmem:[%s2 + $0x590] sm:$0xf]
    %v458 = vld [vmem:[%s2 + $0x594] sm:$0xf]
    %v459 = vld [vmem:[%s2 + $0x598] sm:$0xf]
    %v460 = vld [vmem:[%s2 + $0x59c] sm:$0xf]
    %v461 = vld [vmem:[%s2 + $0x5a0] sm:$0xf]
    %v462 = vld [vmem:[%s2 + $0x5a4] sm:$0xf]
    %v463 = vld [vmem:[%s2 + $0x5a8] sm:$0xf]
    %v464 = vld [vmem:[%s2 + $0x5ac] sm:$0xf]
    %v465 = vld [vmem:[%s2 + $0x5b0] sm:$0xf]
    %v466 = vld [vmem:[%s2 + $0x5b4] sm:$0xf]
    %v467 = vld [vmem:[%s2 + $0x5b8] sm:$0xf]
    %v468 = vld [vmem:[%s2 + $0x5bc] sm:$0xf]
    %v469 = vld [vmem:[%s2 + $0x5c0] sm:$0xf]
    %v470 = vld [vmem:[%s2 + $0x5c4] sm:$0xf]
    %v471 = vld [vmem:[%s2 + $0x5c8] sm:$0xf]
    %v472 = vld [vmem:[%s2 + $0x5cc] sm:$0xf]
    %v473 = vld [vmem:[%s2 + $0x5d0] sm:$0xf]
    %v474 = vld [vmem:[%s2 + $0x5d4] sm:$0xf]
    %v475 = vld [vmem:[%s2 + $0x5d8] sm:$0xf]
    %v476 = vld [vmem:[%s2 + $0x5dc] sm:$0xf]
    %v477 = vld [vmem:[%s2 + $0x5e0] sm:$0xf]
    %v478 = vld [vmem:[%s2 + $0x5e4] sm:$0xf]
    %v479 = vld [vmem:[%s2 + $0x5e8] sm:$0xf]
    %v480 = vld [vmem:[%s2 + $0x5ec] sm:$0xf]
    %v481 = vld [vmem:[%s2 + $0x5f0] sm:$0xf]
    %v482 = vld [vmem:[%s2 + $0x5f4] sm:$0xf]
    %v483 = vld [vmem:[%s2 + $0x5f8] sm:$0xf]
    %v484 = vld [vmem:[%s2 + $0x5fc] sm:$0xf]
    %v869 = vunpack.c.l.b16 %v101
    %v870 = vunpack.c.l.b16 %v102
    %v871 = vunpack.c.l.b16 %v103
    %v872 = vunpack.c.l.b16 %v104
    %v873 = vunpack.c.l.b16 %v105
    %v874 = vunpack.c.l.b16 %v106
    %v875 = vunpack.c.l.b16 %v107
    %v876 = vunpack.c.l.b16 %v108
    %v877 = vunpack.c.l.b16 %v109
    %v878 = vunpack.c.l.b16 %v110
    %v879 = vunpack.c.l.b16 %v111
    %v880 = vunpack.c.l.b16 %v112
    %v881 = vunpack.c.l.b16 %v113
    %v882 = vunpack.c.l.b16 %v114
    %v883 = vunpack.c.l.b16 %v115
    %v884 = vunpack.c.l.b16 %v116
    %v885 = vunpack.c.l.b16 %v117
    %v886 = vunpack.c.l.b16 %v118
    %v887 = vunpack.c.l.b16 %v119
    %v888 = vunpack.c.l.b16 %v120
    %v889 = vunpack.c.l.b16 %v121
    %v890 = vunpack.c.l.b16 %v122
    %v891 = vunpack.c.l.b16 %v123
    %v892 = vunpack.c.l.b16 %v124
    %v893 = vunpack.c.l.b16 %v125
    %v894 = vunpack.c.l.b16 %v126
    %v895 = vunpack.c.l.b16 %v127
    %v896 = vunpack.c.l.b16 %v128
    %v897 = vunpack.c.l.b16 %v129
    %v898 = vunpack.c.l.b16 %v130
    %v899 = vunpack.c.l.b16 %v131
    %v900 = vunpack.c.l.b16 %v132
    %v901 = vunpack.c.l.b16 %v133
    %v902 = vunpack.c.l.b16 %v134
    %v903 = vunpack.c.l.b16 %v135
    %v904 = vunpack.c.l.b16 %v136
    %v905 = vunpack.c.l.b16 %v137
    %v906 = vunpack.c.l.b16 %v138
    %v907 = vunpack.c.l.b16 %v139
    %v908 = vunpack.c.l.b16 %v140
    %v909 = vunpack.c.l.b16 %v141
    %v910 = vunpack.c.l.b16 %v142
    %v911 = vunpack.c.l.b16 %v143
    %v912 = vunpack.c.l.b16 %v144
    %v913 = vunpack.c.l.b16 %v145
    %v914 = vunpack.c.l.b16 %v146
    %v915 = vunpack.c.l.b16 %v147
    %v916 = vunpack.c.l.b16 %v148
    %v917 = vunpack.c.l.b16 %v149
    %v918 = vunpack.c.l.b16 %v150
    %v919 = vunpack.c.l.b16 %v151
    %v920 = vunpack.c.l.b16 %v152
    %v921 = vunpack.c.l.b16 %v153
    %v922 = vunpack.c.l.b16 %v154
    %v923 = vunpack.c.l.b16 %v155
    %v924 = vunpack.c.l.b16 %v156
    %v925 = vunpack.c.l.b16 %v157
    %v926 = vunpack.c.l.b16 %v158
    %v927 = vunpack.c.l.b16 %v159
    %v928 = vunpack.c.l.b16 %v160
    %v929 = vunpack.c.l.b16 %v161
    %v930 = vunpack.c.l.b16 %v162
    %v931 = vunpack.c.l.b16 %v163
    %v932 = vunpack.c.l.b16 %v164
    %v933 = vunpack.c.l.b16 %v165
    %v934 = vunpack.c.l.b16 %v166
    %v935 = vunpack.c.l.b16 %v167
    %v936 = vunpack.c.l.b16 %v168
    %v937 = vunpack.c.l.b16 %v169
    %v938 = vunpack.c.l.b16 %v170
    %v939 = vunpack.c.l.b16 %v171
    %v940 = vunpack.c.l.b16 %v172
    %v941 = vunpack.c.l.b16 %v173
    %v942 = vunpack.c.l.b16 %v174
    %v943 = vunpack.c.l.b16 %v175
    %v944 = vunpack.c.l.b16 %v176
    %v945 = vunpack.c.l.b16 %v177
    %v946 = vunpack.c.l.b16 %v178
    %v947 = vunpack.c.l.b16 %v179
    %v948 = vunpack.c.l.b16 %v180
    %v949 = vunpack.c.l.b16 %v181
    %v950 = vunpack.c.l.b16 %v182
    %v951 = vunpack.c.l.b16 %v183
    %v952 = vunpack.c.l.b16 %v184
    %v953 = vunpack.c.l.b16 %v185
    %v954 = vunpack.c.l.b16 %v186
    %v955 = vunpack.c.l.b16 %v187
    %v956 = vunpack.c.l.b16 %v188
    %v957 = vunpack.c.l.b16 %v189
    %v958 = vunpack.c.l.b16 %v190
    %v959 = vunpack.c.l.b16 %v191
    %v960 = vunpack.c.l.b16 %v192
    %v961 = vunpack.c.l.b16 %v193
    %v962 = vunpack.c.l.b16 %v194
    %v963 = vunpack.c.l.b16 %v195
    %v964 = vunpack.c.l.b16 %v196
    %v965 = vunpack.c.l.b16 %v197
    %v966 = vunpack.c.l.b16 %v198
    %v967 = vunpack.c.l.b16 %v199
    %v968 = vunpack.c.l.b16 %v200
    %v969 = vunpack.c.l.b16 %v201
    %v970 = vunpack.c.l.b16 %v202
    %v971 = vunpack.c.l.b16 %v203
    %v972 = vunpack.c.l.b16 %v204
    %v973 = vunpack.c.l.b16 %v205
    %v974 = vunpack.c.l.b16 %v206
    %v975 = vunpack.c.l.b16 %v207
    %v976 = vunpack.c.l.b16 %v208
    %v977 = vunpack.c.l.b16 %v209
    %v978 = vunpack.c.l.b16 %v210
    %v979 = vunpack.c.l.b16 %v211
    %v980 = vunpack.c.l.b16 %v212
    %v981 = vunpack.c.l.b16 %v213
    %v982 = vunpack.c.l.b16 %v214
    %v983 = vunpack.c.l.b16 %v215
    %v984 = vunpack.c.l.b16 %v216
    %v985 = vunpack.c.l.b16 %v217
    %v986 = vunpack.c.l.b16 %v218
    %v987 = vunpack.c.l.b16 %v219
    %v988 = vunpack.c.l.b16 %v220
    %v989 = vunpack.c.l.b16 %v221
    %v990 = vunpack.c.l.b16 %v222
    %v991 = vunpack.c.l.b16 %v223
    %v992 = vunpack.c.l.b16 %v224
    %v993 = vunpack.c.l.b16 %v225
    %v994 = vunpack.c.l.b16 %v226
    %v995 = vunpack.c.l.b16 %v227
    %v996 = vunpack.c.l.b16 %v228
    %v997 = vunpack.c.l.b16 %v229
    %v998 = vunpack.c.l.b16 %v230
    %v999 = vunpack.c.l.b16 %v231
    %v1000 = vunpack.c.l.b16 %v232
    %v1001 = vunpack.c.l.b16 %v233
    %v1002 = vunpack.c.l.b16 %v234
    %v1003 = vunpack.c.l.b16 %v235
    %v1004 = vunpack.c.l.b16 %v236
    %v1005 = vunpack.c.l.b16 %v237
    %v1006 = vunpack.c.l.b16 %v238
    %v1007 = vunpack.c.l.b16 %v239
    %v1008 = vunpack.c.l.b16 %v240
    %v1009 = vunpack.c.l.b16 %v241
    %v1010 = vunpack.c.l.b16 %v242
    %v1011 = vunpack.c.l.b16 %v243
    %v1012 = vunpack.c.l.b16 %v244
    %v1013 = vunpack.c.l.b16 %v245
    %v1014 = vunpack.c.l.b16 %v246
    %v1015 = vunpack.c.l.b16 %v247
    %v1016 = vunpack.c.l.b16 %v248
    %v1017 = vunpack.c.l.b16 %v249
    %v1018 = vunpack.c.l.b16 %v250
    %v1019 = vunpack.c.l.b16 %v251
    %v1020 = vunpack.c.l.b16 %v252
    %v1021 = vunpack.c.l.b16 %v253
    %v1022 = vunpack.c.l.b16 %v254
    %v1023 = vunpack.c.l.b16 %v255
    %v1024 = vunpack.c.l.b16 %v256
    %v1025 = vunpack.c.l.b16 %v257
    %v1026 = vunpack.c.l.b16 %v258
    %v1027 = vunpack.c.l.b16 %v259
    %v1028 = vunpack.c.l.b16 %v260
    %v1029 = vunpack.c.l.b16 %v261
    %v1030 = vunpack.c.l.b16 %v262
    %v1031 = vunpack.c.l.b16 %v263
    %v1032 = vunpack.c.l.b16 %v264
    %v1033 = vunpack.c.l.b16 %v265
    %v1034 = vunpack.c.l.b16 %v266
    %v1035 = vunpack.c.l.b16 %v267
    %v1036 = vunpack.c.l.b16 %v268
    %v1037 = vunpack.c.l.b16 %v269
    %v1038 = vunpack.c.l.b16 %v270
    %v1039 = vunpack.c.l.b16 %v271
    %v1040 = vunpack.c.l.b16 %v272
    %v1041 = vunpack.c.l.b16 %v273
    %v1042 = vunpack.c.l.b16 %v274
    %v1043 = vunpack.c.l.b16 %v275
    %v1044 = vunpack.c.l.b16 %v276
    %v1045 = vunpack.c.l.b16 %v277
    %v1046 = vunpack.c.l.b16 %v278
    %v1047 = vunpack.c.l.b16 %v279
    %v1048 = vunpack.c.l.b16 %v280
    %v1049 = vunpack.c.l.b16 %v281
    %v1050 = vunpack.c.l.b16 %v282
    %v1051 = vunpack.c.l.b16 %v283
    %v1052 = vunpack.c.l.b16 %v284
    %v1053 = vunpack.c.l.b16 %v285
    %v1054 = vunpack.c.l.b16 %v286
    %v1055 = vunpack.c.l.b16 %v287
    %v1056 = vunpack.c.l.b16 %v288
    %v1057 = vunpack.c.l.b16 %v289
    %v1058 = vunpack.c.l.b16 %v290
    %v1059 = vunpack.c.l.b16 %v291
    %v1060 = vunpack.c.l.b16 %v292
    %v1061 = vunpack.c.l.b16 %v293
    %v1062 = vunpack.c.l.b16 %v294
    %v1063 = vunpack.c.l.b16 %v295
    %v1064 = vunpack.c.l.b16 %v296
    %v1065 = vunpack.c.l.b16 %v297
    %v1066 = vunpack.c.l.b16 %v298
    %v1067 = vunpack.c.l.b16 %v299
    %v1068 = vunpack.c.l.b16 %v300
    %v1069 = vunpack.c.l.b16 %v301
    %v1070 = vunpack.c.l.b16 %v302
    %v1071 = vunpack.c.l.b16 %v303
    %v1072 = vunpack.c.l.b16 %v304
    %v1073 = vunpack.c.l.b16 %v305
    %v1074 = vunpack.c.l.b16 %v306
    %v1075 = vunpack.c.l.b16 %v307
    %v1076 = vunpack.c.l.b16 %v308
    %v1077 = vunpack.c.l.b16 %v309
    %v1078 = vunpack.c.l.b16 %v310
    %v1079 = vunpack.c.l.b16 %v311
    %v1080 = vunpack.c.l.b16 %v312
    %v1081 = vunpack.c.l.b16 %v313
    %v1082 = vunpack.c.l.b16 %v314
    %v1083 = vunpack.c.l.b16 %v315
    %v1084 = vunpack.c.l.b16 %v316
    %v1085 = vunpack.c.l.b16 %v317
    %v1086 = vunpack.c.l.b16 %v318
    %v1087 = vunpack.c.l.b16 %v319
    %v1088 = vunpack.c.l.b16 %v320
    %v1089 = vunpack.c.l.b16 %v321
    %v1090 = vunpack.c.l.b16 %v322
    %v1091 = vunpack.c.l.b16 %v323
    %v1092 = vunpack.c.l.b16 %v324
    %v1093 = vunpack.c.l.b16 %v325
    %v1094 = vunpack.c.l.b16 %v326
    %v1095 = vunpack.c.l.b16 %v327
    %v1096 = vunpack.c.l.b16 %v328
    %v1097 = vunpack.c.l.b16 %v329
    %v1098 = vunpack.c.l.b16 %v330
    %v1099 = vunpack.c.l.b16 %v331
    %v1100 = vunpack.c.l.b16 %v332
    %v1101 = vunpack.c.l.b16 %v333
    %v1102 = vunpack.c.l.b16 %v334
    %v1103 = vunpack.c.l.b16 %v335
    %v1104 = vunpack.c.l.b16 %v336
    %v1105 = vunpack.c.l.b16 %v337
    %v1106 = vunpack.c.l.b16 %v338
    %v1107 = vunpack.c.l.b16 %v339
    %v1108 = vunpack.c.l.b16 %v340
    %v1109 = vunpack.c.l.b16 %v341
    %v1110 = vunpack.c.l.b16 %v342
    %v1111 = vunpack.c.l.b16 %v343
    %v1112 = vunpack.c.l.b16 %v344
    %v1113 = vunpack.c.l.b16 %v345
    %v1114 = vunpack.c.l.b16 %v346
    %v1115 = vunpack.c.l.b16 %v347
    %v1116 = vunpack.c.l.b16 %v348
    %v1117 = vunpack.c.l.b16 %v349
    %v1118 = vunpack.c.l.b16 %v350
    %v1119 = vunpack.c.l.b16 %v351
    %v1120 = vunpack.c.l.b16 %v352
    %v1121 = vunpack.c.l.b16 %v353
    %v1122 = vunpack.c.l.b16 %v354
    %v1123 = vunpack.c.l.b16 %v355
    %v1124 = vunpack.c.l.b16 %v356
    %v1125 = vunpack.c.l.b16 %v357
    %v1126 = vunpack.c.l.b16 %v358
    %v1127 = vunpack.c.l.b16 %v359
    %v1128 = vunpack.c.l.b16 %v360
    %v1129 = vunpack.c.l.b16 %v361
    %v1130 = vunpack.c.l.b16 %v362
    %v1131 = vunpack.c.l.b16 %v363
    %v1132 = vunpack.c.l.b16 %v364
    %v1133 = vunpack.c.l.b16 %v365
    %v1134 = vunpack.c.l.b16 %v366
    %v1135 = vunpack.c.l.b16 %v367
    %v1136 = vunpack.c.l.b16 %v368
    %v1137 = vunpack.c.l.b16 %v369
    %v1138 = vunpack.c.l.b16 %v370
    %v1139 = vunpack.c.l.b16 %v371
    %v1140 = vunpack.c.l.b16 %v372
    %v1141 = vunpack.c.l.b16 %v373
    %v1142 = vunpack.c.l.b16 %v374
    %v1143 = vunpack.c.l.b16 %v375
    %v1144 = vunpack.c.l.b16 %v376
    %v1145 = vunpack.c.l.b16 %v377
    %v1146 = vunpack.c.l.b16 %v378
    %v1147 = vunpack.c.l.b16 %v379
    %v1148 = vunpack.c.l.b16 %v380
    %v1149 = vunpack.c.l.b16 %v381
    %v1150 = vunpack.c.l.b16 %v382
    %v1151 = vunpack.c.l.b16 %v383
    %v1152 = vunpack.c.l.b16 %v384
    %v1153 = vunpack.c.l.b16 %v385
    %v1154 = vunpack.c.l.b16 %v386
    %v1155 = vunpack.c.l.b16 %v387
    %v1156 = vunpack.c.l.b16 %v388
    %v1157 = vunpack.c.l.b16 %v389
    %v1158 = vunpack.c.l.b16 %v390
    %v1159 = vunpack.c.l.b16 %v391
    %v1160 = vunpack.c.l.b16 %v392
    %v1161 = vunpack.c.l.b16 %v393
    %v1162 = vunpack.c.l.b16 %v394
    %v1163 = vunpack.c.l.b16 %v395
    %v1164 = vunpack.c.l.b16 %v396
    %v1165 = vunpack.c.l.b16 %v397
    %v1166 = vunpack.c.l.b16 %v398
    %v1167 = vunpack.c.l.b16 %v399
    %v1168 = vunpack.c.l.b16 %v400
    %v1169 = vunpack.c.l.b16 %v401
    %v1170 = vunpack.c.l.b16 %v402
    %v1171 = vunpack.c.l.b16 %v403
    %v1172 = vunpack.c.l.b16 %v404
    %v1173 = vunpack.c.l.b16 %v405
    %v1174 = vunpack.c.l.b16 %v406
    %v1175 = vunpack.c.l.b16 %v407
    %v1176 = vunpack.c.l.b16 %v408
    %v1177 = vunpack.c.l.b16 %v409
    %v1178 = vunpack.c.l.b16 %v410
    %v1179 = vunpack.c.l.b16 %v411
    %v1180 = vunpack.c.l.b16 %v412
    %v1181 = vunpack.c.l.b16 %v413
    %v1182 = vunpack.c.l.b16 %v414
    %v1183 = vunpack.c.l.b16 %v415
    %v1184 = vunpack.c.l.b16 %v416
    %v1185 = vunpack.c.l.b16 %v417
    %v1186 = vunpack.c.l.b16 %v418
    %v1187 = vunpack.c.l.b16 %v419
    %v1188 = vunpack.c.l.b16 %v420
    %v1189 = vunpack.c.l.b16 %v421
    %v1190 = vunpack.c.l.b16 %v422
    %v1191 = vunpack.c.l.b16 %v423
    %v1192 = vunpack.c.l.b16 %v424
    %v1193 = vunpack.c.l.b16 %v425
    %v1194 = vunpack.c.l.b16 %v426
    %v1195 = vunpack.c.l.b16 %v427
    %v1196 = vunpack.c.l.b16 %v428
    %v1197 = vunpack.c.l.b16 %v429
    %v1198 = vunpack.c.l.b16 %v430
    %v1199 = vunpack.c.l.b16 %v431
    %v1200 = vunpack.c.l.b16 %v432
    %v1201 = vunpack.c.l.b16 %v433
    %v1202 = vunpack.c.l.b16 %v434
    %v1203 = vunpack.c.l.b16 %v435
    %v1204 = vunpack.c.l.b16 %v436
    %v1205 = vunpack.c.l.b16 %v437
    %v1206 = vunpack.c.l.b16 %v438
    %v1207 = vunpack.c.l.b16 %v439
    %v1208 = vunpack.c.l.b16 %v440
    %v1209 = vunpack.c.l.b16 %v441
    %v1210 = vunpack.c.l.b16 %v442
    %v1211 = vunpack.c.l.b16 %v443
    %v1212 = vunpack.c.l.b16 %v444
    %v1213 = vunpack.c.l.b16 %v445
    %v1214 = vunpack.c.l.b16 %v446
    %v1215 = vunpack.c.l.b16 %v447
    %v1216 = vunpack.c.l.b16 %v448
    %v1217 = vunpack.c.l.b16 %v449
    %v1218 = vunpack.c.l.b16 %v450
    %v1219 = vunpack.c.l.b16 %v451
    %v1220 = vunpack.c.l.b16 %v452
    %v1221 = vunpack.c.l.b16 %v453
    %v1222 = vunpack.c.l.b16 %v454
    %v1223 = vunpack.c.l.b16 %v455
    %v1224 = vunpack.c.l.b16 %v456
    %v1225 = vunpack.c.l.b16 %v457
    %v1226 = vunpack.c.l.b16 %v458
    %v1227 = vunpack.c.l.b16 %v459
    %v1228 = vunpack.c.l.b16 %v460
    %v1229 = vunpack.c.l.b16 %v461
    %v1230 = vunpack.c.l.b16 %v462
    %v1231 = vunpack.c.l.b16 %v463
    %v1232 = vunpack.c.l.b16 %v464
    %v1233 = vunpack.c.l.b16 %v465
    %v1234 = vunpack.c.l.b16 %v466
    %v1235 = vunpack.c.l.b16 %v467
    %v1236 = vunpack.c.l.b16 %v468
    %v1237 = vunpack.c.l.b16 %v469
    %v1238 = vunpack.c.l.b16 %v470
    %v1239 = vunpack.c.l.b16 %v471
    %v1240 = vunpack.c.l.b16 %v472
    %v1241 = vunpack.c.l.b16 %v473
    %v1242 = vunpack.c.l.b16 %v474
    %v1243 = vunpack.c.l.b16 %v475
    %v1244 = vunpack.c.l.b16 %v476
    %v1245 = vunpack.c.l.b16 %v477
    %v1246 = vunpack.c.l.b16 %v478
    %v1247 = vunpack.c.l.b16 %v479
    %v1248 = vunpack.c.l.b16 %v480
    %v1249 = vunpack.c.l.b16 %v481
    %v1250 = vunpack.c.l.b16 %v482
    %v1251 = vunpack.c.l.b16 %v483
    %v1252 = vunpack.c.l.b16 %v484
    %v1253 = vpack.c.b16 %v870, %v869
    %v1254 = vpack.c.b16 %v872, %v871
    %v1255 = vpack.c.b16 %v874, %v873
    %v1256 = vpack.c.b16 %v876, %v875
    %v1257 = vpack.c.b16 %v878, %v877
    %v1258 = vpack.c.b16 %v880, %v879
    %v1259 = vpack.c.b16 %v882, %v881
    %v1260 = vpack.c.b16 %v884, %v883
    %v1261 = vpack.c.b16 %v886, %v885
    %v1262 = vpack.c.b16 %v888, %v887
    %v1263 = vpack.c.b16 %v890, %v889
    %v1264 = vpack.c.b16 %v892, %v891
    %v1265 = vpack.c.b16 %v894, %v893
    %v1266 = vpack.c.b16 %v896, %v895
    %v1267 = vpack.c.b16 %v898, %v897
    %v1268 = vpack.c.b16 %v900, %v899
    %v1269 = vpack.c.b16 %v902, %v901
    %v1270 = vpack.c.b16 %v904, %v903
    %v1271 = vpack.c.b16 %v906, %v905
    %v1272 = vpack.c.b16 %v908, %v907
    %v1273 = vpack.c.b16 %v910, %v909
    %v1274 = vpack.c.b16 %v912, %v911
    %v1275 = vpack.c.b16 %v914, %v913
    %v1276 = vpack.c.b16 %v916, %v915
    %v1277 = vpack.c.b16 %v918, %v917
    %v1278 = vpack.c.b16 %v920, %v919
    %v1279 = vpack.c.b16 %v922, %v921
    %v1280 = vpack.c.b16 %v924, %v923
    %v1281 = vpack.c.b16 %v926, %v925
    %v1282 = vpack.c.b16 %v928, %v927
    %v1283 = vpack.c.b16 %v930, %v929
    %v1284 = vpack.c.b16 %v932, %v931
    %v1285 = vpack.c.b16 %v934, %v933
    %v1286 = vpack.c.b16 %v936, %v935
    %v1287 = vpack.c.b16 %v938, %v937
    %v1288 = vpack.c.b16 %v940, %v939
    %v1289 = vpack.c.b16 %v942, %v941
    %v1290 = vpack.c.b16 %v944, %v943
    %v1291 = vpack.c.b16 %v946, %v945
    %v1292 = vpack.c.b16 %v948, %v947
    %v1293 = vpack.c.b16 %v950, %v949
    %v1294 = vpack.c.b16 %v952, %v951
    %v1295 = vpack.c.b16 %v954, %v953
    %v1296 = vpack.c.b16 %v956, %v955
    %v1297 = vpack.c.b16 %v958, %v957
    %v1298 = vpack.c.b16 %v960, %v959
    %v1299 = vpack.c.b16 %v962, %v961
    %v1300 = vpack.c.b16 %v964, %v963
    %v1301 = vpack.c.b16 %v966, %v965
    %v1302 = vpack.c.b16 %v968, %v967
    %v1303 = vpack.c.b16 %v970, %v969
    %v1304 = vpack.c.b16 %v972, %v971
    %v1305 = vpack.c.b16 %v974, %v973
    %v1306 = vpack.c.b16 %v976, %v975
    %v1307 = vpack.c.b16 %v978, %v977
    %v1308 = vpack.c.b16 %v980, %v979
    %v1309 = vpack.c.b16 %v982, %v981
    %v1310 = vpack.c.b16 %v984, %v983
    %v1311 = vpack.c.b16 %v986, %v985
    %v1312 = vpack.c.b16 %v988, %v987
    %v1313 = vpack.c.b16 %v990, %v989
    %v1314 = vpack.c.b16 %v992, %v991
    %v1315 = vpack.c.b16 %v994, %v993
    %v1316 = vpack.c.b16 %v996, %v995
    %v1317 = vpack.c.b16 %v998, %v997
    %v1318 = vpack.c.b16 %v1000, %v999
    %v1319 = vpack.c.b16 %v1002, %v1001
    %v1320 = vpack.c.b16 %v1004, %v1003
    %v1321 = vpack.c.b16 %v1006, %v1005
    %v1322 = vpack.c.b16 %v1008, %v1007
    %v1323 = vpack.c.b16 %v1010, %v1009
    %v1324 = vpack.c.b16 %v1012, %v1011
    %v1325 = vpack.c.b16 %v1014, %v1013
    %v1326 = vpack.c.b16 %v1016, %v1015
    %v1327 = vpack.c.b16 %v1018, %v1017
    %v1328 = vpack.c.b16 %v1020, %v1019
    %v1329 = vpack.c.b16 %v1022, %v1021
    %v1330 = vpack.c.b16 %v1024, %v1023
    %v1331 = vpack.c.b16 %v1026, %v1025
    %v1332 = vpack.c.b16 %v1028, %v1027
    %v1333 = vpack.c.b16 %v1030, %v1029
    %v1334 = vpack.c.b16 %v1032, %v1031
    %v1335 = vpack.c.b16 %v1034, %v1033
    %v1336 = vpack.c.b16 %v1036, %v1035
    %v1337 = vpack.c.b16 %v1038, %v1037
    %v1338 = vpack.c.b16 %v1040, %v1039
    %v1339 = vpack.c.b16 %v1042, %v1041
    %v1340 = vpack.c.b16 %v1044, %v1043
    %v1341 = vpack.c.b16 %v1046, %v1045
    %v1342 = vpack.c.b16 %v1048, %v1047
    %v1343 = vpack.c.b16 %v1050, %v1049
    %v1344 = vpack.c.b16 %v1052, %v1051
    %v1345 = vpack.c.b16 %v1054, %v1053
    %v1346 = vpack.c.b16 %v1056, %v1055
    %v1347 = vpack.c.b16 %v1058, %v1057
    %v1348 = vpack.c.b16 %v1060, %v1059
    %v1349 = vpack.c.b16 %v1062, %v1061
    %v1350 = vpack.c.b16 %v1064, %v1063
    %v1351 = vpack.c.b16 %v1066, %v1065
    %v1352 = vpack.c.b16 %v1068, %v1067
    %v1353 = vpack.c.b16 %v1070, %v1069
    %v1354 = vpack.c.b16 %v1072, %v1071
    %v1355 = vpack.c.b16 %v1074, %v1073
    %v1356 = vpack.c.b16 %v1076, %v1075
    %v1357 = vpack.c.b16 %v1078, %v1077
    %v1358 = vpack.c.b16 %v1080, %v1079
    %v1359 = vpack.c.b16 %v1082, %v1081
    %v1360 = vpack.c.b16 %v1084, %v1083
    %v1361 = vpack.c.b16 %v1086, %v1085
    %v1362 = vpack.c.b16 %v1088, %v1087
    %v1363 = vpack.c.b16 %v1090, %v1089
    %v1364 = vpack.c.b16 %v1092, %v1091
    %v1365 = vpack.c.b16 %v1094, %v1093
    %v1366 = vpack.c.b16 %v1096, %v1095
    %v1367 = vpack.c.b16 %v1098, %v1097
    %v1368 = vpack.c.b16 %v1100, %v1099
    %v1369 = vpack.c.b16 %v1102, %v1101
    %v1370 = vpack.c.b16 %v1104, %v1103
    %v1371 = vpack.c.b16 %v1106, %v1105
    %v1372 = vpack.c.b16 %v1108, %v1107
    %v1373 = vpack.c.b16 %v1110, %v1109
    %v1374 = vpack.c.b16 %v1112, %v1111
    %v1375 = vpack.c.b16 %v1114, %v1113
    %v1376 = vpack.c.b16 %v1116, %v1115
    %v1377 = vpack.c.b16 %v1118, %v1117
    %v1378 = vpack.c.b16 %v1120, %v1119
    %v1379 = vpack.c.b16 %v1122, %v1121
    %v1380 = vpack.c.b16 %v1124, %v1123
    %v1381 = vpack.c.b16 %v1126, %v1125
    %v1382 = vpack.c.b16 %v1128, %v1127
    %v1383 = vpack.c.b16 %v1130, %v1129
    %v1384 = vpack.c.b16 %v1132, %v1131
    %v1385 = vpack.c.b16 %v1134, %v1133
    %v1386 = vpack.c.b16 %v1136, %v1135
    %v1387 = vpack.c.b16 %v1138, %v1137
    %v1388 = vpack.c.b16 %v1140, %v1139
    %v1389 = vpack.c.b16 %v1142, %v1141
    %v1390 = vpack.c.b16 %v1144, %v1143
    %v1391 = vpack.c.b16 %v1146, %v1145
    %v1392 = vpack.c.b16 %v1148, %v1147
    %v1393 = vpack.c.b16 %v1150, %v1149
    %v1394 = vpack.c.b16 %v1152, %v1151
    %v1395 = vpack.c.b16 %v1154, %v1153
    %v1396 = vpack.c.b16 %v1156, %v1155
    %v1397 = vpack.c.b16 %v1158, %v1157
    %v1398 = vpack.c.b16 %v1160, %v1159
    %v1399 = vpack.c.b16 %v1162, %v1161
    %v1400 = vpack.c.b16 %v1164, %v1163
    %v1401 = vpack.c.b16 %v1166, %v1165
    %v1402 = vpack.c.b16 %v1168, %v1167
    %v1403 = vpack.c.b16 %v1170, %v1169
    %v1404 = vpack.c.b16 %v1172, %v1171
    %v1405 = vpack.c.b16 %v1174, %v1173
    %v1406 = vpack.c.b16 %v1176, %v1175
    %v1407 = vpack.c.b16 %v1178, %v1177
    %v1408 = vpack.c.b16 %v1180, %v1179
    %v1409 = vpack.c.b16 %v1182, %v1181
    %v1410 = vpack.c.b16 %v1184, %v1183
    %v1411 = vpack.c.b16 %v1186, %v1185
    %v1412 = vpack.c.b16 %v1188, %v1187
    %v1413 = vpack.c.b16 %v1190, %v1189
    %v1414 = vpack.c.b16 %v1192, %v1191
    %v1415 = vpack.c.b16 %v1194, %v1193
    %v1416 = vpack.c.b16 %v1196, %v1195
    %v1417 = vpack.c.b16 %v1198, %v1197
    %v1418 = vpack.c.b16 %v1200, %v1199
    %v1419 = vpack.c.b16 %v1202, %v1201
    %v1420 = vpack.c.b16 %v1204, %v1203
    %v1421 = vpack.c.b16 %v1206, %v1205
    %v1422 = vpack.c.b16 %v1208, %v1207
    %v1423 = vpack.c.b16 %v1210, %v1209
    %v1424 = vpack.c.b16 %v1212, %v1211
    %v1425 = vpack.c.b16 %v1214, %v1213
    %v1426 = vpack.c.b16 %v1216, %v1215
    %v1427 = vpack.c.b16 %v1218, %v1217
    %v1428 = vpack.c.b16 %v1220, %v1219
    %v1429 = vpack.c.b16 %v1222, %v1221
    %v1430 = vpack.c.b16 %v1224, %v1223
    %v1431 = vpack.c.b16 %v1226, %v1225
    %v1432 = vpack.c.b16 %v1228, %v1227
    %v1433 = vpack.c.b16 %v1230, %v1229
    %v1434 = vpack.c.b16 %v1232, %v1231
    %v1435 = vpack.c.b16 %v1234, %v1233
    %v1436 = vpack.c.b16 %v1236, %v1235
    %v1437 = vpack.c.b16 %v1238, %v1237
    %v1438 = vpack.c.b16 %v1240, %v1239
    %v1439 = vpack.c.b16 %v1242, %v1241
    %v1440 = vpack.c.b16 %v1244, %v1243
    %v1441 = vpack.c.b16 %v1246, %v1245
    %v1442 = vpack.c.b16 %v1248, %v1247
    %v1443 = vpack.c.b16 %v1250, %v1249
    %v1444 = vpack.c.b16 %v1252, %v1251
    %1637 = vmatprep.subr.bf16.mxu0 0
    %1638 = vmatpush1.bf16.msra.mxu0 %v1253
    %1639 = vmatprep.subr.bf16.mxu0 0
    %1640 = vmatpush1.bf16.msra.mxu0 %v1254
    %1641 = vmatprep.subr.bf16.mxu0 0
    %1642 = vmatpush1.bf16.msra.mxu0 %v1255
    %1643 = vmatprep.subr.bf16.mxu0 0
    %1644 = vmatpush1.bf16.msra.mxu0 %v1256
    %1645 = vmatprep.subr.bf16.mxu0 0
    %1646 = vmatpush1.bf16.msra.mxu0 %v1257
    %1647 = vmatprep.subr.bf16.mxu0 0
    %1648 = vmatpush1.bf16.msra.mxu0 %v1258
    %1649 = vmatprep.subr.bf16.mxu0 0
    %1650 = vmatpush1.bf16.msra.mxu0 %v1259
    %1651 = vmatprep.subr.bf16.mxu0 0
    %1652 = vmatpush1.bf16.msra.mxu0 %v1260
    %1653 = vmatprep.subr.bf16.mxu0 0
    %1654 = vmatpush1.bf16.msra.mxu0 %v1261
    %1655 = vmatprep.subr.bf16.mxu0 0
    %1656 = vmatpush1.bf16.msra.mxu0 %v1262
    %1657 = vmatprep.subr.bf16.mxu0 0
    %1658 = vmatpush1.bf16.msra.mxu0 %v1263
    %1659 = vmatprep.subr.bf16.mxu0 0
    %1660 = vmatpush1.bf16.msra.mxu0 %v1264
    %1661 = vmatprep.subr.bf16.mxu0 0
    %1662 = vmatpush1.bf16.msra.mxu0 %v1265
    %1663 = vmatprep.subr.bf16.mxu0 0
    %1664 = vmatpush1.bf16.msra.mxu0 %v1266
    %1665 = vmatprep.subr.bf16.mxu0 0
    %1666 = vmatpush1.bf16.msra.mxu0 %v1267
    %1667 = vmatprep.subr.bf16.mxu0 0
    %1668 = vmatpush1.bf16.msra.mxu0 %v1268
    %1669 = vmatprep.mubr.bf16.mxu0 %v78
    %1670 = vmatmul.mubr.bf16.gmra.mrb[0].mxu0 %v77
    %v1671 = vpop.f32.mrb[0].mxu0
    %v1672 = vadd.f32 0.0, %v1671
    %v1673 = vpop.f32.mrb[0].mxu0
    %v1674 = vpop.f32.mrb[0].mxu0
    %v1675 = vpop.f32.mrb[0].mxu0
    %1676 = vdwg.mxu0
    %1677 = vmatprep.subr.bf16.mxu0 0
    %1678 = vmatpush1.bf16.msra.mxu0 %v1269
    %1679 = vmatprep.subr.bf16.mxu0 0
    %1680 = vmatpush1.bf16.msra.mxu0 %v1270
    %1681 = vmatprep.subr.bf16.mxu0 0
    %1682 = vmatpush1.bf16.msra.mxu0 %v1271
    %1683 = vmatprep.subr.bf16.mxu0 0
    %1684 = vmatpush1.bf16.msra.mxu0 %v1272
    %1685 = vmatprep.subr.bf16.mxu0 0
    %1686 = vmatpush1.bf16.msra.mxu0 %v1273
    %1687 = vmatprep.subr.bf16.mxu0 0
    %1688 = vmatpush1.bf16.msra.mxu0 %v1274
    %1689 = vmatprep.subr.bf16.mxu0 0
    %1690 = vmatpush1.bf16.msra.mxu0 %v1275
    %1691 = vmatprep.subr.bf16.mxu0 0
    %1692 = vmatpush1.bf16.msra.mxu0 %v1276
    %1693 = vmatprep.subr.bf16.mxu0 0
    %1694 = vmatpush1.bf16.msra.mxu0 %v1277
    %1695 = vmatprep.subr.bf16.mxu0 0
    %1696 = vmatpush1.bf16.msra.mxu0 %v1278
    %1697 = vmatprep.subr.bf16.mxu0 0
    %1698 = vmatpush1.bf16.msra.mxu0 %v1279
    %1699 = vmatprep.subr.bf16.mxu0 0
    %1700 = vmatpush1.bf16.msra.mxu0 %v1280
    %1701 = vmatprep.subr.bf16.mxu0 0
    %1702 = vmatpush1.bf16.msra.mxu0 %v1281
    %1703 = vmatprep.subr.bf16.mxu0 0
    %1704 = vmatpush1.bf16.msra.mxu0 %v1282
    %1705 = vmatprep.subr.bf16.mxu0 0
    %1706 = vmatpush1.bf16.msra.mxu0 %v1283
    %1707 = vmatprep.subr.bf16.mxu0 0
    %1708 = vmatpush1.bf16.msra.mxu0 %v1284
    %1709 = vmatprep.mubr.bf16.mxu0 %v80
    %1710 = vmatmul.mubr.bf16.gmra.mrb[0].mxu0 %v79
    %v1711 = vpop.f32.mrb[0].mxu0
    %v1712 = vadd.f32 %v1672, %v1711
    %v1713 = vpop.f32.mrb[0].mxu0
    %v1714 = vpop.f32.mrb[0].mxu0
    %v1715 = vpop.f32.mrb[0].mxu0
    %1716 = vdwg.mxu0
    %1717 = vmatprep.subr.bf16.mxu0 0
    %1718 = vmatpush1.bf16.msra.mxu0 %v1285
    %1719 = vmatprep.subr.bf16.mxu0 0
    %1720 = vmatpush1.bf16.msra.mxu0 %v1286
    %1721 = vmatprep.subr.bf16.mxu0 0
    %1722 = vmatpush1.bf16.msra.mxu0 %v1287
    %1723 = vmatprep.subr.bf16.mxu0 0
    %1724 = vmatpush1.bf16.msra.mxu0 %v1288
    %1725 = vmatprep.subr.bf16.mxu0 0
    %1726 = vmatpush1.bf16.msra.mxu0 %v1289
    %1727 = vmatprep.subr.bf16.mxu0 0
    %1728 = vmatpush1.bf16.msra.mxu0 %v1290
    %1729 = vmatprep.subr.bf16.mxu0 0
    %1730 = vmatpush1.bf16.msra.mxu0 %v1291
    %1731 = vmatprep.subr.bf16.mxu0 0
    %1732 = vmatpush1.bf16.msra.mxu0 %v1292
    %1733 = vmatprep.subr.bf16.mxu0 0
    %1734 = vmatpush1.bf16.msra.mxu0 %v1293
    %1735 = vmatprep.subr.bf16.mxu0 0
    %1736 = vmatpush1.bf16.msra.mxu0 %v1294
    %1737 = vmatprep.subr.bf16.mxu0 0
    %1738 = vmatpush1.bf16.msra.mxu0 %v1295
    %1739 = vmatprep.subr.bf16.mxu0 0
    %1740 = vmatpush1.bf16.msra.mxu0 %v1296
    %1741 = vmatprep.subr.bf16.mxu0 0
    %1742 = vmatpush1.bf16.msra.mxu0 %v1297
    %1743 = vmatprep.subr.bf16.mxu0 0
    %1744 = vmatpush1.bf16.msra.mxu0 %v1298
    %1745 = vmatprep.subr.bf16.mxu0 0
    %1746 = vmatpush1.bf16.msra.mxu0 %v1299
    %1747 = vmatprep.subr.bf16.mxu0 0
    %1748 = vmatpush1.bf16.msra.mxu0 %v1300
    %1749 = vmatprep.mubr.bf16.mxu0 %v82
    %1750 = vmatmul.mubr.bf16.gmra.mrb[0].mxu0 %v81
    %v1751 = vpop.f32.mrb[0].mxu0
    %v1752 = vadd.f32 %v1712, %v1751
    %v1753 = vpop.f32.mrb[0].mxu0
    %v1754 = vpop.f32.mrb[0].mxu0
    %v1755 = vpop.f32.mrb[0].mxu0
    %1756 = vdwg.mxu0
    %1757 = vmatprep.subr.bf16.mxu0 0
    %1758 = vmatpush1.bf16.msra.mxu0 %v1301
    %1759 = vmatprep.subr.bf16.mxu0 0
    %1760 = vmatpush1.bf16.msra.mxu0 %v1302
    %1761 = vmatprep.subr.bf16.mxu0 0
    %1762 = vmatpush1.bf16.msra.mxu0 %v1303
    %1763 = vmatprep.subr.bf16.mxu0 0
    %1764 = vmatpush1.bf16.msra.mxu0 %v1304
    %1765 = vmatprep.subr.bf16.mxu0 0
    %1766 = vmatpush1.bf16.msra.mxu0 %v1305
    %1767 = vmatprep.subr.bf16.mxu0 0
    %1768 = vmatpush1.bf16.msra.mxu0 %v1306
    %1769 = vmatprep.subr.bf16.mxu0 0
    %1770 = vmatpush1.bf16.msra.mxu0 %v1307
    %1771 = vmatprep.subr.bf16.mxu0 0
    %1772 = vmatpush1.bf16.msra.mxu0 %v1308
    %1773 = vmatprep.subr.bf16.mxu0 0
    %1774 = vmatpush1.bf16.msra.mxu0 %v1309
    %1775 = vmatprep.subr.bf16.mxu0 0
    %1776 = vmatpush1.bf16.msra.mxu0 %v1310
    %1777 = vmatprep.subr.bf16.mxu0 0
    %1778 = vmatpush1.bf16.msra.mxu0 %v1311
    %1779 = vmatprep.subr.bf16.mxu0 0
    %1780 = vmatpush1.bf16.msra.mxu0 %v1312
    %1781 = vmatprep.subr.bf16.mxu0 0
    %1782 = vmatpush1.bf16.msra.mxu0 %v1313
    %1783 = vmatprep.subr.bf16.mxu0 0
    %1784 = vmatpush1.bf16.msra.mxu0 %v1314
    %1785 = vmatprep.subr.bf16.mxu0 0
    %1786 = vmatpush1.bf16.msra.mxu0 %v1315
    %1787 = vmatprep.subr.bf16.mxu0 0
    %1788 = vmatpush1.bf16.msra.mxu0 %v1316
    %1789 = vmatprep.mubr.bf16.mxu0 %v84
    %1790 = vmatmul.mubr.bf16.gmra.mrb[0].mxu0 %v83
    %v1791 = vpop.f32.mrb[0].mxu0
    %v1792 = vadd.f32 %v1752, %v1791
    %v1793 = vpop.f32.mrb[0].mxu0
    %v1794 = vpop.f32.mrb[0].mxu0
    %v1795 = vpop.f32.mrb[0].mxu0
    %1796 = vdwg.mxu0
    %1797 = vmatprep.subr.bf16.mxu0 0
    %1798 = vmatpush1.bf16.msra.mxu0 %v1317
    %1799 = vmatprep.subr.bf16.mxu0 0
    %1800 = vmatpush1.bf16.msra.mxu0 %v1318
    %1801 = vmatprep.subr.bf16.mxu0 0
    %1802 = vmatpush1.bf16.msra.mxu0 %v1319
    %1803 = vmatprep.subr.bf16.mxu0 0
    %1804 = vmatpush1.bf16.msra.mxu0 %v1320
    %1805 = vmatprep.subr.bf16.mxu0 0
    %1806 = vmatpush1.bf16.msra.mxu0 %v1321
    %1807 = vmatprep.subr.bf16.mxu0 0
    %1808 = vmatpush1.bf16.msra.mxu0 %v1322
    %1809 = vmatprep.subr.bf16.mxu0 0
    %1810 = vmatpush1.bf16.msra.mxu0 %v1323
    %1811 = vmatprep.subr.bf16.mxu0 0
    %1812 = vmatpush1.bf16.msra.mxu0 %v1324
    %1813 = vmatprep.subr.bf16.mxu0 0
    %1814 = vmatpush1.bf16.msra.mxu0 %v1325
    %1815 = vmatprep.subr.bf16.mxu0 0
    %1816 = vmatpush1.bf16.msra.mxu0 %v1326
    %1817 = vmatprep.subr.bf16.mxu0 0
    %1818 = vmatpush1.bf16.msra.mxu0 %v1327
    %1819 = vmatprep.subr.bf16.mxu0 0
    %1820 = vmatpush1.bf16.msra.mxu0 %v1328
    %1821 = vmatprep.subr.bf16.mxu0 0
    %1822 = vmatpush1.bf16.msra.mxu0 %v1329
    %1823 = vmatprep.subr.bf16.mxu0 0
    %1824 = vmatpush1.bf16.msra.mxu0 %v1330
    %1825 = vmatprep.subr.bf16.mxu0 0
    %1826 = vmatpush1.bf16.msra.mxu0 %v1331
    %1827 = vmatprep.subr.bf16.mxu0 0
    %1828 = vmatpush1.bf16.msra.mxu0 %v1332
    %1829 = vmatprep.mubr.bf16.mxu0 %v86
    %1830 = vmatmul.mubr.bf16.gmra.mrb[0].mxu0 %v85
    %v1831 = vpop.f32.mrb[0].mxu0
    %v1832 = vadd.f32 %v1792, %v1831
    %v1833 = vpop.f32.mrb[0].mxu0
    %v1834 = vpop.f32.mrb[0].mxu0
    %v1835 = vpop.f32.mrb[0].mxu0
    %1836 = vdwg.mxu0
    %1837 = vmatprep.subr.bf16.mxu0 0
    %1838 = vmatpush1.bf16.msra.mxu0 %v1333
    %1839 = vmatprep.subr.bf16.mxu0 0
    %1840 = vmatpush1.bf16.msra.mxu0 %v1334
    %1841 = vmatprep.subr.bf16.mxu0 0
    %1842 = vmatpush1.bf16.msra.mxu0 %v1335
    %1843 = vmatprep.subr.bf16.mxu0 0
    %1844 = vmatpush1.bf16.msra.mxu0 %v1336
    %1845 = vmatprep.subr.bf16.mxu0 0
    %1846 = vmatpush1.bf16.msra.mxu0 %v1337
    %1847 = vmatprep.subr.bf16.mxu0 0
    %1848 = vmatpush1.bf16.msra.mxu0 %v1338
    %1849 = vmatprep.subr.bf16.mxu0 0
    %1850 = vmatpush1.bf16.msra.mxu0 %v1339
    %1851 = vmatprep.subr.bf16.mxu0 0
    %1852 = vmatpush1.bf16.msra.mxu0 %v1340
    %1853 = vmatprep.subr.bf16.mxu0 0
    %1854 = vmatpush1.bf16.msra.mxu0 %v1341
    %1855 = vmatprep.subr.bf16.mxu0 0
    %1856 = vmatpush1.bf16.msra.mxu0 %v1342
    %1857 = vmatprep.subr.bf16.mxu0 0
    %1858 = vmatpush1.bf16.msra.mxu0 %v1343
    %1859 = vmatprep.subr.bf16.mxu0 0
    %1860 = vmatpush1.bf16.msra.mxu0 %v1344
    %1861 = vmatprep.subr.bf16.mxu0 0
    %1862 = vmatpush1.bf16.msra.mxu0 %v1345
    %1863 = vmatprep.subr.bf16.mxu0 0
    %1864 = vmatpush1.bf16.msra.mxu0 %v1346
    %1865 = vmatprep.subr.bf16.mxu0 0
    %1866 = vmatpush1.bf16.msra.mxu0 %v1347
    %1867 = vmatprep.subr.bf16.mxu0 0
    %1868 = vmatpush1.bf16.msra.mxu0 %v1348
    %1869 = vmatprep.mubr.bf16.mxu0 %v88
    %1870 = vmatmul.mubr.bf16.gmra.mrb[0].mxu0 %v87
    %v1871 = vpop.f32.mrb[0].mxu0
    %v1872 = vadd.f32 %v1832, %v1871
    %v1873 = vpop.f32.mrb[0].mxu0
    %v1874 = vpop.f32.mrb[0].mxu0
    %v1875 = vpop.f32.mrb[0].mxu0
    %1876 = vdwg.mxu0
    %1877 = vmatprep.subr.bf16.mxu0 0
    %1878 = vmatpush1.bf16.msra.mxu0 %v1349
    %1879 = vmatprep.subr.bf16.mxu0 0
    %1880 = vmatpush1.bf16.msra.mxu0 %v1350
    %1881 = vmatprep.subr.bf16.mxu0 0
    %1882 = vmatpush1.bf16.msra.mxu0 %v1351
    %1883 = vmatprep.subr.bf16.mxu0 0
    %1884 = vmatpush1.bf16.msra.mxu0 %v1352
    %1885 = vmatprep.subr.bf16.mxu0 0
    %1886 = vmatpush1.bf16.msra.mxu0 %v1353
    %1887 = vmatprep.subr.bf16.mxu0 0
    %1888 = vmatpush1.bf16.msra.mxu0 %v1354
    %1889 = vmatprep.subr.bf16.mxu0 0
    %1890 = vmatpush1.bf16.msra.mxu0 %v1355
    %1891 = vmatprep.subr.bf16.mxu0 0
    %1892 = vmatpush1.bf16.msra.mxu0 %v1356
    %1893 = vmatprep.subr.bf16.mxu0 0
    %1894 = vmatpush1.bf16.msra.mxu0 %v1357
    %1895 = vmatprep.subr.bf16.mxu0 0
    %1896 = vmatpush1.bf16.msra.mxu0 %v1358
    %1897 = vmatprep.subr.bf16.mxu0 0
    %1898 = vmatpush1.bf16.msra.mxu0 %v1359
    %1899 = vmatprep.subr.bf16.mxu0 0
    %1900 = vmatpush1.bf16.msra.mxu0 %v1360
    %1901 = vmatprep.subr.bf16.mxu0 0
    %1902 = vmatpush1.bf16.msra.mxu0 %v1361
    %1903 = vmatprep.subr.bf16.mxu0 0
    %1904 = vmatpush1.bf16.msra.mxu0 %v1362
    %1905 = vmatprep.subr.bf16.mxu0 0
    %1906 = vmatpush1.bf16.msra.mxu0 %v1363
    %1907 = vmatprep.subr.bf16.mxu0 0
    %1908 = vmatpush1.bf16.msra.mxu0 %v1364
    %1909 = vmatprep.mubr.bf16.mxu0 %v90
    %1910 = vmatmul.mubr.bf16.gmra.mrb[0].mxu0 %v89
    %v1911 = vpop.f32.mrb[0].mxu0
    %v1912 = vadd.f32 %v1872, %v1911
    %v1913 = vpop.f32.mrb[0].mxu0
    %v1914 = vpop.f32.mrb[0].mxu0
    %v1915 = vpop.f32.mrb[0].mxu0
    %1916 = vdwg.mxu0
    %1917 = vmatprep.subr.bf16.mxu0 0
    %1918 = vmatpush1.bf16.msra.mxu0 %v1365
    %1919 = vmatprep.subr.bf16.mxu0 0
    %1920 = vmatpush1.bf16.msra.mxu0 %v1366
    %1921 = vmatprep.subr.bf16.mxu0 0
    %1922 = vmatpush1.bf16.msra.mxu0 %v1367
    %1923 = vmatprep.subr.bf16.mxu0 0
    %1924 = vmatpush1.bf16.msra.mxu0 %v1368
    %1925 = vmatprep.subr.bf16.mxu0 0
    %1926 = vmatpush1.bf16.msra.mxu0 %v1369
    %1927 = vmatprep.subr.bf16.mxu0 0
    %1928 = vmatpush1.bf16.msra.mxu0 %v1370
    %1929 = vmatprep.subr.bf16.mxu0 0
    %1930 = vmatpush1.bf16.msra.mxu0 %v1371
    %1931 = vmatprep.subr.bf16.mxu0 0
    %1932 = vmatpush1.bf16.msra.mxu0 %v1372
    %1933 = vmatprep.subr.bf16.mxu0 0
    %1934 = vmatpush1.bf16.msra.mxu0 %v1373
    %1935 = vmatprep.subr.bf16.mxu0 0
    %1936 = vmatpush1.bf16.msra.mxu0 %v1374
    %1937 = vmatprep.subr.bf16.mxu0 0
    %1938 = vmatpush1.bf16.msra.mxu0 %v1375
    %1939 = vmatprep.subr.bf16.mxu0 0
    %1940 = vmatpush1.bf16.msra.mxu0 %v1376
    %1941 = vmatprep.subr.bf16.mxu0 0
    %1942 = vmatpush1.bf16.msra.mxu0 %v1377
    %1943 = vmatprep.subr.bf16.mxu0 0
    %1944 = vmatpush1.bf16.msra.mxu0 %v1378
    %1945 = vmatprep.subr.bf16.mxu0 0
    %1946 = vmatpush1.bf16.msra.mxu0 %v1379
    %1947 = vmatprep.subr.bf16.mxu0 0
    %1948 = vmatpush1.bf16.msra.mxu0 %v1380
    %1949 = vmatprep.mubr.bf16.mxu0 %v92
    %1950 = vmatmul.mubr.bf16.gmra.mrb[0].mxu0 %v91
    %v1951 = vpop.f32.mrb[0].mxu0
    %v1952 = vadd.f32 %v1912, %v1951
    %v1953 = vpop.f32.mrb[0].mxu0
    %v1954 = vpop.f32.mrb[0].mxu0
    %v1955 = vpop.f32.mrb[0].mxu0
    %1956 = vdwg.mxu0
    %1957 = vmatprep.subr.bf16.mxu0 0
    %1958 = vmatpush1.bf16.msra.mxu0 %v1381
    %1959 = vmatprep.subr.bf16.mxu0 0
    %1960 = vmatpush1.bf16.msra.mxu0 %v1382
    %1961 = vmatprep.subr.bf16.mxu0 0
    %1962 = vmatpush1.bf16.msra.mxu0 %v1383
    %1963 = vmatprep.subr.bf16.mxu0 0
    %1964 = vmatpush1.bf16.msra.mxu0 %v1384
    %1965 = vmatprep.subr.bf16.mxu0 0
    %1966 = vmatpush1.bf16.msra.mxu0 %v1385
    %1967 = vmatprep.subr.bf16.mxu0 0
    %1968 = vmatpush1.bf16.msra.mxu0 %v1386
    %1969 = vmatprep.subr.bf16.mxu0 0
    %1970 = vmatpush1.bf16.msra.mxu0 %v1387
    %1971 = vmatprep.subr.bf16.mxu0 0
    %1972 = vmatpush1.bf16.msra.mxu0 %v1388
    %1973 = vmatprep.subr.bf16.mxu0 0
    %1974 = vmatpush1.bf16.msra.mxu0 %v1389
    %1975 = vmatprep.subr.bf16.mxu0 0
    %1976 = vmatpush1.bf16.msra.mxu0 %v1390
    %1977 = vmatprep.subr.bf16.mxu0 0
    %1978 = vmatpush1.bf16.msra.mxu0 %v1391
    %1979 = vmatprep.subr.bf16.mxu0 0
    %1980 = vmatpush1.bf16.msra.mxu0 %v1392
    %1981 = vmatprep.subr.bf16.mxu0 0
    %1982 = vmatpush1.bf16.msra.mxu0 %v1393
    %1983 = vmatprep.subr.bf16.mxu0 0
    %1984 = vmatpush1.bf16.msra.mxu0 %v1394
    %1985 = vmatprep.subr.bf16.mxu0 0
    %1986 = vmatpush1.bf16.msra.mxu0 %v1395
    %1987 = vmatprep.subr.bf16.mxu0 0
    %1988 = vmatpush1.bf16.msra.mxu0 %v1396
    %1989 = vmatprep.mubr.bf16.mxu0 %v94
    %1990 = vmatmul.mubr.bf16.gmra.mrb[0].mxu0 %v93
    %v1991 = vpop.f32.mrb[0].mxu0
    %v1992 = vadd.f32 %v1952, %v1991
    %v1993 = vpop.f32.mrb[0].mxu0
    %v1994 = vpop.f32.mrb[0].mxu0
    %v1995 = vpop.f32.mrb[0].mxu0
    %1996 = vdwg.mxu0
    %1997 = vmatprep.subr.bf16.mxu0 0
    %1998 = vmatpush1.bf16.msra.mxu0 %v1397
    %1999 = vmatprep.subr.bf16.mxu0 0
    %2000 = vmatpush1.bf16.msra.mxu0 %v1398
    %2001 = vmatprep.subr.bf16.mxu0 0
    %2002 = vmatpush1.bf16.msra.mxu0 %v1399
    %2003 = vmatprep.subr.bf16.mxu0 0
    %2004 = vmatpush1.bf16.msra.mxu0 %v1400
    %2005 = vmatprep.subr.bf16.mxu0 0
    %2006 = vmatpush1.bf16.msra.mxu0 %v1401
    %2007 = vmatprep.subr.bf16.mxu0 0
    %2008 = vmatpush1.bf16.msra.mxu0 %v1402
    %2009 = vmatprep.subr.bf16.mxu0 0
    %2010 = vmatpush1.bf16.msra.mxu0 %v1403
    %2011 = vmatprep.subr.bf16.mxu0 0
    %2012 = vmatpush1.bf16.msra.mxu0 %v1404
    %2013 = vmatprep.subr.bf16.mxu0 0
    %2014 = vmatpush1.bf16.msra.mxu0 %v1405
    %2015 = vmatprep.subr.bf16.mxu0 0
    %2016 = vmatpush1.bf16.msra.mxu0 %v1406
    %2017 = vmatprep.subr.bf16.mxu0 0
    %2018 = vmatpush1.bf16.msra.mxu0 %v1407
    %2019 = vmatprep.subr.bf16.mxu0 0
    %2020 = vmatpush1.bf16.msra.mxu0 %v1408
    %2021 = vmatprep.subr.bf16.mxu0 0
    %2022 = vmatpush1.bf16.msra.mxu0 %v1409
    %2023 = vmatprep.subr.bf16.mxu0 0
    %2024 = vmatpush1.bf16.msra.mxu0 %v1410
    %2025 = vmatprep.subr.bf16.mxu0 0
    %2026 = vmatpush1.bf16.msra.mxu0 %v1411
    %2027 = vmatprep.subr.bf16.mxu0 0
    %2028 = vmatpush1.bf16.msra.mxu0 %v1412
    %2029 = vmatprep.mubr.bf16.mxu0 %v96
    %2030 = vmatmul.mubr.bf16.gmra.mrb[0].mxu0 %v95
    %v2031 = vpop.f32.mrb[0].mxu0
    %v2032 = vadd.f32 %v1992, %v2031
    %v2033 = vpop.f32.mrb[0].mxu0
    %v2034 = vpop.f32.mrb[0].mxu0
    %v2035 = vpop.f32.mrb[0].mxu0
    %2036 = vdwg.mxu0
    %2037 = vmatprep.subr.bf16.mxu0 0
    %2038 = vmatpush1.bf16.msra.mxu0 %v1413
    %2039 = vmatprep.subr.bf16.mxu0 0
    %2040 = vmatpush1.bf16.msra.mxu0 %v1414
    %2041 = vmatprep.subr.bf16.mxu0 0
    %2042 = vmatpush1.bf16.msra.mxu0 %v1415
    %2043 = vmatprep.subr.bf16.mxu0 0
    %2044 = vmatpush1.bf16.msra.mxu0 %v1416
    %2045 = vmatprep.subr.bf16.mxu0 0
    %2046 = vmatpush1.bf16.msra.mxu0 %v1417
    %2047 = vmatprep.subr.bf16.mxu0 0
    %2048 = vmatpush1.bf16.msra.mxu0 %v1418
    %2049 = vmatprep.subr.bf16.mxu0 0
    %2050 = vmatpush1.bf16.msra.mxu0 %v1419
    %2051 = vmatprep.subr.bf16.mxu0 0
    %2052 = vmatpush1.bf16.msra.mxu0 %v1420
    %2053 = vmatprep.subr.bf16.mxu0 0
    %2054 = vmatpush1.bf16.msra.mxu0 %v1421
    %2055 = vmatprep.subr.bf16.mxu0 0
    %2056 = vmatpush1.bf16.msra.mxu0 %v1422
    %2057 = vmatprep.subr.bf16.mxu0 0
    %2058 = vmatpush1.bf16.msra.mxu0 %v1423
    %2059 = vmatprep.subr.bf16.mxu0 0
    %2060 = vmatpush1.bf16.msra.mxu0 %v1424
    %2061 = vmatprep.subr.bf16.mxu0 0
    %2062 = vmatpush1.bf16.msra.mxu0 %v1425
    %2063 = vmatprep.subr.bf16.mxu0 0
    %2064 = vmatpush1.bf16.msra.mxu0 %v1426
    %2065 = vmatprep.subr.bf16.mxu0 0
    %2066 = vmatpush1.bf16.msra.mxu0 %v1427
    %2067 = vmatprep.subr.bf16.mxu0 0
    %2068 = vmatpush1.bf16.msra.mxu0 %v1428
    %2069 = vmatprep.mubr.bf16.mxu0 %v98
    %2070 = vmatmul.mubr.bf16.gmra.mrb[0].mxu0 %v97
    %v2071 = vpop.f32.mrb[0].mxu0
    %v2072 = vadd.f32 %v2032, %v2071
    %v2073 = vpop.f32.mrb[0].mxu0
    %v2074 = vpop.f32.mrb[0].mxu0
    %v2075 = vpop.f32.mrb[0].mxu0
    %2076 = vdwg.mxu0
    %2077 = vmatprep.subr.bf16.mxu0 0
    %2078 = vmatpush1.bf16.msra.mxu0 %v1429
    %2079 = vmatprep.subr.bf16.mxu0 0
    %2080 = vmatpush1.bf16.msra.mxu0 %v1430
    %2081 = vmatprep.subr.bf16.mxu0 0
    %2082 = vmatpush1.bf16.msra.mxu0 %v1431
    %2083 = vmatprep.subr.bf16.mxu0 0
    %2084 = vmatpush1.bf16.msra.mxu0 %v1432
    %2085 = vmatprep.subr.bf16.mxu0 0
    %2086 = vmatpush1.bf16.msra.mxu0 %v1433
    %2087 = vmatprep.subr.bf16.mxu0 0
    %2088 = vmatpush1.bf16.msra.mxu0 %v1434
    %2089 = vmatprep.subr.bf16.mxu0 0
    %2090 = vmatpush1.bf16.msra.mxu0 %v1435
    %2091 = vmatprep.subr.bf16.mxu0 0
    %2092 = vmatpush1.bf16.msra.mxu0 %v1436
    %2093 = vmatprep.subr.bf16.mxu0 0
    %2094 = vmatpush1.bf16.msra.mxu0 %v1437
    %2095 = vmatprep.subr.bf16.mxu0 0
    %2096 = vmatpush1.bf16.msra.mxu0 %v1438
    %2097 = vmatprep.subr.bf16.mxu0 0
    %2098 = vmatpush1.bf16.msra.mxu0 %v1439
    %2099 = vmatprep.subr.bf16.mxu0 0
    %2100 = vmatpush1.bf16.msra.mxu0 %v1440
    %2101 = vmatprep.subr.bf16.mxu0 0
    %2102 = vmatpush1.bf16.msra.mxu0 %v1441
    %2103 = vmatprep.subr.bf16.mxu0 0
    %2104 = vmatpush1.bf16.msra.mxu0 %v1442
    %2105 = vmatprep.subr.bf16.mxu0 0
    %2106 = vmatpush1.bf16.msra.mxu0 %v1443
    %2107 = vmatprep.subr.bf16.mxu0 0
    %2108 = vmatpush1.bf16.msra.mxu0 %v1444
    %2109 = vmatprep.mubr.bf16.mxu0 %v100
    %2110 = vmatmul.mubr.bf16.gmra.mrb[0].mxu0 %v99
    %v2111 = vpop.f32.mrb[0].mxu0
    %v2112 = vadd.f32 %v2072, %v2111
    %v2113 = vpop.f32.mrb[0].mxu0
    %v2114 = vpop.f32.mrb[0].mxu0
    %v2115 = vpop.f32.mrb[0].mxu0
    %2116 = vdwg.mxu0
    %v2117 = vld [vmem:[%s3] sm:$0x1]
    %v2119 = vlaneseq
    %v2120 = vshrl.u32 %v2119, 7
    %v2121 = vsub.s32 0, %v2120
    %v2122 = vrot.slane %v2117, %v2121
    %v2124 = vsub.f32 %v2112, %v2122
    %v2125 = vld [vmem:[%s4] sm:$0xf]
    %vm2126 = vcmask 257024
    %v2127 = vsel %vm2126, %v2125, 0.0
    %2128 = vadd.xlane.f32.xlu0 %v2127
    %v2129 = vpop.xlane.xlu0 %2128
    %v2130 = vrcp.pop 32.0
    %v2131 = vmul.f32 %v2129, %v2130
    %v2132 = vsub.f32 %v2125, %v2131
    %v2133 = vmul.f32 %v2132, %v2132
    %v2134 = vsel %vm2126, %v2133, 0.0
    %2135 = vadd.xlane.f32.xlu0 %v2134
    %v2136 = vpop.xlane.xlu0 %2135
    %v2137 = vrcp.pop 31.0
    %v2138 = vmul.f32 %v2136, %v2137
    %v2139 = vrsqrt.pop %v2138
    %v2140 = vmul.f32 %v2138, %v2139
    %vm2141 = vcmp.eq.f32.partialorder %v2138, inf
    %v2142 = vsel %vm2141, %v2138, %v2140
    %vm2143 = vcmp.eq.f32.partialorder %v2138, 0.0
    %v2144 = vand.u32 %v2138, 2147483648
    %v2145 = vsel %vm2143, %v2144, %v2142
    %v2146 = vsub.f32 1.0, %v2145
    %v2147 = vand.u32 2147483647, %v2146
    %vm2148 = vcmask 3072
    %v2149 = vsel %vm2148, %v2147, 0.0
    %2150 = vadd.xlane.f32.xlu0 %v2149
    %v2151 = vpop.xlane.xlu0 %2150
    %v2152 = vrot.slane %v2151, 4
    %v2153 = vadd.f32 %v2151, %v2152
    %v2154 = vrot.slane %v2153, 2
    %v2155 = vadd.f32 %v2153, %v2154
    %v2156 = vrot.slane %v2155, 1
    %v2157 = vadd.f32 %v2155, %v2156
    %s2158 = vtos %v2157
    %v2159 = vrcp.pop 4.0
    %s2160 = vtos %v2159
    %s2161 = smul.f32 %s2158, %s2160
    %v2162 = vand.u32 2147483647, %v2131
    %v2163 = vsel %vm2148, %v2162, 0.0
    %2164 = vadd.xlane.f32.xlu0 %v2163
    %v2165 = vpop.xlane.xlu0 %2164
    %v2166 = vrot.slane %v2165, 4
    %v2167 = vadd.f32 %v2165, %v2166
    %v2168 = vrot.slane %v2167, 2
    %v2169 = vadd.f32 %v2167, %v2168
    %v2170 = vrot.slane %v2169, 1
    %v2171 = vadd.f32 %v2169, %v2170
    %s2172 = vtos %v2171
    %v2173 = vrcp.pop 4.0
    %s2174 = vtos %v2173
    %s2175 = smul.f32 %s2172, %s2174
    %v2176 = vmul.f32 %v2125, %v2125
    %v2177 = vsel %vm2126, %v2176, 0.0
    %2178 = vadd.xlane.f32.xlu0 %v2177
    %v2179 = vpop.xlane.xlu0 %2178
    %v2180 = vrot.slane %v2179, 4
    %v2181 = vadd.f32 %v2179, %v2180
    %v2182 = vrot.slane %v2181, 2
    %v2183 = vadd.f32 %v2181, %v2182
    %v2184 = vrot.slane %v2183, 1
    %v2185 = vadd.f32 %v2183, %v2184
    %s2186 = vtos %v2185
    %v2187 = vrcp.pop 128.0
    %s2188 = vtos %v2187
    %s2189 = smul.f32 %s2186, %s2188
    %s2190 = sld [smem:[#allocation2]]
    %s2191 = smax.f32 %s2189, %s2190
    %s2192 = smul.f32 %s2191, 4.0
    %v2193 = vmul.f32 %v2136, %v2130
    %v2194 = vmax.f32 %v2193, 1e-20
    %v2195 = vrsqrt.pop %v2194
    %v2196 = vmul.f32 %v2132, %v2195
    %v2197 = vmul.f32 %v2196, %v2196
    %v2198 = vmul.f32 %v2197, %v2196
    %v2199 = vsel %vm2126, %v2198, 0.0
    %2200 = vadd.xlane.f32.xlu0 %v2199
    %v2201 = vpop.xlane.xlu0 %2200
    %v2202 = vmul.f32 %v2201, %v2130
    %v2203 = vmul.f32 %v2197, %v2197
    %v2204 = vsel %vm2126, %v2203, 0.0
    %2205 = vadd.xlane.f32.xlu0 %v2204
    %v2206 = vpop.xlane.xlu0 %2205
    %v2207 = vmul.f32 %v2206, %v2130
    %v2208 = vsub.f32 %v2207, 3.0
    %v2209 = vand.u32 2147483647, %v2208
    %v2210 = vand.u32 2147483647, %v2202
    %v2211 = vadd.f32 %v2209, %v2210
    %v2212 = vsel %vm2148, %v2211, 0.0
    %2213 = vadd.xlane.f32.xlu0 %v2212
    %v2214 = vpop.xlane.xlu0 %2213
    %v2215 = vrot.slane %v2214, 4
    %v2216 = vadd.f32 %v2214, %v2215
    %v2217 = vrot.slane %v2216, 2
    %v2218 = vadd.f32 %v2216, %v2217
    %v2219 = vrot.slane %v2218, 1
    %v2220 = vadd.f32 %v2218, %v2219
    %s2221 = vtos %v2220
    %v2222 = vrcp.pop 4.0
    %s2223 = vtos %v2222
    %s2224 = smul.f32 %s2221, %s2223
    %s2225 = sadd.f32 %s2161, %s2175
    %s2226 = sadd.f32 %s2225, %s2192
    %s2227 = sadd.f32 %s2226, %s2224
    %v2228 = vld [vmem:[%s5] sm:$0xf]
    %v2229 = vsub.f32 0.0, %v2228
    %v2230 = vmul.f32 %v2229, 1.442695
    %v2231 = vpow.pop %v2230
    %v2232 = vadd.f32 %v2231, 1.0
    %v2233 = vrcp.pop %v2232
    %v2234 = vmul.f32 1.0, %v2233
    %v2235 = vmul.f32 %v2234, %v2234
    %vm2236 = vcmask 125952
    %v2237 = vsel %vm2236, %v2235, -inf
    %2238 = vmax.xlane.f32.xlu0 %v2237
    %v2239 = vpop.xlane.xlu0 %2238
    %v2240 = vsel %vm2148, %v2239, 0.0
    %2241 = vadd.xlane.f32.xlu0 %v2240
    %v2242 = vpop.xlane.xlu0 %2241
    %v2243 = vrot.slane %v2242, 4
    %v2244 = vadd.f32 %v2242, %v2243
    %v2245 = vrot.slane %v2244, 2
    %v2246 = vadd.f32 %v2244, %v2245
    %v2247 = vrot.slane %v2246, 1
    %v2248 = vadd.f32 %v2246, %v2247
    %s2249 = vtos %v2248
    %v2250 = vsel %vm2236, %v2235, 0.0
    %2251 = vadd.xlane.f32.xlu0 %v2250
    %v2252 = vpop.xlane.xlu0 %2251
    %v2253 = vrot.slane %v2252, 4
    %v2254 = vadd.f32 %v2252, %v2253
    %v2255 = vrot.slane %v2254, 2
    %v2256 = vadd.f32 %v2254, %v2255
    %v2257 = vrot.slane %v2256, 1
    %v2258 = vadd.f32 %v2256, %v2257
    %s2259 = vtos %v2258
    %s2260 = ssub.f32 %s2259, %s2249
    %s2261 = smul.f32 %s2260, 2500.0
    %v2262 = vrcp.pop 60.0
    %s2263 = vtos %v2262
    %s2264 = smul.f32 %s2261, %s2263
    %v2265 = vld [vmem:[%s6] sm:$0x7]
    %vm2266 = vcmask 261120
    %v2268 = vsel %vm2266, %v2265, 0
    %v2271 = vsel %vm2266, %v2124, 0
    %2273 = vmatprep.subr.mxu0 0.0
    %2274 = vmatpush1.xpose.msra.mxu0 %v2271
    %2275 = vmatprep.subr.mxu0 0.0
    %2276 = vmatpush1.xpose.msra.mxu0 0.0
    %2277 = vmatprep.subr.mxu0 0.0
    %2278 = vmatpush1.xpose.msra.mxu0 0.0
    %2279 = vmatprep.subr.mxu0 0.0
    %2280 = vmatpush1.xpose.msra.mxu0 0.0
    %2281 = vmatprep.subr.mxu0 0.0
    %2282 = vmatpush1.xpose.msra.mxu0 0.0
    %2283 = vmatprep.subr.mxu0 0.0
    %2284 = vmatpush1.xpose.msra.mxu0 0.0
    %2285 = vmatprep.subr.mxu0 0.0
    %2286 = vmatpush1.xpose.msra.mxu0 0.0
    %2287 = vmatprep.subr.mxu0 0.0
    %2288 = vmatpush1.xpose.msra.mxu0 0.0
    %2289 = vmatprep.subr.mxu0 0.0
    %2290 = vmatpush1.xpose.msra.mxu0 0.0
    %2291 = vmatprep.subr.mxu0 0.0
    %2292 = vmatpush1.xpose.msra.mxu0 0.0
    %2293 = vmatprep.subr.mxu0 0.0
    %2294 = vmatpush1.xpose.msra.mxu0 0.0
    %2295 = vmatprep.subr.mxu0 0.0
    %2296 = vmatpush1.xpose.msra.mxu0 0.0
    %2297 = vmatprep.subr.mxu0 0.0
    %2298 = vmatpush1.xpose.msra.mxu0 0.0
    %2299 = vmatprep.subr.mxu0 0.0
    %2300 = vmatpush1.xpose.msra.mxu0 0.0
    %2301 = vmatprep.subr.mxu0 0.0
    %2302 = vmatpush1.xpose.msra.mxu0 0.0
    %2303 = vmatprep.subr.mxu0 0.0
    %2304 = vmatpush1.xpose.msra.mxu0 0.0
    %2305 = vmatprep.subr.mxu0 0.0
    %2306 = vmatpush1.xpose.msra.mxu0 0.0
    %2307 = vmatprep.subr.mxu0 0.0
    %2308 = vmatpush1.xpose.msra.mxu0 0.0
    %2309 = vmatprep.subr.mxu0 0.0
    %2310 = vmatpush1.xpose.msra.mxu0 0.0
    %2311 = vmatprep.subr.mxu0 0.0
    %2312 = vmatpush1.xpose.msra.mxu0 0.0
    %2313 = vmatprep.subr.mxu0 0.0
    %2314 = vmatpush1.xpose.msra.mxu0 0.0
    %2315 = vmatprep.subr.mxu0 0.0
    %2316 = vmatpush1.xpose.msra.mxu0 0.0
    %2317 = vmatprep.subr.mxu0 0.0
    %2318 = vmatpush1.xpose.msra.mxu0 0.0
    %2319 = vmatprep.subr.mxu0 0.0
    %2320 = vmatpush1.xpose.msra.mxu0 0.0
    %2321 = vmatprep.subr.mxu0 0.0
    %2322 = vmatpush1.xpose.msra.mxu0 0.0
    %2323 = vmatprep.subr.mxu0 0.0
    %2324 = vmatpush1.xpose.msra.mxu0 0.0
    %2325 = vmatprep.subr.mxu0 0.0
    %2326 = vmatpush1.xpose.msra.mxu0 0.0
    %2327 = vmatprep.subr.mxu0 0.0
    %2328 = vmatpush1.xpose.msra.mxu0 0.0
    %2329 = vmatprep.subr.mxu0 0.0
    %2330 = vmatpush1.xpose.msra.mxu0 0.0
    %2331 = vmatprep.subr.mxu0 0.0
    %2332 = vmatpush1.xpose.msra.mxu0 0.0
    %2333 = vmatprep.subr.mxu0 0.0
    %2334 = vmatpush1.xpose.msra.mxu0 0.0
    %2335 = vmatprep.subr.mxu0 0.0
    %2336 = vmatpush1.xpose.msra.mxu0 0.0
    %2337 = vmatprep.mubr.f32.mxu0 0.0
    %2338 = vmatmul.mubr.f32.gmra.mrb[0].mxu0 %v2268
    %v2339 = vpop.f32.mrb[0].mxu0
    %v2340 = vadd.f32 0.0, %v2339
    %v2341 = vpop.f32.mrb[0].mxu0
    %2342 = vdwg.mxu0
    %v2343 = vmul.f32 %v2265, %v2265
    %vm2344 = vcmask 256000
    %v2345 = vsel %vm2344, %v2343, 0.0
    %2346 = vadd.xlane.f32.xlu0 %v2345
    %v2347 = vpop.xlane.xlu0 %2346
    %v2348 = vmax.f32 %v2347, 1e-12
    %v2349 = vrsqrt.pop %v2348
    %v2350 = vmul.f32 %v2124, %v2124
    %v2351 = vsel %vm2126, %v2350, 0.0
    %2352 = vadd.xlane.f32.xlu0 %v2351
    %v2353 = vpop.xlane.xlu0 %2352
    %v2354 = vmax.f32 %v2353, 1e-12
    %v2355 = vrsqrt.pop %v2354
    %v2356 = vmul.f32 %v2340, %v2349
    %v2358 = vlaneseq
    %v2359 = vand.u32 %v2358, 127
    %v2360 = vlaneseq
    %v2361 = vshrl.u32 %v2360, 7
    %v2362 = vsub.s32 %v2359, %v2361
    %v2363 = vrot.slane %v2355, %v2362
    %vm2364 = vcmask 1042434
    %v2365 = vsel %vm2364, %v2363, %v2363
    %v2367 = vmul.f32 %v2356, %v2365
    %vm2368 = vcmask 26624
    %v2369 = vsel %vm2368, %v2367, 0.0
    %2370 = vadd.xlane.f32.xlu0 %v2369
    %v2371 = vpop.xlane.xlu0 %2370
    %v2372 = vrcp.pop 4.0
    %v2373 = vmul.f32 %v2371, %v2372
    %v2374 = vlaneseq
    %v2375 = vshrl.u32 %v2374, 7
    %vm2376 = vcmp.lt.s32.totalorder %v2375, 2
    %v2377 = vsel %vm2376, -1.0, 1.0
    %v2378 = vmul.f32 %v2377, 100.0
    %v2379 = vmul.f32 %v2378, %v2373
    %vm2380 = vcmask 2048
    %v2381 = vsel %vm2380, %v2379, 0.0
    %2382 = vadd.xlane.f32.xlu0 %v2381
    %v2383 = vpop.xlane.xlu0 %2382
    %v2384 = vrot.slane %v2383, 4
    %v2385 = vadd.f32 %v2383, %v2384
    %v2386 = vrot.slane %v2385, 2
    %v2387 = vadd.f32 %v2385, %v2386
    %v2388 = vrot.slane %v2387, 1
    %v2389 = vadd.f32 %v2387, %v2388
    %s2390 = vtos %v2389
    %s2391 = scalar_lea.smem [#allocation3], 0
    %2392 = sst [smem:[%s2391]] %s2227
    %s2393 = scalar_lea.smem [#allocation3], 1
    %2394 = sst [smem:[%s2393]] %s2264
    %s2395 = scalar_lea.smem [#allocation3], 2
    %2396 = sst [smem:[%s2395]] %s2390
    %s2397 = scalar_lea.smem [#allocation3], 3
    %2398 = sst [smem:[%s2397]] 0.0
    // Predicated region
    $region30: #{_device_forward.3} parent=1 // pred_check
      _
    $region31: #{_device_forward.3} parent=1 // pred_check_branch
      %2400 = sbr.rel (0) target = $region33
    $region32: #{_device_forward.3} parent=1 // pred_region
      %s2402 = ssub.s32 16, 16
      %2403 = vsyncadd [#allocation4], %s2402
      %s2405 = sshll.u32 %s7, 4
      %s2406 = int_to_ptr.vmem [resolvable:$true] %s2405
      %2408 = dma.smem_to_vmem [#allocation3], 16, %s2406, [#allocation4]
    $region33: #{_device_forward.3} parent=1 // pred_fallthru
      _
    // Predicated region
    $region34: #{_device_forward.3} parent=1 // pred_check
      _
    $region35: #{_device_forward.3} parent=1 // pred_check_branch
      %2410 = sbr.rel (0) target = $region37
    $region36: #{_device_forward.3} parent=1 // pred_region
      %2411 = dma.done [#allocation4], 16
    $region37: #{_device_forward.3} parent=1 // pred_fallthru
      _
    %2412 = sfence
    %2413 = vsyncpa [#allocation4], 1

</llo_original>
